<compile_context>
chip_gen: v5e
topology: v5e:2x2
jax: 0.10.0
libtpu: 0.0.40
codegen_flags: <defaults>
</compile_context>

<pallas_src>
import jax
import jax.numpy as jnp
import numpy as np
from jax import lax
from jax.experimental import pallas as pl
from jax.experimental.pallas import tpu as pltpu

LANE = 128

_COMPILER_PARAMS = pltpu.CompilerParams(
    dimension_semantics=("parallel",),
    vmem_limit_bytes=32 * 1024 * 1024,
)


def _round_up(x, m):
    return (x + m - 1) // m * m


# ---------------------------------------------------------------------------
# Pallas kernels
# ---------------------------------------------------------------------------
def _features_kernel(x1_ref, w1_ref, b1_ref, w2_ref, b2_ref, out_ref, pad_ref):
    """Fused block1(conv3x3+bias+ReLU+pool2x2) -> block2(same) for one batch tile.

    x1_ref : (B, 4, M1, 9*C0)  per-pool-phase im2col of the padded input; rows are
                               ordered (parity-group, row, col) of the pooled grid
    w1_ref : (9*C0, C1)        b1_ref: (1, C1)
    w2_ref : (9*C1, C2)        b2_ref: (1, C2)
    out_ref: (B, H2*W2, C2)    block-2 pooled activations, NHWC row order
    pad_ref: (4, B, H2+1, W2+1, C1) scratch -- zero-padded parity planes of the
                               block-1 pooled output (block 2's conv input)
    """
    B, _, M1, K1 = x1_ref.shape
    C1 = w1_ref.shape[1]
    C2 = w2_ref.shape[1]
    H2 = pad_ref.shape[2] - 1
    W2 = pad_ref.shape[3] - 1
    M2 = H2 * W2

    # ---- block 1: one K=9*C0 matmul per pool phase, running max over phases
    # (relu(max) == max(relu); the bias is constant over the window so it is
    # added once after the max).
    w1 = w1_ref[...]
    best1 = None
    for uv in range(4):
        lhs = x1_ref[:, uv, :, :].reshape(B * M1, K1)
        cand = jnp.dot(lhs, w1, preferred_element_type=jnp.float32)
        best1 = cand if best1 is None else jnp.maximum(best1, cand)
    act1 = jnp.maximum(best1 + b1_ref[...], 0.0)                 # (B*M1, C1) f32
    act1 = act1.astype(pad_ref.dtype).reshape(B, 4, H2, W2, C1)

    # ---- scatter block-1 output into zero-padded parity planes so that every
    # block-2 conv tap below is a unit-stride static window (no strided reads).
    pad_ref[...] = jnp.zeros(pad_ref.shape, pad_ref.dtype)
    pad_ref[0, :, 1:1 + H2, 1:1 + W2, :] = act1[:, 0]            # (odd row,  odd col)
    pad_ref[1, :, 1:1 + H2, 0:W2,     :] = act1[:, 1]            # (odd row,  even col)
    pad_ref[2, :, 0:H2,     1:1 + W2, :] = act1[:, 2]            # (even row, odd col)
    pad_ref[3, :, 0:H2,     0:W2,     :] = act1[:, 3]            # (even row, even col)

    # ---- block 2: per pool phase gather the 9 taps, pack them along the
    # contraction dim (K = 9*C1) and do ONE matmul; running max over phases.
    w2 = w2_ref[...]
    best2 = None
    for u in range(2):
        for v in range(2):
            taps = []
            for kh in range(3):
                for kw in range(3):
                    plane = ((u + kh) % 2) * 2 + ((v + kw) % 2)
                    r0 = (u + kh) // 2
                    c0 = (v + kw) // 2
                    taps.append(pad_ref[plane, :, r0:r0 + H2, c0:c0 + W2, :])
            lhs = jnp.concatenate(taps, axis=-1).reshape(B * M2, 9 * C1)
            cand = jnp.dot(lhs, w2, preferred_element_type=jnp.float32)
            best2 = cand if best2 is None else jnp.maximum(best2, cand)
    act2 = jnp.maximum(best2 + b2_ref[...], 0.0)                 # (B*M2, C2) f32
    out_ref[...] = act2.reshape(B, M2, C2).astype(out_ref.dtype)


def _classifier_kernel(f_ref, w_ref, b_ref, o_ref):
    o_ref[...] = (jnp.dot(f_ref[...], w_ref[...],
                          preferred_element_type=jnp.float32) + b_ref[...])


# ---------------------------------------------------------------------------
# JAX glue
# ---------------------------------------------------------------------------
def _build_phase_im2col(x_nchw, dtype):
    """NCHW input -> (N, 4, (H/2)*(W/2), 9*C0): per-pool-phase, 9-tap im2col of
    the spatially zero-padded input, with pooled-output rows grouped by the
    (row, col) parity planes the fused kernel's block-2 stage expects."""
    n, c0, h, w = x_nchw.shape
    h1, w1 = h // 2, w // 2
    x = jnp.transpose(x_nchw, (0, 2, 3, 1)).astype(jnp.float32)   # NHWC
    xp = jnp.pad(x, ((0, 0), (1, 1), (1, 1), (0, 0)))
    phases = []
    for u in range(2):
        for v in range(2):
            taps = [xp[:, u + kh:u + kh + h:2, v + kw:v + kw + w:2, :]
                    for kh in range(3) for kw in range(3)]
            t = jnp.concatenate(taps, axis=-1)                    # (N, H1, W1, 9*C0)
            groups = jnp.stack(
                [t[:, 1::2, 1::2, :], t[:, 1::2, 0::2, :],
                 t[:, 0::2, 1::2, :], t[:, 0::2, 0::2, :]], axis=1)
            phases.append(groups.reshape(n, h1 * w1, 9 * c0))
    return jnp.stack(phases, axis=1).astype(dtype)                # (N, 4, H1*W1, 9*C0)


def vgg_forward(x_nchw, prepared, *, batch_tile=8):
    """VGG.forward: jvp = zeros_like(x); (out, jvp) = features(x, jvp);
    out = out + jvp; out = out.view(N, -1); out = classifier(out).
    The zero-seeded tangent stays identically zero, so the primal path below is
    exactly module-equivalent."""
    n, c0, h, w = x_nchw.shape
    assert h % 4 == 0 and w % 4 == 0, (h, w)
    dt = prepared["dtype"]
    c1 = prepared["w1"].shape[1]
    c2 = prepared["w2"].shape[1]
    assert prepared["w1"].shape[0] == 9 * c0
    h2, w2 = h // 4, w // 4
    m1, m2 = (h // 2) * (w // 2), h2 * w2
    assert m2 * c2 == prepared["fc_w"].shape[0], "features != Linear in_features"

    bt = n if n < batch_tile else batch_tile
    npad = _round_up(n, bt)
    if npad != n:
        x_nchw = jnp.pad(x_nchw, ((0, npad - n), (0, 0), (0, 0), (0, 0)))

    lhs1 = _build_phase_im2col(x_nchw, dt)                        # (Npad, 4, M1, 9*C0)

    feats = pl.pallas_call(
        _features_kernel,
        grid=(npad // bt,),
        in_specs=[
            pl.BlockSpec((bt, 4, m1, 9 * c0), lambda i: (i, 0, 0, 0)),
            pl.BlockSpec((9 * c0, c1), lambda i: (0, 0)),
            pl.BlockSpec((1, c1), lambda i: (0, 0)),
            pl.BlockSpec((9 * c1, c2), lambda i: (0, 0)),
            pl.BlockSpec((1, c2), lambda i: (0, 0)),
        ],
        out_specs=pl.BlockSpec((bt, m2, c2), lambda i: (i, 0, 0)),
        out_shape=jax.ShapeDtypeStruct((npad, m2, c2), dt),
        scratch_shapes=[pltpu.VMEM((4, bt, h2 + 1, w2 + 1, c1), dt)],
        compiler_params=_COMPILER_PARAMS,
    )(lhs1, prepared["w1"], prepared["b1"], prepared["w2"], prepared["b2"])

    f = feats.reshape(npad, m2 * c2)            # feature index k' = p*C2 + c (free)
    ncp = prepared["fc_w"].shape[1]
    logits = pl.pallas_call(
        _classifier_kernel,
        grid=(npad // bt,),
        in_specs=[
            pl.BlockSpec((bt, m2 * c2), lambda i: (i, 0)),
            pl.BlockSpec((m2 * c2, ncp), lambda i: (0, 0)),
            pl.BlockSpec((1, ncp), lambda i: (0, 0)),
        ],
        out_specs=pl.BlockSpec((bt, ncp), lambda i: (i, 0)),
        out_shape=jax.ShapeDtypeStruct((npad, ncp), jnp.float32),
        compiler_params=_COMPILER_PARAMS,
    )(f, prepared["fc_w"], prepared["fc_b"])

    return logits[:n, :prepared["num_classes"]]


# ---------------------------------------------------------------------------
# Parameters
# ---------------------------------------------------------------------------
def init_params(key, in_ch=4, num_classes=10):
    """PyTorch-layout parameters (what the nn.Module would hold)."""
    cfg = [(in_ch, 16), (16, 32)]            # two conv blocks; 32 * 4 * 4 = 512
    keys = jax.random.split(key, 2 * len(cfg) + 2)
    convs = []
    for i, (ci, co) in enumerate(cfg):
        w = jax.random.normal(keys[2 * i], (co, ci, 3, 3), jnp.float32) * 0.1
        b = jax.random.normal(keys[2 * i + 1], (co,), jnp.float32) * 0.01
        convs.append((w, b))
    fc_w = jax.random.normal(keys[-2], (num_classes, 512), jnp.float32) * 0.05
    fc_b = jax.random.normal(keys[-1], (num_classes,), jnp.float32) * 0.01
    return {"convs": convs, "fc_w": fc_w, "fc_b": fc_b}


def prepare_params(params, compute_dtype=jnp.bfloat16):
    """One-time conversion of PyTorch-layout params into packed kernel layouts:
    tap-packed conv weights (K = 9*Cin, no 128-padding of contraction dims), the
    classifier weight pre-permuted so the kernel's NHWC feature order matches
    PyTorch's NCHW flatten, and the class (lane) dim zero-padded to 128."""
    (w1t, b1t), (w2t, b2t) = params["convs"]
    c0, c1, c2 = w1t.shape[1], w1t.shape[0], w2t.shape[0]
    w1 = jnp.transpose(w1t, (2, 3, 1, 0)).reshape(9 * c0, c1).astype(compute_dtype)
    w2 = jnp.transpose(w2t, (2, 3, 1, 0)).reshape(9 * c1, c2).astype(compute_dtype)
    b1 = b1t.reshape(1, c1).astype(jnp.float32)
    b2 = b2t.reshape(1, c2).astype(jnp.float32)

    fc_w, fc_b = params["fc_w"], params["fc_b"]
    nc = fc_w.shape[0]
    m2 = fc_w.shape[1] // c2                   # = H2*W2 pooled positions
    ncp = _round_up(max(nc, LANE), LANE)
    # PyTorch flattens NCHW (k = c*M2 + p); the kernel emits features as p*C2 + c.
    wfc = jnp.transpose(fc_w.reshape(nc, c2, m2), (2, 1, 0)).reshape(m2 * c2, nc)
    wfc = jnp.pad(wfc, ((0, 0), (0, ncp - nc))).astype(compute_dtype)
    bfc = jnp.pad(fc_b, (0, ncp - nc)).reshape(1, ncp).astype(jnp.float32)
    return {"w1": w1, "b1": b1, "w2": w2, "b2": b2,
            "fc_w": wfc, "fc_b": bfc, "num_classes": nc, "dtype": compute_dtype}


# ---------------------------------------------------------------------------
# Pure-JAX reference (validation only)
# ---------------------------------------------------------------------------
def _reference_forward(x_nchw, params):
    y = jnp.transpose(x_nchw, (0, 2, 3, 1)).astype(jnp.float32)
    for (wt, bt) in params["convs"]:
        k = jnp.transpose(wt, (2, 3, 1, 0))                      # HWIO
        y = lax.conv_general_dilated(
            y, k, window_strides=(1, 1), padding="SAME",
            dimension_numbers=("NHWC", "HWIO", "NHWC"),
            precision=lax.Precision.HIGHEST)
        y = jnp.maximum(y + bt, 0.0)
        y = jnp.maximum(jnp.maximum(y[:, 0::2, 0::2, :], y[:, 0::2, 1::2, :]),
                        jnp.maximum(y[:, 1::2, 0::2, :], y[:, 1::2, 1::2, :]))
    flat = jnp.transpose(y, (0, 3, 1, 2)).reshape(y.shape[0], -1)   # NCHW flatten
    return jnp.dot(flat, params["fc_w"].T,
                   precision=lax.Precision.HIGHEST) + params["fc_b"]


# ---------------------------------------------------------------------------
if __name__ == "__main__":
    key = jax.random.PRNGKey(0)
    k_x, k_p = jax.random.split(key, 2)
    x = jax.random.normal(k_x, (2, 4, 16, 16), jnp.float32)      # NCHW, like PyTorch
    params = init_params(k_p, in_ch=4, num_classes=10)
    ref = np.asarray(_reference_forward(x, params))

    # Default path: bf16 MXU operands, f32 accumulation (review item 6).
    prep_bf16 = prepare_params(params, compute_dtype=jnp.bfloat16)
    fwd_bf16 = jax.jit(lambda a: vgg_forward(a, prep_bf16))
    out_bf16 = jax.block_until_ready(fwd_bf16(x))
    assert out_bf16.shape == (2, 10) and out_bf16.dtype == jnp.float32
    np.testing.assert_allclose(np.asarray(out_bf16), ref, rtol=5e-2, atol=5e-2)

    # f32 path validates the kernel structure at tight tolerance.
    prep_f32 = prepare_params(params, compute_dtype=jnp.float32)
    fwd_f32 = jax.jit(lambda a: vgg_forward(a, prep_f32))
    out_f32 = jax.block_until_ready(fwd_f32(x))
    np.testing.assert_allclose(np.asarray(out_f32), ref, rtol=1e-3, atol=1e-3)

    print("KERNEL_OK")
</pallas_src>

<mosaic_0001>
module attributes {stable_mosaic.version = 11 : i64} {
  func.func @_classifier_kernel(%arg0: i32, %arg1: memref<2x512xbf16, #tpu.memory_space<vmem>>, %arg2: memref<512x128xbf16, #tpu.memory_space<vmem>>, %arg3: memref<1x128xf32, #tpu.memory_space<vmem>>, %arg4: memref<2x128xf32, #tpu.memory_space<vmem>>) attributes {dimension_semantics = [#tpu.dimension_semantics<parallel>], iteration_bounds = array<i64: 1>, scalar_prefetch = 0 : i64, scratch_operands = 0 : i64, tpu.core_type = #tpu.core_type<tc>, window_params = [{transform_indices = @transform_0, window_bounds = array<i64: 2, 512>}, {pipeline_mode = #tpu.pipeline_mode<synchronous>, transform_indices = @transform_1, window_bounds = array<i64: 512, 128>}, {pipeline_mode = #tpu.pipeline_mode<synchronous>, transform_indices = @transform_2, window_bounds = array<i64: 1, 128>}, {transform_indices = @transform_3, window_bounds = array<i64: 2, 128>}]} {
    %c0 = arith.constant 0 : index
    %c0_0 = arith.constant 0 : index
    %0 = vector.load %arg1[%c0, %c0_0] : memref<2x512xbf16, #tpu.memory_space<vmem>>, vector<2x512xbf16>
    %c0_1 = arith.constant 0 : index
    %c0_2 = arith.constant 0 : index
    %1 = vector.load %arg2[%c0_1, %c0_2] : memref<512x128xbf16, #tpu.memory_space<vmem>>, vector<512x128xbf16>
    %cst = arith.constant dense<0.000000e+00> : vector<2x128xf32>
    %2 = tpu.matmul %0, %1, %cst {dimension_numbers = #tpu.dot_dimension_numbers<[1], [0], [0], [1], [0, 0, 1, 1], [], []>} : vector<2x512xbf16>, vector<512x128xbf16>, vector<2x128xf32> -> vector<2x128xf32>
    %c0_3 = arith.constant 0 : index
    %c0_4 = arith.constant 0 : index
    %3 = vector.load %arg3[%c0_3, %c0_4] : memref<1x128xf32, #tpu.memory_space<vmem>>, vector<1x128xf32>
    %4 = vector.broadcast %3 : vector<1x128xf32> to vector<2x128xf32>
    %5 = arith.addf %2, %4 : vector<2x128xf32>
    %c0_5 = arith.constant 0 : index
    %c0_6 = arith.constant 0 : index
    %6 = vector.load %arg4[%c0_5, %c0_6] : memref<2x128xf32, #tpu.memory_space<vmem>>, vector<2x128xf32>
    tpu.vector_store %arg4[%c0_5, %c0_6], %5 {strides = array<i32>} : memref<2x128xf32, #tpu.memory_space<vmem>>, vector<2x128xf32>,
    return
  }
  func.func @transform_0(%arg0: i32) -> (i32, i32) {
    %c0_i32 = arith.constant 0 : i32
    %c0_i32_0 = arith.constant 0 : i32
    return %arg0, %c0_i32 : i32, i32
  }
  func.func @transform_1(%arg0: i32) -> (i32, i32) {
    %c0_i32 = arith.constant 0 : i32
    %c0_i32_0 = arith.constant 0 : i32
    %c0_i32_1 = arith.constant 0 : i32
    return %c0_i32, %c0_i32_0 : i32, i32
  }
  func.func @transform_2(%arg0: i32) -> (i32, i32) {
    %c0_i32 = arith.constant 0 : i32
    %c0_i32_0 = arith.constant 0 : i32
    %c0_i32_1 = arith.constant 0 : i32
    return %c0_i32, %c0_i32_0 : i32, i32
  }
  func.func @transform_3(%arg0: i32) -> (i32, i32) {
    %c0_i32 = arith.constant 0 : i32
    %c0_i32_0 = arith.constant 0 : i32
    return %arg0, %c0_i32 : i32, i32
  }
}

module attributes {stable_mosaic.version = 11 : i64} {
  func.func @_features_kernel(%arg0: i32, %arg1: memref<2x4x64x36xbf16, #tpu.memory_space<vmem>>, %arg2: memref<36x16xbf16, #tpu.memory_space<vmem>>, %arg3: memref<1x16xf32, #tpu.memory_space<vmem>>, %arg4: memref<144x32xbf16, #tpu.memory_space<vmem>>, %arg5: memref<1x32xf32, #tpu.memory_space<vmem>>, %arg6: memref<2x16x32xbf16, #tpu.memory_space<vmem>>, %arg7: memref<4x2x5x5x16xbf16, #tpu.memory_space<vmem>>) attributes {dimension_semantics = [#tpu.dimension_semantics<parallel>], iteration_bounds = array<i64: 1>, scalar_prefetch = 0 : i64, scratch_operands = 1 : i64, tpu.core_type = #tpu.core_type<tc>, window_params = [{transform_indices = @transform_0, window_bounds = array<i64: 2, 4, 64, 36>}, {pipeline_mode = #tpu.pipeline_mode<synchronous>, transform_indices = @transform_1, window_bounds = array<i64: 36, 16>}, {pipeline_mode = #tpu.pipeline_mode<synchronous>, transform_indices = @transform_2, window_bounds = array<i64: 1, 16>}, {pipeline_mode = #tpu.pipeline_mode<synchronous>, transform_indices = @transform_3, window_bounds = array<i64: 144, 32>}, {pipeline_mode = #tpu.pipeline_mode<synchronous>, transform_indices = @transform_4, window_bounds = array<i64: 1, 32>}, {transform_indices = @transform_5, window_bounds = array<i64: 2, 16, 32>}]} {
    %c0 = arith.constant 0 : index
    %c0_0 = arith.constant 0 : index
    %0 = vector.load %arg2[%c0, %c0_0] : memref<36x16xbf16, #tpu.memory_space<vmem>>, vector<36x16xbf16>
    %c0_1 = arith.constant 0 : index
    %c0_2 = arith.constant 0 : index
    %c0_3 = arith.constant 0 : index
    %c0_4 = arith.constant 0 : index
    %1 = vector.load %arg1[%c0_1, %c0_2, %c0_3, %c0_4] : memref<2x4x64x36xbf16, #tpu.memory_space<vmem>>, vector<2x1x64x36xbf16>
    %2 = vector.shape_cast %1 : vector<2x1x64x36xbf16> to vector<2x64x36xbf16>
    %3 = vector.shape_cast %2 : vector<2x64x36xbf16> to vector<128x36xbf16>
    %cst = arith.constant dense<0.000000e+00> : vector<128x16xf32>
    %4 = tpu.matmul %3, %0, %cst {dimension_numbers = #tpu.dot_dimension_numbers<[1], [0], [0], [1], [0, 0, 1, 1], [], []>} : vector<128x36xbf16>, vector<36x16xbf16>, vector<128x16xf32> -> vector<128x16xf32>
    %c0_5 = arith.constant 0 : index
    %c1 = arith.constant 1 : index
    %c0_6 = arith.constant 0 : index
    %c0_7 = arith.constant 0 : index
    %5 = vector.load %arg1[%c0_5, %c1, %c0_6, %c0_7] : memref<2x4x64x36xbf16, #tpu.memory_space<vmem>>, vector<2x1x64x36xbf16>
    %6 = vector.shape_cast %5 : vector<2x1x64x36xbf16> to vector<2x64x36xbf16>
    %7 = vector.shape_cast %6 : vector<2x64x36xbf16> to vector<128x36xbf16>
    %cst_8 = arith.constant dense<0.000000e+00> : vector<128x16xf32>
    %8 = tpu.matmul %7, %0, %cst_8 {dimension_numbers = #tpu.dot_dimension_numbers<[1], [0], [0], [1], [0, 0, 1, 1], [], []>} : vector<128x36xbf16>, vector<36x16xbf16>, vector<128x16xf32> -> vector<128x16xf32>
    %9 = arith.maximumf %4, %8 : vector<128x16xf32>
    %c0_9 = arith.constant 0 : index
    %c2 = arith.constant 2 : index
    %c0_10 = arith.constant 0 : index
    %c0_11 = arith.constant 0 : index
    %10 = vector.load %arg1[%c0_9, %c2, %c0_10, %c0_11] : memref<2x4x64x36xbf16, #tpu.memory_space<vmem>>, vector<2x1x64x36xbf16>
    %11 = vector.shape_cast %10 : vector<2x1x64x36xbf16> to vector<2x64x36xbf16>
    %12 = vector.shape_cast %11 : vector<2x64x36xbf16> to vector<128x36xbf16>
    %cst_12 = arith.constant dense<0.000000e+00> : vector<128x16xf32>
    %13 = tpu.matmul %12, %0, %cst_12 {dimension_numbers = #tpu.dot_dimension_numbers<[1], [0], [0], [1], [0, 0, 1, 1], [], []>} : vector<128x36xbf16>, vector<36x16xbf16>, vector<128x16xf32> -> vector<128x16xf32>
    %14 = arith.maximumf %9, %13 : vector<128x16xf32>
    %c0_13 = arith.constant 0 : index
    %c3 = arith.constant 3 : index
    %c0_14 = arith.constant 0 : index
    %c0_15 = arith.constant 0 : index
    %15 = vector.load %arg1[%c0_13, %c3, %c0_14, %c0_15] : memref<2x4x64x36xbf16, #tpu.memory_space<vmem>>, vector<2x1x64x36xbf16>
    %16 = vector.shape_cast %15 : vector<2x1x64x36xbf16> to vector<2x64x36xbf16>
    %17 = vector.shape_cast %16 : vector<2x64x36xbf16> to vector<128x36xbf16>
    %cst_16 = arith.constant dense<0.000000e+00> : vector<128x16xf32>
    %18 = tpu.matmul %17, %0, %cst_16 {dimension_numbers = #tpu.dot_dimension_numbers<[1], [0], [0], [1], [0, 0, 1, 1], [], []>} : vector<128x36xbf16>, vector<36x16xbf16>, vector<128x16xf32> -> vector<128x16xf32>
    %19 = arith.maximumf %14, %18 : vector<128x16xf32>
    %c0_17 = arith.constant 0 : index
    %c0_18 = arith.constant 0 : index
    %20 = vector.load %arg3[%c0_17, %c0_18] : memref<1x16xf32, #tpu.memory_space<vmem>>, vector<1x16xf32>
    %21 = vector.broadcast %20 : vector<1x16xf32> to vector<128x16xf32>
    %22 = arith.addf %19, %21 : vector<128x16xf32>
    %cst_19 = arith.constant 0.000000e+00 : f32
    %23 = vector.broadcast %cst_19 : f32 to vector<128x16xf32>
    %24 = arith.maximumf %22, %23 : vector<128x16xf32>
    %25 = arith.truncf %24 : vector<128x16xf32> to vector<128x16xbf16>
    %26 = vector.shape_cast %25 : vector<128x16xbf16> to vector<2x4x4x4x16xbf16>
    %cst_20 = arith.constant 0.000000e+00 : bf16
    %27 = vector.broadcast %cst_20 : bf16 to vector<4x2x5x5x16xbf16>
    %c0_21 = arith.constant 0 : index
    %c0_22 = arith.constant 0 : index
    %c0_23 = arith.constant 0 : index
    %c0_24 = arith.constant 0 : index
    %c0_25 = arith.constant 0 : index
    %28 = vector.load %arg7[%c0_21, %c0_22, %c0_23, %c0_24, %c0_25] : memref<4x2x5x5x16xbf16, #tpu.memory_space<vmem>>, vector<4x2x5x5x16xbf16>
    tpu.vector_store %arg7[%c0_21, %c0_22, %c0_23, %c0_24, %c0_25], %27 {strides = array<i32>} : memref<4x2x5x5x16xbf16, #tpu.memory_space<vmem>>, vector<4x2x5x5x16xbf16>,
    %29 = vector.extract_strided_slice %26 {offsets = [0, 0, 0, 0, 0], sizes = [2, 1, 4, 4, 16], strides = [1, 1, 1, 1, 1]} : vector<2x4x4x4x16xbf16> to vector<2x1x4x4x16xbf16>
    %30 = vector.shape_cast %29 : vector<2x1x4x4x16xbf16> to vector<2x4x4x16xbf16>
    %c0_26 = arith.constant 0 : index
    %c0_27 = arith.constant 0 : index
    %c1_28 = arith.constant 1 : index
    %c1_29 = arith.constant 1 : index
    %c0_30 = arith.constant 0 : index
    %31 = vector.load %arg7[%c0_26, %c0_27, %c1_28, %c1_29, %c0_30] : memref<4x2x5x5x16xbf16, #tpu.memory_space<vmem>>, vector<1x2x4x4x16xbf16>
    %32 = vector.shape_cast %31 : vector<1x2x4x4x16xbf16> to vector<2x4x4x16xbf16>
    %33 = vector.shape_cast %30 : vector<2x4x4x16xbf16> to vector<1x2x4x4x16xbf16>
    tpu.vector_store %arg7[%c0_26, %c0_27, %c1_28, %c1_29, %c0_30], %33 {strides = array<i32>} : memref<4x2x5x5x16xbf16, #tpu.memory_space<vmem>>, vector<1x2x4x4x16xbf16>,
    %34 = vector.extract_strided_slice %26 {offsets = [0, 1, 0, 0, 0], sizes = [2, 1, 4, 4, 16], strides = [1, 1, 1, 1, 1]} : vector<2x4x4x4x16xbf16> to vector<2x1x4x4x16xbf16>
    %35 = vector.shape_cast %34 : vector<2x1x4x4x16xbf16> to vector<2x4x4x16xbf16>
    %c1_31 = arith.constant 1 : index
    %c0_32 = arith.constant 0 : index
    %c1_33 = arith.constant 1 : index
    %c0_34 = arith.constant 0 : index
    %c0_35 = arith.constant 0 : index
    %36 = vector.load %arg7[%c1_31, %c0_32, %c1_33, %c0_34, %c0_35] : memref<4x2x5x5x16xbf16, #tpu.memory_space<vmem>>, vector<1x2x4x4x16xbf16>
    %37 = vector.shape_cast %36 : vector<1x2x4x4x16xbf16> to vector<2x4x4x16xbf16>
    %38 = vector.shape_cast %35 : vector<2x4x4x16xbf16> to vector<1x2x4x4x16xbf16>
    tpu.vector_store %arg7[%c1_31, %c0_32, %c1_33, %c0_34, %c0_35], %38 {strides = array<i32>} : memref<4x2x5x5x16xbf16, #tpu.memory_space<vmem>>, vector<1x2x4x4x16xbf16>,
    %39 = vector.extract_strided_slice %26 {offsets = [0, 2, 0, 0, 0], sizes = [2, 1, 4, 4, 16], strides = [1, 1, 1, 1, 1]} : vector<2x4x4x4x16xbf16> to vector<2x1x4x4x16xbf16>
    %40 = vector.shape_cast %39 : vector<2x1x4x4x16xbf16> to vector<2x4x4x16xbf16>
    %c2_36 = arith.constant 2 : index
    %c0_37 = arith.constant 0 : index
    %c0_38 = arith.constant 0 : index
    %c1_39 = arith.constant 1 : index
    %c0_40 = arith.constant 0 : index
    %41 = vector.load %arg7[%c2_36, %c0_37, %c0_38, %c1_39, %c0_40] : memref<4x2x5x5x16xbf16, #tpu.memory_space<vmem>>, vector<1x2x4x4x16xbf16>
    %42 = vector.shape_cast %41 : vector<1x2x4x4x16xbf16> to vector<2x4x4x16xbf16>
    %43 = vector.shape_cast %40 : vector<2x4x4x16xbf16> to vector<1x2x4x4x16xbf16>
    tpu.vector_store %arg7[%c2_36, %c0_37, %c0_38, %c1_39, %c0_40], %43 {strides = array<i32>} : memref<4x2x5x5x16xbf16, #tpu.memory_space<vmem>>, vector<1x2x4x4x16xbf16>,
    %44 = vector.extract_strided_slice %26 {offsets = [0, 3, 0, 0, 0], sizes = [2, 1, 4, 4, 16], strides = [1, 1, 1, 1, 1]} : vector<2x4x4x4x16xbf16> to vector<2x1x4x4x16xbf16>
    %45 = vector.shape_cast %44 : vector<2x1x4x4x16xbf16> to vector<2x4x4x16xbf16>
    %c3_41 = arith.constant 3 : index
    %c0_42 = arith.constant 0 : index
    %c0_43 = arith.constant 0 : index
    %c0_44 = arith.constant 0 : index
    %c0_45 = arith.constant 0 : index
    %46 = vector.load %arg7[%c3_41, %c0_42, %c0_43, %c0_44, %c0_45] : memref<4x2x5x5x16xbf16, #tpu.memory_space<vmem>>, vector<1x2x4x4x16xbf16>
    %47 = vector.shape_cast %46 : vector<1x2x4x4x16xbf16> to vector<2x4x4x16xbf16>
    %48 = vector.shape_cast %45 : vector<2x4x4x16xbf16> to vector<1x2x4x4x16xbf16>
    tpu.vector_store %arg7[%c3_41, %c0_42, %c0_43, %c0_44, %c0_45], %48 {strides = array<i32>} : memref<4x2x5x5x16xbf16, #tpu.memory_space<vmem>>, vector<1x2x4x4x16xbf16>,
    %c0_46 = arith.constant 0 : index
    %c0_47 = arith.constant 0 : index
    %49 = vector.load %arg4[%c0_46, %c0_47] : memref<144x32xbf16, #tpu.memory_space<vmem>>, vector<144x32xbf16>
    %c0_48 = arith.constant 0 : index
    %c0_49 = arith.constant 0 : index
    %c0_50 = arith.constant 0 : index
    %c0_51 = arith.constant 0 : index
    %c0_52 = arith.constant 0 : index
    %50 = vector.load %arg7[%c0_48, %c0_49, %c0_50, %c0_51, %c0_52] : memref<4x2x5x5x16xbf16, #tpu.memory_space<vmem>>, vector<1x2x4x4x16xbf16>
    %51 = vector.shape_cast %50 : vector<1x2x4x4x16xbf16> to vector<2x4x4x16xbf16>
    %c1_53 = arith.constant 1 : index
    %c0_54 = arith.constant 0 : index
    %c0_55 = arith.constant 0 : index
    %c0_56 = arith.constant 0 : index
    %c0_57 = arith.constant 0 : index
    %52 = vector.load %arg7[%c1_53, %c0_54, %c0_55, %c0_56, %c0_57] : memref<4x2x5x5x16xbf16, #tpu.memory_space<vmem>>, vector<1x2x4x4x16xbf16>
    %53 = vector.shape_cast %52 : vector<1x2x4x4x16xbf16> to vector<2x4x4x16xbf16>
    %c0_58 = arith.constant 0 : index
    %c0_59 = arith.constant 0 : index
    %c0_60 = arith.constant 0 : index
    %c1_61 = arith.constant 1 : index
    %c0_62 = arith.constant 0 : index
    %54 = vector.load %arg7[%c0_58, %c0_59, %c0_60, %c1_61, %c0_62] : memref<4x2x5x5x16xbf16, #tpu.memory_space<vmem>>, vector<1x2x4x4x16xbf16>
    %55 = vector.shape_cast %54 : vector<1x2x4x4x16xbf16> to vector<2x4x4x16xbf16>
    %c2_63 = arith.constant 2 : index
    %c0_64 = arith.constant 0 : index
    %c0_65 = arith.constant 0 : index
    %c0_66 = arith.constant 0 : index
    %c0_67 = arith.constant 0 : index
    %56 = vector.load %arg7[%c2_63, %c0_64, %c0_65, %c0_66, %c0_67] : memref<4x2x5x5x16xbf16, #tpu.memory_space<vmem>>, vector<1x2x4x4x16xbf16>
    %57 = vector.shape_cast %56 : vector<1x2x4x4x16xbf16> to vector<2x4x4x16xbf16>
    %c3_68 = arith.constant 3 : index
    %c0_69 = arith.constant 0 : index
    %c0_70 = arith.constant 0 : index
    %c0_71 = arith.constant 0 : index
    %c0_72 = arith.constant 0 : index
    %58 = vector.load %arg7[%c3_68, %c0_69, %c0_70, %c0_71, %c0_72] : memref<4x2x5x5x16xbf16, #tpu.memory_space<vmem>>, vector<1x2x4x4x16xbf16>
    %59 = vector.shape_cast %58 : vector<1x2x4x4x16xbf16> to vector<2x4x4x16xbf16>
    %c2_73 = arith.constant 2 : index
    %c0_74 = arith.constant 0 : index
    %c0_75 = arith.constant 0 : index
    %c1_76 = arith.constant 1 : index
    %c0_77 = arith.constant 0 : index
    %60 = vector.load %arg7[%c2_73, %c0_74, %c0_75, %c1_76, %c0_77] : memref<4x2x5x5x16xbf16, #tpu.memory_space<vmem>>, vector<1x2x4x4x16xbf16>
    %61 = vector.shape_cast %60 : vector<1x2x4x4x16xbf16> to vector<2x4x4x16xbf16>
    %c0_78 = arith.constant 0 : index
    %c0_79 = arith.constant 0 : index
    %c1_80 = arith.constant 1 : index
    %c0_81 = arith.constant 0 : index
    %c0_82 = arith.constant 0 : index
    %62 = vector.load %arg7[%c0_78, %c0_79, %c1_80, %c0_81, %c0_82] : memref<4x2x5x5x16xbf16, #tpu.memory_space<vmem>>, vector<1x2x4x4x16xbf16>
    %63 = vector.shape_cast %62 : vector<1x2x4x4x16xbf16> to vector<2x4x4x16xbf16>
    %c1_83 = arith.constant 1 : index
    %c0_84 = arith.constant 0 : index
    %c1_85 = arith.constant 1 : index
    %c0_86 = arith.constant 0 : index
    %c0_87 = arith.constant 0 : index
    %64 = vector.load %arg7[%c1_83, %c0_84, %c1_85, %c0_86, %c0_87] : memref<4x2x5x5x16xbf16, #tpu.memory_space<vmem>>, vector<1x2x4x4x16xbf16>
    %65 = vector.shape_cast %64 : vector<1x2x4x4x16xbf16> to vector<2x4x4x16xbf16>
    %c0_88 = arith.constant 0 : index
    %c0_89 = arith.constant 0 : index
    %c1_90 = arith.constant 1 : index
    %c1_91 = arith.constant 1 : index
    %c0_92 = arith.constant 0 : index
    %66 = vector.load %arg7[%c0_88, %c0_89, %c1_90, %c1_91, %c0_92] : memref<4x2x5x5x16xbf16, #tpu.memory_space<vmem>>, vector<1x2x4x4x16xbf16>
    %67 = vector.shape_cast %66 : vector<1x2x4x4x16xbf16> to vector<2x4x4x16xbf16>
    %68 = tpu.concatenate %51, %53, %55, %57, %59, %61, %63, %65, %67 in 3 : vector<2x4x4x16xbf16>, vector<2x4x4x16xbf16>, vector<2x4x4x16xbf16>, vector<2x4x4x16xbf16>, vector<2x4x4x16xbf16>, vector<2x4x4x16xbf16>, vector<2x4x4x16xbf16>, vector<2x4x4x16xbf16>, vector<2x4x4x16xbf16> -> vector<2x4x4x144xbf16>
    %69 = vector.shape_cast %68 : vector<2x4x4x144xbf16> to vector<32x144xbf16>
    %cst_93 = arith.constant dense<0.000000e+00> : vector<32x32xf32>
    %70 = tpu.matmul %69, %49, %cst_93 {dimension_numbers = #tpu.dot_dimension_numbers<[1], [0], [0], [1], [0, 0, 1, 1], [], []>} : vector<32x144xbf16>, vector<144x32xbf16>, vector<32x32xf32> -> vector<32x32xf32>
    %c1_94 = arith.constant 1 : index
    %c0_95 = arith.constant 0 : index
    %c0_96 = arith.constant 0 : index
    %c0_97 = arith.constant 0 : index
    %c0_98 = arith.constant 0 : index
    %71 = vector.load %arg7[%c1_94, %c0_95, %c0_96, %c0_97, %c0_98] : memref<4x2x5x5x16xbf16, #tpu.memory_space<vmem>>, vector<1x2x4x4x16xbf16>
    %72 = vector.shape_cast %71 : vector<1x2x4x4x16xbf16> to vector<2x4x4x16xbf16>
    %c0_99 = arith.constant 0 : index
    %c0_100 = arith.constant 0 : index
    %c0_101 = arith.constant 0 : index
    %c1_102 = arith.constant 1 : index
    %c0_103 = arith.constant 0 : index
    %73 = vector.load %arg7[%c0_99, %c0_100, %c0_101, %c1_102, %c0_103] : memref<4x2x5x5x16xbf16, #tpu.memory_space<vmem>>, vector<1x2x4x4x16xbf16>
    %74 = vector.shape_cast %73 : vector<1x2x4x4x16xbf16> to vector<2x4x4x16xbf16>
    %c1_104 = arith.constant 1 : index
    %c0_105 = arith.constant 0 : index
    %c0_106 = arith.constant 0 : index
    %c1_107 = arith.constant 1 : index
    %c0_108 = arith.constant 0 : index
    %75 = vector.load %arg7[%c1_104, %c0_105, %c0_106, %c1_107, %c0_108] : memref<4x2x5x5x16xbf16, #tpu.memory_space<vmem>>, vector<1x2x4x4x16xbf16>
    %76 = vector.shape_cast %75 : vector<1x2x4x4x16xbf16> to vector<2x4x4x16xbf16>
    %c3_109 = arith.constant 3 : index
    %c0_110 = arith.constant 0 : index
    %c0_111 = arith.constant 0 : index
    %c0_112 = arith.constant 0 : index
    %c0_113 = arith.constant 0 : index
    %77 = vector.load %arg7[%c3_109, %c0_110, %c0_111, %c0_112, %c0_113] : memref<4x2x5x5x16xbf16, #tpu.memory_space<vmem>>, vector<1x2x4x4x16xbf16>
    %78 = vector.shape_cast %77 : vector<1x2x4x4x16xbf16> to vector<2x4x4x16xbf16>
    %c2_114 = arith.constant 2 : index
    %c0_115 = arith.constant 0 : index
    %c0_116 = arith.constant 0 : index
    %c1_117 = arith.constant 1 : index
    %c0_118 = arith.constant 0 : index
    %79 = vector.load %arg7[%c2_114, %c0_115, %c0_116, %c1_117, %c0_118] : memref<4x2x5x5x16xbf16, #tpu.memory_space<vmem>>, vector<1x2x4x4x16xbf16>
    %80 = vector.shape_cast %79 : vector<1x2x4x4x16xbf16> to vector<2x4x4x16xbf16>
    %c3_119 = arith.constant 3 : index
    %c0_120 = arith.constant 0 : index
    %c0_121 = arith.constant 0 : index
    %c1_122 = arith.constant 1 : index
    %c0_123 = arith.constant 0 : index
    %81 = vector.load %arg7[%c3_119, %c0_120, %c0_121, %c1_122, %c0_123] : memref<4x2x5x5x16xbf16, #tpu.memory_space<vmem>>, vector<1x2x4x4x16xbf16>
    %82 = vector.shape_cast %81 : vector<1x2x4x4x16xbf16> to vector<2x4x4x16xbf16>
    %c1_124 = arith.constant 1 : index
    %c0_125 = arith.constant 0 : index
    %c1_126 = arith.constant 1 : index
    %c0_127 = arith.constant 0 : index
    %c0_128 = arith.constant 0 : index
    %83 = vector.load %arg7[%c1_124, %c0_125, %c1_126, %c0_127, %c0_128] : memref<4x2x5x5x16xbf16, #tpu.memory_space<vmem>>, vector<1x2x4x4x16xbf16>
    %84 = vector.shape_cast %83 : vector<1x2x4x4x16xbf16> to vector<2x4x4x16xbf16>
    %c0_129 = arith.constant 0 : index
    %c0_130 = arith.constant 0 : index
    %c1_131 = arith.constant 1 : index
    %c1_132 = arith.constant 1 : index
    %c0_133 = arith.constant 0 : index
    %85 = vector.load %arg7[%c0_129, %c0_130, %c1_131, %c1_132, %c0_133] : memref<4x2x5x5x16xbf16, #tpu.memory_space<vmem>>, vector<1x2x4x4x16xbf16>
    %86 = vector.shape_cast %85 : vector<1x2x4x4x16xbf16> to vector<2x4x4x16xbf16>
    %c1_134 = arith.constant 1 : index
    %c0_135 = arith.constant 0 : index
    %c1_136 = arith.constant 1 : index
    %c1_137 = arith.constant 1 : index
    %c0_138 = arith.constant 0 : index
    %87 = vector.load %arg7[%c1_134, %c0_135, %c1_136, %c1_137, %c0_138] : memref<4x2x5x5x16xbf16, #tpu.memory_space<vmem>>, vector<1x2x4x4x16xbf16>
    %88 = vector.shape_cast %87 : vector<1x2x4x4x16xbf16> to vector<2x4x4x16xbf16>
    %89 = tpu.concatenate %72, %74, %76, %78, %80, %82, %84, %86, %88 in 3 : vector<2x4x4x16xbf16>, vector<2x4x4x16xbf16>, vector<2x4x4x16xbf16>, vector<2x4x4x16xbf16>, vector<2x4x4x16xbf16>, vector<2x4x4x16xbf16>, vector<2x4x4x16xbf16>, vector<2x4x4x16xbf16>, vector<2x4x4x16xbf16> -> vector<2x4x4x144xbf16>
    %90 = vector.shape_cast %89 : vector<2x4x4x144xbf16> to vector<32x144xbf16>
    %cst_139 = arith.constant dense<0.000000e+00> : vector<32x32xf32>
    %91 = tpu.matmul %90, %49, %cst_139 {dimension_numbers = #tpu.dot_dimension_numbers<[1], [0], [0], [1], [0, 0, 1, 1], [], []>} : vector<32x144xbf16>, vector<144x32xbf16>, vector<32x32xf32> -> vector<32x32xf32>
    %92 = arith.maximumf %70, %91 : vector<32x32xf32>
    %c2_140 = arith.constant 2 : index
    %c0_141 = arith.constant 0 : index
    %c0_142 = arith.constant 0 : index
    %c0_143 = arith.constant 0 : index
    %c0_144 = arith.constant 0 : index
    %93 = vector.load %arg7[%c2_140, %c0_141, %c0_142, %c0_143, %c0_144] : memref<4x2x5x5x16xbf16, #tpu.memory_space<vmem>>, vector<1x2x4x4x16xbf16>
    %94 = vector.shape_cast %93 : vector<1x2x4x4x16xbf16> to vector<2x4x4x16xbf16>
    %c3_145 = arith.constant 3 : index
    %c0_146 = arith.constant 0 : index
    %c0_147 = arith.constant 0 : index
    %c0_148 = arith.constant 0 : index
    %c0_149 = arith.constant 0 : index
    %95 = vector.load %arg7[%c3_145, %c0_146, %c0_147, %c0_148, %c0_149] : memref<4x2x5x5x16xbf16, #tpu.memory_space<vmem>>, vector<1x2x4x4x16xbf16>
    %96 = vector.shape_cast %95 : vector<1x2x4x4x16xbf16> to vector<2x4x4x16xbf16>
    %c2_150 = arith.constant 2 : index
    %c0_151 = arith.constant 0 : index
    %c0_152 = arith.constant 0 : index
    %c1_153 = arith.constant 1 : index
    %c0_154 = arith.constant 0 : index
    %97 = vector.load %arg7[%c2_150, %c0_151, %c0_152, %c1_153, %c0_154] : memref<4x2x5x5x16xbf16, #tpu.memory_space<vmem>>, vector<1x2x4x4x16xbf16>
    %98 = vector.shape_cast %97 : vector<1x2x4x4x16xbf16> to vector<2x4x4x16xbf16>
    %c0_155 = arith.constant 0 : index
    %c0_156 = arith.constant 0 : index
    %c1_157 = arith.constant 1 : index
    %c0_158 = arith.constant 0 : index
    %c0_159 = arith.constant 0 : index
    %99 = vector.load %arg7[%c0_155, %c0_156, %c1_157, %c0_158, %c0_159] : memref<4x2x5x5x16xbf16, #tpu.memory_space<vmem>>, vector<1x2x4x4x16xbf16>
    %100 = vector.shape_cast %99 : vector<1x2x4x4x16xbf16> to vector<2x4x4x16xbf16>
    %c1_160 = arith.constant 1 : index
    %c0_161 = arith.constant 0 : index
    %c1_162 = arith.constant 1 : index
    %c0_163 = arith.constant 0 : index
    %c0_164 = arith.constant 0 : index
    %101 = vector.load %arg7[%c1_160, %c0_161, %c1_162, %c0_163, %c0_164] : memref<4x2x5x5x16xbf16, #tpu.memory_space<vmem>>, vector<1x2x4x4x16xbf16>
    %102 = vector.shape_cast %101 : vector<1x2x4x4x16xbf16> to vector<2x4x4x16xbf16>
    %c0_165 = arith.constant 0 : index
    %c0_166 = arith.constant 0 : index
    %c1_167 = arith.constant 1 : index
    %c1_168 = arith.constant 1 : index
    %c0_169 = arith.constant 0 : index
    %103 = vector.load %arg7[%c0_165, %c0_166, %c1_167, %c1_168, %c0_169] : memref<4x2x5x5x16xbf16, #tpu.memory_space<vmem>>, vector<1x2x4x4x16xbf16>
    %104 = vector.shape_cast %103 : vector<1x2x4x4x16xbf16> to vector<2x4x4x16xbf16>
    %c2_170 = arith.constant 2 : index
    %c0_171 = arith.constant 0 : index
    %c1_172 = arith.constant 1 : index
    %c0_173 = arith.constant 0 : index
    %c0_174 = arith.constant 0 : index
    %105 = vector.load %arg7[%c2_170, %c0_171, %c1_172, %c0_173, %c0_174] : memref<4x2x5x5x16xbf16, #tpu.memory_space<vmem>>, vector<1x2x4x4x16xbf16>
    %106 = vector.shape_cast %105 : vector<1x2x4x4x16xbf16> to vector<2x4x4x16xbf16>
    %c3_175 = arith.constant 3 : index
    %c0_176 = arith.constant 0 : index
    %c1_177 = arith.constant 1 : index
    %c0_178 = arith.constant 0 : index
    %c0_179 = arith.constant 0 : index
    %107 = vector.load %arg7[%c3_175, %c0_176, %c1_177, %c0_178, %c0_179] : memref<4x2x5x5x16xbf16, #tpu.memory_space<vmem>>, vector<1x2x4x4x16xbf16>
    %108 = vector.shape_cast %107 : vector<1x2x4x4x16xbf16> to vector<2x4x4x16xbf16>
    %c2_180 = arith.constant 2 : index
    %c0_181 = arith.constant 0 : index
    %c1_182 = arith.constant 1 : index
    %c1_183 = arith.constant 1 : index
    %c0_184 = arith.constant 0 : index
    %109 = vector.load %arg7[%c2_180, %c0_181, %c1_182, %c1_183, %c0_184] : memref<4x2x5x5x16xbf16, #tpu.memory_space<vmem>>, vector<1x2x4x4x16xbf16>
    %110 = vector.shape_cast %109 : vector<1x2x4x4x16xbf16> to vector<2x4x4x16xbf16>
    %111 = tpu.concatenate %94, %96, %98, %100, %102, %104, %106, %108, %110 in 3 : vector<2x4x4x16xbf16>, vector<2x4x4x16xbf16>, vector<2x4x4x16xbf16>, vector<2x4x4x16xbf16>, vector<2x4x4x16xbf16>, vector<2x4x4x16xbf16>, vector<2x4x4x16xbf16>, vector<2x4x4x16xbf16>, vector<2x4x4x16xbf16> -> vector<2x4x4x144xbf16>
    %112 = vector.shape_cast %111 : vector<2x4x4x144xbf16> to vector<32x144xbf16>
    %cst_185 = arith.constant dense<0.000000e+00> : vector<32x32xf32>
    %113 = tpu.matmul %112, %49, %cst_185 {dimension_numbers = #tpu.dot_dimension_numbers<[1], [0], [0], [1], [0, 0, 1, 1], [], []>} : vector<32x144xbf16>, vector<144x32xbf16>, vector<32x32xf32> -> vector<32x32xf32>
    %114 = arith.maximumf %92, %113 : vector<32x32xf32>
    %c3_186 = arith.constant 3 : index
    %c0_187 = arith.constant 0 : index
    %c0_188 = arith.constant 0 : index
    %c0_189 = arith.constant 0 : index
    %c0_190 = arith.constant 0 : index
    %115 = vector.load %arg7[%c3_186, %c0_187, %c0_188, %c0_189, %c0_190] : memref<4x2x5x5x16xbf16, #tpu.memory_space<vmem>>, vector<1x2x4x4x16xbf16>
    %116 = vector.shape_cast %115 : vector<1x2x4x4x16xbf16> to vector<2x4x4x16xbf16>
    %c2_191 = arith.constant 2 : index
    %c0_192 = arith.constant 0 : index
    %c0_193 = arith.constant 0 : index
    %c1_194 = arith.constant 1 : index
    %c0_195 = arith.constant 0 : index
    %117 = vector.load %arg7[%c2_191, %c0_192, %c0_193, %c1_194, %c0_195] : memref<4x2x5x5x16xbf16, #tpu.memory_space<vmem>>, vector<1x2x4x4x16xbf16>
    %118 = vector.shape_cast %117 : vector<1x2x4x4x16xbf16> to vector<2x4x4x16xbf16>
    %c3_196 = arith.constant 3 : index
    %c0_197 = arith.constant 0 : index
    %c0_198 = arith.constant 0 : index
    %c1_199 = arith.constant 1 : index
    %c0_200 = arith.constant 0 : index
    %119 = vector.load %arg7[%c3_196, %c0_197, %c0_198, %c1_199, %c0_200] : memref<4x2x5x5x16xbf16, #tpu.memory_space<vmem>>, vector<1x2x4x4x16xbf16>
    %120 = vector.shape_cast %119 : vector<1x2x4x4x16xbf16> to vector<2x4x4x16xbf16>
    %c1_201 = arith.constant 1 : index
    %c0_202 = arith.constant 0 : index
    %c1_203 = arith.constant 1 : index
    %c0_204 = arith.constant 0 : index
    %c0_205 = arith.constant 0 : index
    %121 = vector.load %arg7[%c1_201, %c0_202, %c1_203, %c0_204, %c0_205] : memref<4x2x5x5x16xbf16, #tpu.memory_space<vmem>>, vector<1x2x4x4x16xbf16>
    %122 = vector.shape_cast %121 : vector<1x2x4x4x16xbf16> to vector<2x4x4x16xbf16>
    %c0_206 = arith.constant 0 : index
    %c0_207 = arith.constant 0 : index
    %c1_208 = arith.constant 1 : index
    %c1_209 = arith.constant 1 : index
    %c0_210 = arith.constant 0 : index
    %123 = vector.load %arg7[%c0_206, %c0_207, %c1_208, %c1_209, %c0_210] : memref<4x2x5x5x16xbf16, #tpu.memory_space<vmem>>, vector<1x2x4x4x16xbf16>
    %124 = vector.shape_cast %123 : vector<1x2x4x4x16xbf16> to vector<2x4x4x16xbf16>
    %c1_211 = arith.constant 1 : index
    %c0_212 = arith.constant 0 : index
    %c1_213 = arith.constant 1 : index
    %c1_214 = arith.constant 1 : index
    %c0_215 = arith.constant 0 : index
    %125 = vector.load %arg7[%c1_211, %c0_212, %c1_213, %c1_214, %c0_215] : memref<4x2x5x5x16xbf16, #tpu.memory_space<vmem>>, vector<1x2x4x4x16xbf16>
    %126 = vector.shape_cast %125 : vector<1x2x4x4x16xbf16> to vector<2x4x4x16xbf16>
    %c3_216 = arith.constant 3 : index
    %c0_217 = arith.constant 0 : index
    %c1_218 = arith.constant 1 : index
    %c0_219 = arith.constant 0 : index
    %c0_220 = arith.constant 0 : index
    %127 = vector.load %arg7[%c3_216, %c0_217, %c1_218, %c0_219, %c0_220] : memref<4x2x5x5x16xbf16, #tpu.memory_space<vmem>>, vector<1x2x4x4x16xbf16>
    %128 = vector.shape_cast %127 : vector<1x2x4x4x16xbf16> to vector<2x4x4x16xbf16>
    %c2_221 = arith.constant 2 : index
    %c0_222 = arith.constant 0 : index
    %c1_223 = arith.constant 1 : index
    %c1_224 = arith.constant 1 : index
    %c0_225 = arith.constant 0 : index
    %129 = vector.load %arg7[%c2_221, %c0_222, %c1_223, %c1_224, %c0_225] : memref<4x2x5x5x16xbf16, #tpu.memory_space<vmem>>, vector<1x2x4x4x16xbf16>
    %130 = vector.shape_cast %129 : vector<1x2x4x4x16xbf16> to vector<2x4x4x16xbf16>
    %c3_226 = arith.constant 3 : index
    %c0_227 = arith.constant 0 : index
    %c1_228 = arith.constant 1 : index
    %c1_229 = arith.constant 1 : index
    %c0_230 = arith.constant 0 : index
    %131 = vector.load %arg7[%c3_226, %c0_227, %c1_228, %c1_229, %c0_230] : memref<4x2x5x5x16xbf16, #tpu.memory_space<vmem>>, vector<1x2x4x4x16xbf16>
    %132 = vector.shape_cast %131 : vector<1x2x4x4x16xbf16> to vector<2x4x4x16xbf16>
    %133 = tpu.concatenate %116, %118, %120, %122, %124, %126, %128, %130, %132 in 3 : vector<2x4x4x16xbf16>, vector<2x4x4x16xbf16>, vector<2x4x4x16xbf16>, vector<2x4x4x16xbf16>, vector<2x4x4x16xbf16>, vector<2x4x4x16xbf16>, vector<2x4x4x16xbf16>, vector<2x4x4x16xbf16>, vector<2x4x4x16xbf16> -> vector<2x4x4x144xbf16>
    %134 = vector.shape_cast %133 : vector<2x4x4x144xbf16> to vector<32x144xbf16>
    %cst_231 = arith.constant dense<0.000000e+00> : vector<32x32xf32>
    %135 = tpu.matmul %134, %49, %cst_231 {dimension_numbers = #tpu.dot_dimension_numbers<[1], [0], [0], [1], [0, 0, 1, 1], [], []>} : vector<32x144xbf16>, vector<144x32xbf16>, vector<32x32xf32> -> vector<32x32xf32>
    %136 = arith.maximumf %114, %135 : vector<32x32xf32>
    %c0_232 = arith.constant 0 : index
    %c0_233 = arith.constant 0 : index
    %137 = vector.load %arg5[%c0_232, %c0_233] : memref<1x32xf32, #tpu.memory_space<vmem>>, vector<1x32xf32>
    %138 = vector.broadcast %137 : vector<1x32xf32> to vector<32x32xf32>
    %139 = arith.addf %136, %138 : vector<32x32xf32>
    %cst_234 = arith.constant 0.000000e+00 : f32
    %140 = vector.broadcast %cst_234 : f32 to vector<32x32xf32>
    %141 = arith.maximumf %139, %140 : vector<32x32xf32>
    %142 = vector.shape_cast %141 : vector<32x32xf32> to vector<2x16x32xf32>
    %143 = arith.truncf %142 : vector<2x16x32xf32> to vector<2x16x32xbf16>
    %c0_235 = arith.constant 0 : index
    %c0_236 = arith.constant 0 : index
    %c0_237 = arith.constant 0 : index
    %144 = vector.load %arg6[%c0_235, %c0_236, %c0_237] : memref<2x16x32xbf16, #tpu.memory_space<vmem>>, vector<2x16x32xbf16>
    tpu.vector_store %arg6[%c0_235, %c0_236, %c0_237], %143 {strides = array<i32>} : memref<2x16x32xbf16, #tpu.memory_space<vmem>>, vector<2x16x32xbf16>,
    return
  }
  func.func @transform_0(%arg0: i32) -> (i32, i32, i32, i32) {
    %c0_i32 = arith.constant 0 : i32
    %c0_i32_0 = arith.constant 0 : i32
    %c0_i32_1 = arith.constant 0 : i32
    %c0_i32_2 = arith.constant 0 : i32
    return %arg0, %c0_i32, %c0_i32_0, %c0_i32_1 : i32, i32, i32, i32
  }
  func.func @transform_1(%arg0: i32) -> (i32, i32) {
    %c0_i32 = arith.constant 0 : i32
    %c0_i32_0 = arith.constant 0 : i32
    %c0_i32_1 = arith.constant 0 : i32
    return %c0_i32, %c0_i32_0 : i32, i32
  }
  func.func @transform_2(%arg0: i32) -> (i32, i32) {
    %c0_i32 = arith.constant 0 : i32
    %c0_i32_0 = arith.constant 0 : i32
    %c0_i32_1 = arith.constant 0 : i32
    return %c0_i32, %c0_i32_0 : i32, i32
  }
  func.func @transform_3(%arg0: i32) -> (i32, i32) {
    %c0_i32 = arith.constant 0 : i32
    %c0_i32_0 = arith.constant 0 : i32
    %c0_i32_1 = arith.constant 0 : i32
    return %c0_i32, %c0_i32_0 : i32, i32
  }
  func.func @transform_4(%arg0: i32) -> (i32, i32) {
    %c0_i32 = arith.constant 0 : i32
    %c0_i32_0 = arith.constant 0 : i32
    %c0_i32_1 = arith.constant 0 : i32
    return %c0_i32, %c0_i32_0 : i32, i32
  }
  func.func @transform_5(%arg0: i32) -> (i32, i32, i32) {
    %c0_i32 = arith.constant 0 : i32
    %c0_i32_0 = arith.constant 0 : i32
    %c0_i32_1 = arith.constant 0 : i32
    return %arg0, %c0_i32, %c0_i32_0 : i32, i32, i32
  }
}

</mosaic_0001>

<llo_original>
// kernel: _lambda_.3
$region0: #{_lambda_.3}
  #allocation0 [shape = 'u32[]', space=smem, size = 0x4, offset = 0x4, fixed_abs, tag = 'smem constant byte address 0x4 - core index']
  #allocation1 [shape = 'u32[72,128]{1,0:T(1,128)}', space=vmem, size = 0x9000, scoped, tag = 'internal scratch']
  %s0 = inlined_call_operand.vmem [shape: bf16[2,512], index: 0, kind: input, shape index: {}]
  %s1 = inlined_call_operand.vmem [shape: bf16[512,128], index: 1, kind: input, shape index: {}]
  %s2 = inlined_call_operand.vmem [shape: f32[1,128], index: 2, kind: input, shape index: {}]
  %s3 = inlined_call_operand.hbm [shape: f32[2,128], index: 3, kind: output, shape index: {}]
  %s4 = sld [smem:[#allocation0]]
  $region22: #{_lambda_.3} parent=0
    _
  %s6 = ssub.s32 1, %s4
  %s7 = scalar_select 0, %s6, %s4
  $region1: #{_lambda_.3} parent=0
    #allocation2 [shape = 'u8[1024]{0}', space=vmem, size = 0x400, scoped, tag = 'output window, operand 0, single buffered']
    #allocation3 [shape = 's32[1]{0}', space=sflag, size = 0x4, scoped, tag = 'scoped memory for _lambda_.3']
    %8 = vsyncpa [#allocation3], 0
    // Predicated region
    $region2: #{_lambda_.3} parent=1 // pred_check
      _
    $region3: #{_lambda_.3} parent=1 // pred_check_branch
      %10 = sbr.rel (0) target = $region5
    $region4: #{_lambda_.3} parent=1 // pred_region
      _
    $region5: #{_lambda_.3} parent=1 // pred_fallthru
      _
    // Predicated region
    $region6: #{_lambda_.3} parent=1 // pred_check
      _
    $region7: #{_lambda_.3} parent=1 // pred_check_branch
      %12 = sbr.rel (0) target = $region9
    $region8: #{_lambda_.3} parent=1 // pred_region
      _
    $region9: #{_lambda_.3} parent=1 // pred_fallthru
      _
    // Predicated region
    $region10: #{_lambda_.3} parent=1 // pred_check
      _
    $region11: #{_lambda_.3} parent=1 // pred_check_branch
      %14 = sbr.rel (0) target = $region13
    $region12: #{_lambda_.3} parent=1 // pred_region
      _
    $region13: #{_lambda_.3} parent=1 // pred_fallthru
      _
    %v15 = vld [vmem:[%s0] sm:$0xf]
    %v16 = vld [vmem:[%s1] sm:$0xf]
    %v17 = vld [vmem:[%s1 + $0x4] sm:$0xf]
    %v18 = vld [vmem:[%s1 + $0x8] sm:$0xf]
    %v19 = vld [vmem:[%s1 + $0xc] sm:$0xf]
    %v20 = vld [vmem:[%s1 + $0x10] sm:$0xf]
    %v21 = vld [vmem:[%s1 + $0x14] sm:$0xf]
    %v22 = vld [vmem:[%s1 + $0x18] sm:$0xf]
    %v23 = vld [vmem:[%s1 + $0x1c] sm:$0xf]
    %v24 = vld [vmem:[%s1 + $0x20] sm:$0xf]
    %v25 = vld [vmem:[%s1 + $0x24] sm:$0xf]
    %v26 = vld [vmem:[%s1 + $0x28] sm:$0xf]
    %v27 = vld [vmem:[%s1 + $0x2c] sm:$0xf]
    %v28 = vld [vmem:[%s1 + $0x30] sm:$0xf]
    %v29 = vld [vmem:[%s1 + $0x34] sm:$0xf]
    %v30 = vld [vmem:[%s1 + $0x38] sm:$0xf]
    %v31 = vld [vmem:[%s1 + $0x3c] sm:$0xf]
    %v32 = vld [vmem:[%s1 + $0x40] sm:$0xf]
    %v33 = vld [vmem:[%s1 + $0x44] sm:$0xf]
    %v34 = vld [vmem:[%s1 + $0x48] sm:$0xf]
    %v35 = vld [vmem:[%s1 + $0x4c] sm:$0xf]
    %v36 = vld [vmem:[%s1 + $0x50] sm:$0xf]
    %v37 = vld [vmem:[%s1 + $0x54] sm:$0xf]
    %v38 = vld [vmem:[%s1 + $0x58] sm:$0xf]
    %v39 = vld [vmem:[%s1 + $0x5c] sm:$0xf]
    %v40 = vld [vmem:[%s1 + $0x60] sm:$0xf]
    %v41 = vld [vmem:[%s1 + $0x64] sm:$0xf]
    %v42 = vld [vmem:[%s1 + $0x68] sm:$0xf]
    %v43 = vld [vmem:[%s1 + $0x6c] sm:$0xf]
    %v44 = vld [vmem:[%s1 + $0x70] sm:$0xf]
    %v45 = vld [vmem:[%s1 + $0x74] sm:$0xf]
    %v46 = vld [vmem:[%s1 + $0x78] sm:$0xf]
    %v47 = vld [vmem:[%s1 + $0x7c] sm:$0xf]
    %v48 = vld [vmem:[%s1 + $0x80] sm:$0xf]
    %v49 = vld [vmem:[%s1 + $0x84] sm:$0xf]
    %v50 = vld [vmem:[%s1 + $0x88] sm:$0xf]
    %v51 = vld [vmem:[%s1 + $0x8c] sm:$0xf]
    %v52 = vld [vmem:[%s1 + $0x90] sm:$0xf]
    %v53 = vld [vmem:[%s1 + $0x94] sm:$0xf]
    %v54 = vld [vmem:[%s1 + $0x98] sm:$0xf]
    %v55 = vld [vmem:[%s1 + $0x9c] sm:$0xf]
    %v56 = vld [vmem:[%s1 + $0xa0] sm:$0xf]
    %v57 = vld [vmem:[%s1 + $0xa4] sm:$0xf]
    %v58 = vld [vmem:[%s1 + $0xa8] sm:$0xf]
    %v59 = vld [vmem:[%s1 + $0xac] sm:$0xf]
    %v60 = vld [vmem:[%s1 + $0xb0] sm:$0xf]
    %v61 = vld [vmem:[%s1 + $0xb4] sm:$0xf]
    %v62 = vld [vmem:[%s1 + $0xb8] sm:$0xf]
    %v63 = vld [vmem:[%s1 + $0xbc] sm:$0xf]
    %v64 = vld [vmem:[%s1 + $0xc0] sm:$0xf]
    %v65 = vld [vmem:[%s1 + $0xc4] sm:$0xf]
    %v66 = vld [vmem:[%s1 + $0xc8] sm:$0xf]
    %v67 = vld [vmem:[%s1 + $0xcc] sm:$0xf]
    %v68 = vld [vmem:[%s1 + $0xd0] sm:$0xf]
    %v69 = vld [vmem:[%s1 + $0xd4] sm:$0xf]
    %v70 = vld [vmem:[%s1 + $0xd8] sm:$0xf]
    %v71 = vld [vmem:[%s1 + $0xdc] sm:$0xf]
    %v72 = vld [vmem:[%s1 + $0xe0] sm:$0xf]
    %v73 = vld [vmem:[%s1 + $0xe4] sm:$0xf]
    %v74 = vld [vmem:[%s1 + $0xe8] sm:$0xf]
    %v75 = vld [vmem:[%s1 + $0xec] sm:$0xf]
    %v76 = vld [vmem:[%s1 + $0xf0] sm:$0xf]
    %v77 = vld [vmem:[%s1 + $0xf4] sm:$0xf]
    %v78 = vld [vmem:[%s1 + $0xf8] sm:$0xf]
    %v79 = vld [vmem:[%s1 + $0xfc] sm:$0xf]
    %v80 = vld [vmem:[%s2] sm:$0x1]
    %v82 = vperm.slane %v80, 0
    %85 = vst [vmem:[#allocation1] ss:$9 sm:$0xff] %v15
    %v86 = vld [vmem:[#allocation1] sm:$0xff]
    %v87 = vld [vmem:[#allocation1 + $0x9] sm:$0xff]
    %v88 = vld [vmem:[#allocation1 + $0x12] sm:$0xff]
    %v89 = vld [vmem:[#allocation1 + $0x1b] sm:$0xff]
    %v158 = vunpack.c.l.b16 %v16
    %v159 = vunpack.c.l.b16 %v17
    %v160 = vunpack.c.l.b16 %v18
    %v161 = vunpack.c.l.b16 %v19
    %v162 = vunpack.c.l.b16 %v20
    %v163 = vunpack.c.l.b16 %v21
    %v164 = vunpack.c.l.b16 %v22
    %v165 = vunpack.c.l.b16 %v23
    %v166 = vunpack.c.l.b16 %v24
    %v167 = vunpack.c.l.b16 %v25
    %v168 = vunpack.c.l.b16 %v26
    %v169 = vunpack.c.l.b16 %v27
    %v170 = vunpack.c.l.b16 %v28
    %v171 = vunpack.c.l.b16 %v29
    %v172 = vunpack.c.l.b16 %v30
    %v173 = vunpack.c.l.b16 %v31
    %v174 = vunpack.c.l.b16 %v32
    %v175 = vunpack.c.l.b16 %v33
    %v176 = vunpack.c.l.b16 %v34
    %v177 = vunpack.c.l.b16 %v35
    %v178 = vunpack.c.l.b16 %v36
    %v179 = vunpack.c.l.b16 %v37
    %v180 = vunpack.c.l.b16 %v38
    %v181 = vunpack.c.l.b16 %v39
    %v182 = vunpack.c.l.b16 %v40
    %v183 = vunpack.c.l.b16 %v41
    %v184 = vunpack.c.l.b16 %v42
    %v185 = vunpack.c.l.b16 %v43
    %v186 = vunpack.c.l.b16 %v44
    %v187 = vunpack.c.l.b16 %v45
    %v188 = vunpack.c.l.b16 %v46
    %v189 = vunpack.c.l.b16 %v47
    %v190 = vunpack.c.l.b16 %v48
    %v191 = vunpack.c.l.b16 %v49
    %v192 = vunpack.c.l.b16 %v50
    %v193 = vunpack.c.l.b16 %v51
    %v194 = vunpack.c.l.b16 %v52
    %v195 = vunpack.c.l.b16 %v53
    %v196 = vunpack.c.l.b16 %v54
    %v197 = vunpack.c.l.b16 %v55
    %v198 = vunpack.c.l.b16 %v56
    %v199 = vunpack.c.l.b16 %v57
    %v200 = vunpack.c.l.b16 %v58
    %v201 = vunpack.c.l.b16 %v59
    %v202 = vunpack.c.l.b16 %v60
    %v203 = vunpack.c.l.b16 %v61
    %v204 = vunpack.c.l.b16 %v62
    %v205 = vunpack.c.l.b16 %v63
    %v206 = vunpack.c.l.b16 %v64
    %v207 = vunpack.c.l.b16 %v65
    %v208 = vunpack.c.l.b16 %v66
    %v209 = vunpack.c.l.b16 %v67
    %v210 = vunpack.c.l.b16 %v68
    %v211 = vunpack.c.l.b16 %v69
    %v212 = vunpack.c.l.b16 %v70
    %v213 = vunpack.c.l.b16 %v71
    %v214 = vunpack.c.l.b16 %v72
    %v215 = vunpack.c.l.b16 %v73
    %v216 = vunpack.c.l.b16 %v74
    %v217 = vunpack.c.l.b16 %v75
    %v218 = vunpack.c.l.b16 %v76
    %v219 = vunpack.c.l.b16 %v77
    %v220 = vunpack.c.l.b16 %v78
    %v221 = vunpack.c.l.b16 %v79
    %v222 = vpack.c.b16 %v159, %v158
    %v223 = vpack.c.b16 %v161, %v160
    %v224 = vpack.c.b16 %v163, %v162
    %v225 = vpack.c.b16 %v165, %v164
    %v226 = vpack.c.b16 %v167, %v166
    %v227 = vpack.c.b16 %v169, %v168
    %v228 = vpack.c.b16 %v171, %v170
    %v229 = vpack.c.b16 %v173, %v172
    %v230 = vpack.c.b16 %v175, %v174
    %v231 = vpack.c.b16 %v177, %v176
    %v232 = vpack.c.b16 %v179, %v178
    %v233 = vpack.c.b16 %v181, %v180
    %v234 = vpack.c.b16 %v183, %v182
    %v235 = vpack.c.b16 %v185, %v184
    %v236 = vpack.c.b16 %v187, %v186
    %v237 = vpack.c.b16 %v189, %v188
    %v238 = vpack.c.b16 %v191, %v190
    %v239 = vpack.c.b16 %v193, %v192
    %v240 = vpack.c.b16 %v195, %v194
    %v241 = vpack.c.b16 %v197, %v196
    %v242 = vpack.c.b16 %v199, %v198
    %v243 = vpack.c.b16 %v201, %v200
    %v244 = vpack.c.b16 %v203, %v202
    %v245 = vpack.c.b16 %v205, %v204
    %v246 = vpack.c.b16 %v207, %v206
    %v247 = vpack.c.b16 %v209, %v208
    %v248 = vpack.c.b16 %v211, %v210
    %v249 = vpack.c.b16 %v213, %v212
    %v250 = vpack.c.b16 %v215, %v214
    %v251 = vpack.c.b16 %v217, %v216
    %v252 = vpack.c.b16 %v219, %v218
    %v253 = vpack.c.b16 %v221, %v220
    %286 = vmatpush.bf16.msra.mxu0 %v229
    %287 = vmatpush.bf16.msra.mxu0 %v228
    %288 = vmatpush.bf16.msra.mxu0 %v227
    %289 = vmatpush.bf16.msra.mxu0 %v226
    %290 = vmatpush.bf16.msra.mxu0 %v225
    %291 = vmatpush.bf16.msra.mxu0 %v224
    %292 = vmatpush.bf16.msra.mxu0 %v223
    %293 = vmatpush.bf16.msra.mxu0 %v222
    %294 = vmatmul.bf16.gmra.mxu0 %v86
    %v295 = vpop.f32.mrf.mxu0
    %v296 = vadd.f32 %v82, %v295
    %v297 = vpop.f32.mrf.mxu0
    %298 = vdwg.mxu0
    %299 = vmatpush.bf16.msra.mxu0 %v237
    %300 = vmatpush.bf16.msra.mxu0 %v236
    %301 = vmatpush.bf16.msra.mxu0 %v235
    %302 = vmatpush.bf16.msra.mxu0 %v234
    %303 = vmatpush.bf16.msra.mxu0 %v233
    %304 = vmatpush.bf16.msra.mxu0 %v232
    %305 = vmatpush.bf16.msra.mxu0 %v231
    %306 = vmatpush.bf16.msra.mxu0 %v230
    %307 = vmatmul.bf16.gmra.mxu0 %v87
    %v308 = vpop.f32.mrf.mxu0
    %v309 = vadd.f32 %v296, %v308
    %v310 = vpop.f32.mrf.mxu0
    %311 = vdwg.mxu0
    %312 = vmatpush.bf16.msra.mxu0 %v245
    %313 = vmatpush.bf16.msra.mxu0 %v244
    %314 = vmatpush.bf16.msra.mxu0 %v243
    %315 = vmatpush.bf16.msra.mxu0 %v242
    %316 = vmatpush.bf16.msra.mxu0 %v241
    %317 = vmatpush.bf16.msra.mxu0 %v240
    %318 = vmatpush.bf16.msra.mxu0 %v239
    %319 = vmatpush.bf16.msra.mxu0 %v238
    %320 = vmatmul.bf16.gmra.mxu0 %v88
    %v321 = vpop.f32.mrf.mxu0
    %v322 = vadd.f32 %v309, %v321
    %v323 = vpop.f32.mrf.mxu0
    %324 = vdwg.mxu0
    %325 = vmatpush.bf16.msra.mxu0 %v253
    %326 = vmatpush.bf16.msra.mxu0 %v252
    %327 = vmatpush.bf16.msra.mxu0 %v251
    %328 = vmatpush.bf16.msra.mxu0 %v250
    %329 = vmatpush.bf16.msra.mxu0 %v249
    %330 = vmatpush.bf16.msra.mxu0 %v248
    %331 = vmatpush.bf16.msra.mxu0 %v247
    %332 = vmatpush.bf16.msra.mxu0 %v246
    %333 = vmatmul.bf16.gmra.mxu0 %v89
    %v334 = vpop.f32.mrf.mxu0
    %v335 = vadd.f32 %v322, %v334
    %v336 = vpop.f32.mrf.mxu0
    %337 = vdwg.mxu0
    %338 = vst [vmem:[#allocation2] sm:$0x3] %v335
    // Predicated region
    $region14: #{_lambda_.3} parent=1 // pred_check
      _
    $region15: #{_lambda_.3} parent=1 // pred_check_branch
      %340 = sbr.rel (0) target = $region17
    $region16: #{_lambda_.3} parent=1 // pred_region
      %342 = vsyncadd [#allocation3], 0
      %s344 = sshll.u32 [#allocation2], 4
      %s345 = int_to_ptr.vmem [resolvable:$true] %s344
      %s346 = sshll.u32 %s3, 4
      %s347 = int_to_ptr.hbm [resolvable:$true] %s346
      %349 = dma.vmem_to_hbm [thread:$0]  %s345, 32, %s347, [#allocation3]
    $region17: #{_lambda_.3} parent=1 // pred_fallthru
      _
    // Predicated region
    $region18: #{_lambda_.3} parent=1 // pred_check
      _
    $region19: #{_lambda_.3} parent=1 // pred_check_branch
      %351 = sbr.rel (0) target = $region21
    $region20: #{_lambda_.3} parent=1 // pred_region
      %353 = dma.done [#allocation3], 32
    $region21: #{_lambda_.3} parent=1 // pred_fallthru
      _
    %354 = vsyncpa [#allocation3], 1

// kernel: _lambda_.2
$region0: #{_lambda_.2}
  #allocation0 [shape = 'u32[]', space=smem, size = 0x4, offset = 0x4, fixed_abs, tag = 'smem constant byte address 0x4 - core index']
  #allocation1 [shape = 'u32[72,128]{1,0:T(1,128)}', space=vmem, size = 0x9000, scoped, tag = 'internal scratch']
  #allocation2 [shape = 'bf16[4,2,5,5,16]{4,3,2,1,0:T(8,128)(2,1)}', space=vmem, size = 0x14000, scoped, tag = 'scratch operand']
  %s0 = inlined_call_operand.vmem [shape: bf16[2,4,64,36], index: 0, kind: input, shape index: {}]
  %s1 = inlined_call_operand.vmem [shape: bf16[36,16], index: 1, kind: input, shape index: {}]
  %s2 = inlined_call_operand.vmem [shape: f32[1,16], index: 2, kind: input, shape index: {}]
  %s3 = inlined_call_operand.vmem [shape: bf16[144,32], index: 3, kind: input, shape index: {}]
  %s4 = inlined_call_operand.vmem [shape: f32[1,32], index: 4, kind: input, shape index: {}]
  %s5 = inlined_call_operand.vmem [shape: bf16[2,16,32], index: 5, kind: output, shape index: {}]
  %s6 = sld [smem:[#allocation0]]
  $region30: #{_lambda_.2} parent=0
    _
  %s8 = ssub.s32 1, %s6
  %s9 = scalar_select 0, %s8, %s6
  // Predicated region
  $region2: #{_lambda_.2} parent=0 // pred_check
    _
  $region3: #{_lambda_.2} parent=0 // pred_check_branch
    %11 = sbr.rel (0) target = $region5
  $region4: #{_lambda_.2} parent=0 // pred_region
    _
  $region5: #{_lambda_.2} parent=0 // pred_fallthru
    _
  // Predicated region
  $region6: #{_lambda_.2} parent=0 // pred_check
    _
  $region7: #{_lambda_.2} parent=0 // pred_check_branch
    %13 = sbr.rel (0) target = $region9
  $region8: #{_lambda_.2} parent=0 // pred_region
    _
  $region9: #{_lambda_.2} parent=0 // pred_fallthru
    _
  // Predicated region
  $region10: #{_lambda_.2} parent=0 // pred_check
    _
  $region11: #{_lambda_.2} parent=0 // pred_check_branch
    %15 = sbr.rel (0) target = $region13
  $region12: #{_lambda_.2} parent=0 // pred_region
    _
  $region13: #{_lambda_.2} parent=0 // pred_fallthru
    _
  // Predicated region
  $region14: #{_lambda_.2} parent=0 // pred_check
    _
  $region15: #{_lambda_.2} parent=0 // pred_check_branch
    %17 = sbr.rel (0) target = $region17
  $region16: #{_lambda_.2} parent=0 // pred_region
    _
  $region17: #{_lambda_.2} parent=0 // pred_fallthru
    _
  // Predicated region
  $region18: #{_lambda_.2} parent=0 // pred_check
    _
  $region19: #{_lambda_.2} parent=0 // pred_check_branch
    %19 = sbr.rel (0) target = $region21
  $region20: #{_lambda_.2} parent=0 // pred_region
    _
  $region21: #{_lambda_.2} parent=0 // pred_fallthru
    _
  %v21 = vld [vmem:[%s1] sm:$0xf]
  %v22 = vld [vmem:[%s1 + $0x4] sm:$0xf]
  %v23 = vld [vmem:[%s1 + $0x8] sm:$0xf]
  %v24 = vld [vmem:[%s1 + $0xc] sm:$0xf]
  %v25 = vld [vmem:[%s1 + $0x10] sm:$0x3]
  %v26 = vld [vmem:[%s0] sm:$0xf]
  %v27 = vld [vmem:[%s0 + $0x4] sm:$0xf]
  %v28 = vld [vmem:[%s0 + $0x8] sm:$0xf]
  %v29 = vld [vmem:[%s0 + $0xc] sm:$0xf]
  %v30 = vld [vmem:[%s0 + $0x10] sm:$0xf]
  %v31 = vld [vmem:[%s0 + $0x14] sm:$0xf]
  %v32 = vld [vmem:[%s0 + $0x18] sm:$0xf]
  %v33 = vld [vmem:[%s0 + $0x1c] sm:$0xf]
  %v34 = vld [vmem:[%s0 + $0x80] sm:$0xf]
  %v35 = vld [vmem:[%s0 + $0x84] sm:$0xf]
  %v36 = vld [vmem:[%s0 + $0x88] sm:$0xf]
  %v37 = vld [vmem:[%s0 + $0x8c] sm:$0xf]
  %v38 = vld [vmem:[%s0 + $0x90] sm:$0xf]
  %v39 = vld [vmem:[%s0 + $0x94] sm:$0xf]
  %v40 = vld [vmem:[%s0 + $0x98] sm:$0xf]
  %v41 = vld [vmem:[%s0 + $0x9c] sm:$0xf]
  %v58 = vunpack.c.l.b16 %v26
  %v59 = vunpack.c.l.b16 %v27
  %v60 = vunpack.c.l.b16 %v28
  %v61 = vunpack.c.l.b16 %v29
  %v62 = vunpack.c.l.b16 %v30
  %v63 = vunpack.c.l.b16 %v31
  %v64 = vunpack.c.l.b16 %v32
  %v65 = vunpack.c.l.b16 %v33
  %v66 = vunpack.c.l.b16 %v34
  %v67 = vunpack.c.l.b16 %v35
  %v68 = vunpack.c.l.b16 %v36
  %v69 = vunpack.c.l.b16 %v37
  %v70 = vunpack.c.l.b16 %v38
  %v71 = vunpack.c.l.b16 %v39
  %v72 = vunpack.c.l.b16 %v40
  %v73 = vunpack.c.l.b16 %v41
  %v74 = vpack.c.b16 %v59, %v58
  %v75 = vpack.c.b16 %v61, %v60
  %v76 = vpack.c.b16 %v63, %v62
  %v77 = vpack.c.b16 %v65, %v64
  %v78 = vpack.c.b16 %v67, %v66
  %v79 = vpack.c.b16 %v69, %v68
  %v80 = vpack.c.b16 %v71, %v70
  %v81 = vpack.c.b16 %v73, %v72
  %v87 = vunpack.c.l.b16 %v21
  %v88 = vunpack.c.l.b16 %v22
  %v89 = vunpack.c.l.b16 %v23
  %v90 = vunpack.c.l.b16 %v24
  %v91 = vunpack.c.l.b16 %v25
  %v92 = vpack.c.b16 %v88, %v87
  %v93 = vpack.c.b16 %v90, %v89
  %v94 = vpack.c.b16 %v91, %v91
  %vm97 = vcmask 293888
  %v99 = vsel %vm97, %v74, 0
  %v102 = vsel %vm97, %v75, 0
  %v105 = vsel %vm97, %v76, 0
  %v108 = vsel %vm97, %v77, 0
  %v111 = vsel %vm97, %v78, 0
  %v114 = vsel %vm97, %v79, 0
  %v117 = vsel %vm97, %v80, 0
  %v120 = vsel %vm97, %v81, 0
  %vm122 = vcmask 1041408
  %v124 = vsel %vm122, %v94, 0
  %126 = vmatpush.bf16.msra.mxu0 0
  %127 = vmatpush.bf16.msra.mxu0 0
  %128 = vmatpush.bf16.msra.mxu0 0
  %129 = vmatpush.bf16.msra.mxu0 0
  %130 = vmatpush.bf16.msra.mxu0 0
  %131 = vmatpush.bf16.msra.mxu0 %v124
  %132 = vmatpush.bf16.msra.mxu0 %v93
  %133 = vmatpush.bf16.msra.mxu0 %v92
  %134 = vmatmul.bf16.gmra.mxu0 %v99
  %v135 = vpop.f32.mrf.mxu0
  %v136 = vadd.f32 0.0, %v135
  %v137 = vpop.f32.mrf.mxu0
  %v138 = vadd.f32 0.0, %v137
  %139 = vmatmul.bf16.gmra.mxu0 %v102
  %v140 = vpop.f32.mrf.mxu0
  %v141 = vadd.f32 0.0, %v140
  %v142 = vpop.f32.mrf.mxu0
  %v143 = vadd.f32 0.0, %v142
  %144 = vmatmul.bf16.gmra.mxu0 %v105
  %v145 = vpop.f32.mrf.mxu0
  %v146 = vadd.f32 0.0, %v145
  %v147 = vpop.f32.mrf.mxu0
  %v148 = vadd.f32 0.0, %v147
  %149 = vmatmul.bf16.gmra.mxu0 %v108
  %v150 = vpop.f32.mrf.mxu0
  %v151 = vadd.f32 0.0, %v150
  %v152 = vpop.f32.mrf.mxu0
  %v153 = vadd.f32 0.0, %v152
  %154 = vmatmul.bf16.gmra.mxu0 %v111
  %v155 = vpop.f32.mrf.mxu0
  %v156 = vadd.f32 0.0, %v155
  %v157 = vpop.f32.mrf.mxu0
  %v158 = vadd.f32 0.0, %v157
  %159 = vmatmul.bf16.gmra.mxu0 %v114
  %v160 = vpop.f32.mrf.mxu0
  %v161 = vadd.f32 0.0, %v160
  %v162 = vpop.f32.mrf.mxu0
  %v163 = vadd.f32 0.0, %v162
  %164 = vmatmul.bf16.gmra.mxu0 %v117
  %v165 = vpop.f32.mrf.mxu0
  %v166 = vadd.f32 0.0, %v165
  %v167 = vpop.f32.mrf.mxu0
  %v168 = vadd.f32 0.0, %v167
  %169 = vmatmul.bf16.gmra.mxu0 %v120
  %v170 = vpop.f32.mrf.mxu0
  %v171 = vadd.f32 0.0, %v170
  %v172 = vpop.f32.mrf.mxu0
  %v173 = vadd.f32 0.0, %v172
  %174 = vdwg.mxu0
  %s175 = scalar_lea.vmem %s0, 32
  %v176 = vld [vmem:[%s175] sm:$0xf]
  %v177 = vld [vmem:[%s175 + $0x4] sm:$0xf]
  %v178 = vld [vmem:[%s175 + $0x8] sm:$0xf]
  %v179 = vld [vmem:[%s175 + $0xc] sm:$0xf]
  %v180 = vld [vmem:[%s175 + $0x10] sm:$0xf]
  %v181 = vld [vmem:[%s175 + $0x14] sm:$0xf]
  %v182 = vld [vmem:[%s175 + $0x18] sm:$0xf]
  %v183 = vld [vmem:[%s175 + $0x1c] sm:$0xf]
  %v184 = vld [vmem:[%s175 + $0x80] sm:$0xf]
  %v185 = vld [vmem:[%s175 + $0x84] sm:$0xf]
  %v186 = vld [vmem:[%s175 + $0x88] sm:$0xf]
  %v187 = vld [vmem:[%s175 + $0x8c] sm:$0xf]
  %v188 = vld [vmem:[%s175 + $0x90] sm:$0xf]
  %v189 = vld [vmem:[%s175 + $0x94] sm:$0xf]
  %v190 = vld [vmem:[%s175 + $0x98] sm:$0xf]
  %v191 = vld [vmem:[%s175 + $0x9c] sm:$0xf]
  %v208 = vunpack.c.l.b16 %v176
  %v209 = vunpack.c.l.b16 %v177
  %v210 = vunpack.c.l.b16 %v178
  %v211 = vunpack.c.l.b16 %v179
  %v212 = vunpack.c.l.b16 %v180
  %v213 = vunpack.c.l.b16 %v181
  %v214 = vunpack.c.l.b16 %v182
  %v215 = vunpack.c.l.b16 %v183
  %v216 = vunpack.c.l.b16 %v184
  %v217 = vunpack.c.l.b16 %v185
  %v218 = vunpack.c.l.b16 %v186
  %v219 = vunpack.c.l.b16 %v187
  %v220 = vunpack.c.l.b16 %v188
  %v221 = vunpack.c.l.b16 %v189
  %v222 = vunpack.c.l.b16 %v190
  %v223 = vunpack.c.l.b16 %v191
  %v224 = vpack.c.b16 %v209, %v208
  %v225 = vpack.c.b16 %v211, %v210
  %v226 = vpack.c.b16 %v213, %v212
  %v227 = vpack.c.b16 %v215, %v214
  %v228 = vpack.c.b16 %v217, %v216
  %v229 = vpack.c.b16 %v219, %v218
  %v230 = vpack.c.b16 %v221, %v220
  %v231 = vpack.c.b16 %v223, %v222
  %v233 = vsel %vm97, %v224, 0
  %v236 = vsel %vm97, %v225, 0
  %v239 = vsel %vm97, %v226, 0
  %v242 = vsel %vm97, %v227, 0
  %v245 = vsel %vm97, %v228, 0
  %v248 = vsel %vm97, %v229, 0
  %v251 = vsel %vm97, %v230, 0
  %v254 = vsel %vm97, %v231, 0
  %256 = vmatpush.bf16.msra.mxu0 0
  %257 = vmatpush.bf16.msra.mxu0 0
  %258 = vmatpush.bf16.msra.mxu0 0
  %259 = vmatpush.bf16.msra.mxu0 0
  %260 = vmatpush.bf16.msra.mxu0 0
  %261 = vmatpush.bf16.msra.mxu0 %v124
  %262 = vmatpush.bf16.msra.mxu0 %v93
  %263 = vmatpush.bf16.msra.mxu0 %v92
  %264 = vmatmul.bf16.gmra.mxu0 %v233
  %v265 = vpop.f32.mrf.mxu0
  %v266 = vadd.f32 0.0, %v265
  %v267 = vpop.f32.mrf.mxu0
  %v268 = vadd.f32 0.0, %v267
  %269 = vmatmul.bf16.gmra.mxu0 %v236
  %v270 = vpop.f32.mrf.mxu0
  %v271 = vadd.f32 0.0, %v270
  %v272 = vpop.f32.mrf.mxu0
  %v273 = vadd.f32 0.0, %v272
  %274 = vmatmul.bf16.gmra.mxu0 %v239
  %v275 = vpop.f32.mrf.mxu0
  %v276 = vadd.f32 0.0, %v275
  %v277 = vpop.f32.mrf.mxu0
  %v278 = vadd.f32 0.0, %v277
  %279 = vmatmul.bf16.gmra.mxu0 %v242
  %v280 = vpop.f32.mrf.mxu0
  %v281 = vadd.f32 0.0, %v280
  %v282 = vpop.f32.mrf.mxu0
  %v283 = vadd.f32 0.0, %v282
  %284 = vmatmul.bf16.gmra.mxu0 %v245
  %v285 = vpop.f32.mrf.mxu0
  %v286 = vadd.f32 0.0, %v285
  %v287 = vpop.f32.mrf.mxu0
  %v288 = vadd.f32 0.0, %v287
  %289 = vmatmul.bf16.gmra.mxu0 %v248
  %v290 = vpop.f32.mrf.mxu0
  %v291 = vadd.f32 0.0, %v290
  %v292 = vpop.f32.mrf.mxu0
  %v293 = vadd.f32 0.0, %v292
  %294 = vmatmul.bf16.gmra.mxu0 %v251
  %v295 = vpop.f32.mrf.mxu0
  %v296 = vadd.f32 0.0, %v295
  %v297 = vpop.f32.mrf.mxu0
  %v298 = vadd.f32 0.0, %v297
  %299 = vmatmul.bf16.gmra.mxu0 %v254
  %v300 = vpop.f32.mrf.mxu0
  %v301 = vadd.f32 0.0, %v300
  %v302 = vpop.f32.mrf.mxu0
  %v303 = vadd.f32 0.0, %v302
  %304 = vdwg.mxu0
  %v305 = vmax.f32 %v136, %v266
  %v306 = vmax.f32 %v138, %v268
  %v307 = vmax.f32 %v141, %v271
  %v308 = vmax.f32 %v143, %v273
  %v309 = vmax.f32 %v146, %v276
  %v310 = vmax.f32 %v148, %v278
  %v311 = vmax.f32 %v151, %v281
  %v312 = vmax.f32 %v153, %v283
  %v313 = vmax.f32 %v156, %v286
  %v314 = vmax.f32 %v158, %v288
  %v315 = vmax.f32 %v161, %v291
  %v316 = vmax.f32 %v163, %v293
  %v317 = vmax.f32 %v166, %v296
  %v318 = vmax.f32 %v168, %v298
  %v319 = vmax.f32 %v171, %v301
  %v320 = vmax.f32 %v173, %v303
  %s321 = scalar_lea.vmem %s0, 64
  %v322 = vld [vmem:[%s321] sm:$0xf]
  %v323 = vld [vmem:[%s321 + $0x4] sm:$0xf]
  %v324 = vld [vmem:[%s321 + $0x8] sm:$0xf]
  %v325 = vld [vmem:[%s321 + $0xc] sm:$0xf]
  %v326 = vld [vmem:[%s321 + $0x10] sm:$0xf]
  %v327 = vld [vmem:[%s321 + $0x14] sm:$0xf]
  %v328 = vld [vmem:[%s321 + $0x18] sm:$0xf]
  %v329 = vld [vmem:[%s321 + $0x1c] sm:$0xf]
  %v330 = vld [vmem:[%s321 + $0x80] sm:$0xf]
  %v331 = vld [vmem:[%s321 + $0x84] sm:$0xf]
  %v332 = vld [vmem:[%s321 + $0x88] sm:$0xf]
  %v333 = vld [vmem:[%s321 + $0x8c] sm:$0xf]
  %v334 = vld [vmem:[%s321 + $0x90] sm:$0xf]
  %v335 = vld [vmem:[%s321 + $0x94] sm:$0xf]
  %v336 = vld [vmem:[%s321 + $0x98] sm:$0xf]
  %v337 = vld [vmem:[%s321 + $0x9c] sm:$0xf]
  %v354 = vunpack.c.l.b16 %v322
  %v355 = vunpack.c.l.b16 %v323
  %v356 = vunpack.c.l.b16 %v324
  %v357 = vunpack.c.l.b16 %v325
  %v358 = vunpack.c.l.b16 %v326
  %v359 = vunpack.c.l.b16 %v327
  %v360 = vunpack.c.l.b16 %v328
  %v361 = vunpack.c.l.b16 %v329
  %v362 = vunpack.c.l.b16 %v330
  %v363 = vunpack.c.l.b16 %v331
  %v364 = vunpack.c.l.b16 %v332
  %v365 = vunpack.c.l.b16 %v333
  %v366 = vunpack.c.l.b16 %v334
  %v367 = vunpack.c.l.b16 %v335
  %v368 = vunpack.c.l.b16 %v336
  %v369 = vunpack.c.l.b16 %v337
  %v370 = vpack.c.b16 %v355, %v354
  %v371 = vpack.c.b16 %v357, %v356
  %v372 = vpack.c.b16 %v359, %v358
  %v373 = vpack.c.b16 %v361, %v360
  %v374 = vpack.c.b16 %v363, %v362
  %v375 = vpack.c.b16 %v365, %v364
  %v376 = vpack.c.b16 %v367, %v366
  %v377 = vpack.c.b16 %v369, %v368
  %v379 = vsel %vm97, %v370, 0
  %v382 = vsel %vm97, %v371, 0
  %v385 = vsel %vm97, %v372, 0
  %v388 = vsel %vm97, %v373, 0
  %v391 = vsel %vm97, %v374, 0
  %v394 = vsel %vm97, %v375, 0
  %v397 = vsel %vm97, %v376, 0
  %v400 = vsel %vm97, %v377, 0
  %402 = vmatpush.bf16.msra.mxu0 0
  %403 = vmatpush.bf16.msra.mxu0 0
  %404 = vmatpush.bf16.msra.mxu0 0
  %405 = vmatpush.bf16.msra.mxu0 0
  %406 = vmatpush.bf16.msra.mxu0 0
  %407 = vmatpush.bf16.msra.mxu0 %v124
  %408 = vmatpush.bf16.msra.mxu0 %v93
  %409 = vmatpush.bf16.msra.mxu0 %v92
  %410 = vmatmul.bf16.gmra.mxu0 %v379
  %v411 = vpop.f32.mrf.mxu0
  %v412 = vadd.f32 0.0, %v411
  %v413 = vpop.f32.mrf.mxu0
  %v414 = vadd.f32 0.0, %v413
  %415 = vmatmul.bf16.gmra.mxu0 %v382
  %v416 = vpop.f32.mrf.mxu0
  %v417 = vadd.f32 0.0, %v416
  %v418 = vpop.f32.mrf.mxu0
  %v419 = vadd.f32 0.0, %v418
  %420 = vmatmul.bf16.gmra.mxu0 %v385
  %v421 = vpop.f32.mrf.mxu0
  %v422 = vadd.f32 0.0, %v421
  %v423 = vpop.f32.mrf.mxu0
  %v424 = vadd.f32 0.0, %v423
  %425 = vmatmul.bf16.gmra.mxu0 %v388
  %v426 = vpop.f32.mrf.mxu0
  %v427 = vadd.f32 0.0, %v426
  %v428 = vpop.f32.mrf.mxu0
  %v429 = vadd.f32 0.0, %v428
  %430 = vmatmul.bf16.gmra.mxu0 %v391
  %v431 = vpop.f32.mrf.mxu0
  %v432 = vadd.f32 0.0, %v431
  %v433 = vpop.f32.mrf.mxu0
  %v434 = vadd.f32 0.0, %v433
  %435 = vmatmul.bf16.gmra.mxu0 %v394
  %v436 = vpop.f32.mrf.mxu0
  %v437 = vadd.f32 0.0, %v436
  %v438 = vpop.f32.mrf.mxu0
  %v439 = vadd.f32 0.0, %v438
  %440 = vmatmul.bf16.gmra.mxu0 %v397
  %v441 = vpop.f32.mrf.mxu0
  %v442 = vadd.f32 0.0, %v441
  %v443 = vpop.f32.mrf.mxu0
  %v444 = vadd.f32 0.0, %v443
  %445 = vmatmul.bf16.gmra.mxu0 %v400
  %v446 = vpop.f32.mrf.mxu0
  %v447 = vadd.f32 0.0, %v446
  %v448 = vpop.f32.mrf.mxu0
  %v449 = vadd.f32 0.0, %v448
  %450 = vdwg.mxu0
  %v451 = vmax.f32 %v305, %v412
  %v452 = vmax.f32 %v306, %v414
  %v453 = vmax.f32 %v307, %v417
  %v454 = vmax.f32 %v308, %v419
  %v455 = vmax.f32 %v309, %v422
  %v456 = vmax.f32 %v310, %v424
  %v457 = vmax.f32 %v311, %v427
  %v458 = vmax.f32 %v312, %v429
  %v459 = vmax.f32 %v313, %v432
  %v460 = vmax.f32 %v314, %v434
  %v461 = vmax.f32 %v315, %v437
  %v462 = vmax.f32 %v316, %v439
  %v463 = vmax.f32 %v317, %v442
  %v464 = vmax.f32 %v318, %v444
  %v465 = vmax.f32 %v319, %v447
  %v466 = vmax.f32 %v320, %v449
  %s467 = scalar_lea.vmem %s0, 96
  %v468 = vld [vmem:[%s467] sm:$0xf]
  %v469 = vld [vmem:[%s467 + $0x4] sm:$0xf]
  %v470 = vld [vmem:[%s467 + $0x8] sm:$0xf]
  %v471 = vld [vmem:[%s467 + $0xc] sm:$0xf]
  %v472 = vld [vmem:[%s467 + $0x10] sm:$0xf]
  %v473 = vld [vmem:[%s467 + $0x14] sm:$0xf]
  %v474 = vld [vmem:[%s467 + $0x18] sm:$0xf]
  %v475 = vld [vmem:[%s467 + $0x1c] sm:$0xf]
  %v476 = vld [vmem:[%s467 + $0x80] sm:$0xf]
  %v477 = vld [vmem:[%s467 + $0x84] sm:$0xf]
  %v478 = vld [vmem:[%s467 + $0x88] sm:$0xf]
  %v479 = vld [vmem:[%s467 + $0x8c] sm:$0xf]
  %v480 = vld [vmem:[%s467 + $0x90] sm:$0xf]
  %v481 = vld [vmem:[%s467 + $0x94] sm:$0xf]
  %v482 = vld [vmem:[%s467 + $0x98] sm:$0xf]
  %v483 = vld [vmem:[%s467 + $0x9c] sm:$0xf]
  %v500 = vunpack.c.l.b16 %v468
  %v501 = vunpack.c.l.b16 %v469
  %v502 = vunpack.c.l.b16 %v470
  %v503 = vunpack.c.l.b16 %v471
  %v504 = vunpack.c.l.b16 %v472
  %v505 = vunpack.c.l.b16 %v473
  %v506 = vunpack.c.l.b16 %v474
  %v507 = vunpack.c.l.b16 %v475
  %v508 = vunpack.c.l.b16 %v476
  %v509 = vunpack.c.l.b16 %v477
  %v510 = vunpack.c.l.b16 %v478
  %v511 = vunpack.c.l.b16 %v479
  %v512 = vunpack.c.l.b16 %v480
  %v513 = vunpack.c.l.b16 %v481
  %v514 = vunpack.c.l.b16 %v482
  %v515 = vunpack.c.l.b16 %v483
  %v516 = vpack.c.b16 %v501, %v500
  %v517 = vpack.c.b16 %v503, %v502
  %v518 = vpack.c.b16 %v505, %v504
  %v519 = vpack.c.b16 %v507, %v506
  %v520 = vpack.c.b16 %v509, %v508
  %v521 = vpack.c.b16 %v511, %v510
  %v522 = vpack.c.b16 %v513, %v512
  %v523 = vpack.c.b16 %v515, %v514
  %v525 = vsel %vm97, %v516, 0
  %v528 = vsel %vm97, %v517, 0
  %v531 = vsel %vm97, %v518, 0
  %v534 = vsel %vm97, %v519, 0
  %v537 = vsel %vm97, %v520, 0
  %v540 = vsel %vm97, %v521, 0
  %v543 = vsel %vm97, %v522, 0
  %v546 = vsel %vm97, %v523, 0
  %548 = vmatpush.bf16.msra.mxu0 0
  %549 = vmatpush.bf16.msra.mxu0 0
  %550 = vmatpush.bf16.msra.mxu0 0
  %551 = vmatpush.bf16.msra.mxu0 0
  %552 = vmatpush.bf16.msra.mxu0 0
  %553 = vmatpush.bf16.msra.mxu0 %v124
  %554 = vmatpush.bf16.msra.mxu0 %v93
  %555 = vmatpush.bf16.msra.mxu0 %v92
  %556 = vmatmul.bf16.gmra.mxu0 %v525
  %v557 = vpop.f32.mrf.mxu0
  %v558 = vadd.f32 0.0, %v557
  %v559 = vpop.f32.mrf.mxu0
  %v560 = vadd.f32 0.0, %v559
  %561 = vmatmul.bf16.gmra.mxu0 %v528
  %v562 = vpop.f32.mrf.mxu0
  %v563 = vadd.f32 0.0, %v562
  %v564 = vpop.f32.mrf.mxu0
  %v565 = vadd.f32 0.0, %v564
  %566 = vmatmul.bf16.gmra.mxu0 %v531
  %v567 = vpop.f32.mrf.mxu0
  %v568 = vadd.f32 0.0, %v567
  %v569 = vpop.f32.mrf.mxu0
  %v570 = vadd.f32 0.0, %v569
  %571 = vmatmul.bf16.gmra.mxu0 %v534
  %v572 = vpop.f32.mrf.mxu0
  %v573 = vadd.f32 0.0, %v572
  %v574 = vpop.f32.mrf.mxu0
  %v575 = vadd.f32 0.0, %v574
  %576 = vmatmul.bf16.gmra.mxu0 %v537
  %v577 = vpop.f32.mrf.mxu0
  %v578 = vadd.f32 0.0, %v577
  %v579 = vpop.f32.mrf.mxu0
  %v580 = vadd.f32 0.0, %v579
  %581 = vmatmul.bf16.gmra.mxu0 %v540
  %v582 = vpop.f32.mrf.mxu0
  %v583 = vadd.f32 0.0, %v582
  %v584 = vpop.f32.mrf.mxu0
  %v585 = vadd.f32 0.0, %v584
  %586 = vmatmul.bf16.gmra.mxu0 %v543
  %v587 = vpop.f32.mrf.mxu0
  %v588 = vadd.f32 0.0, %v587
  %v589 = vpop.f32.mrf.mxu0
  %v590 = vadd.f32 0.0, %v589
  %591 = vmatmul.bf16.gmra.mxu0 %v546
  %v592 = vpop.f32.mrf.mxu0
  %v593 = vadd.f32 0.0, %v592
  %v594 = vpop.f32.mrf.mxu0
  %v595 = vadd.f32 0.0, %v594
  %596 = vdwg.mxu0
  %v597 = vmax.f32 %v451, %v558
  %v598 = vmax.f32 %v452, %v560
  %v599 = vmax.f32 %v453, %v563
  %v600 = vmax.f32 %v454, %v565
  %v601 = vmax.f32 %v455, %v568
  %v602 = vmax.f32 %v456, %v570
  %v603 = vmax.f32 %v457, %v573
  %v604 = vmax.f32 %v458, %v575
  %v605 = vmax.f32 %v459, %v578
  %v606 = vmax.f32 %v460, %v580
  %v607 = vmax.f32 %v461, %v583
  %v608 = vmax.f32 %v462, %v585
  %v609 = vmax.f32 %v463, %v588
  %v610 = vmax.f32 %v464, %v590
  %v611 = vmax.f32 %v465, %v593
  %v612 = vmax.f32 %v466, %v595
  %v613 = vld [vmem:[%s2] sm:$0x1]
  %v615 = vperm.slane %v613, 0
  %v617 = vadd.f32 %v597, %v615
  %v618 = vadd.f32 %v598, %v615
  %v619 = vadd.f32 %v599, %v615
  %v620 = vadd.f32 %v600, %v615
  %v621 = vadd.f32 %v601, %v615
  %v622 = vadd.f32 %v602, %v615
  %v623 = vadd.f32 %v603, %v615
  %v624 = vadd.f32 %v604, %v615
  %v625 = vadd.f32 %v605, %v615
  %v626 = vadd.f32 %v606, %v615
  %v627 = vadd.f32 %v607, %v615
  %v628 = vadd.f32 %v608, %v615
  %v629 = vadd.f32 %v609, %v615
  %v630 = vadd.f32 %v610, %v615
  %v631 = vadd.f32 %v611, %v615
  %v632 = vadd.f32 %v612, %v615
  %v633 = vmax.f32 %v617, 0.0
  %v634 = vmax.f32 %v618, 0.0
  %v635 = vmax.f32 %v619, 0.0
  %v636 = vmax.f32 %v620, 0.0
  %v637 = vmax.f32 %v621, 0.0
  %v638 = vmax.f32 %v622, 0.0
  %v639 = vmax.f32 %v623, 0.0
  %v640 = vmax.f32 %v624, 0.0
  %v641 = vmax.f32 %v625, 0.0
  %v642 = vmax.f32 %v626, 0.0
  %v643 = vmax.f32 %v627, 0.0
  %v644 = vmax.f32 %v628, 0.0
  %v645 = vmax.f32 %v629, 0.0
  %v646 = vmax.f32 %v630, 0.0
  %v647 = vmax.f32 %v631, 0.0
  %v648 = vmax.f32 %v632, 0.0
  %v649 = vpack.c.bf16 %v633, %v633
  %v650 = vpack.c.bf16 %v634, %v634
  %v651 = vpack.c.bf16 %v635, %v635
  %v652 = vpack.c.bf16 %v636, %v636
  %v653 = vpack.c.bf16 %v637, %v637
  %v654 = vpack.c.bf16 %v638, %v638
  %v655 = vpack.c.bf16 %v639, %v639
  %v656 = vpack.c.bf16 %v640, %v640
  %v657 = vpack.c.bf16 %v641, %v641
  %v658 = vpack.c.bf16 %v642, %v642
  %v659 = vpack.c.bf16 %v643, %v643
  %v660 = vpack.c.bf16 %v644, %v644
  %v661 = vpack.c.bf16 %v645, %v645
  %v662 = vpack.c.bf16 %v646, %v646
  %v663 = vpack.c.bf16 %v647, %v647
  %v664 = vpack.c.bf16 %v648, %v648
  %v681 = vrot.slane %v649, 2
  %v682 = vrot.slane %v650, 2
  %v683 = vrot.slane %v651, 2
  %v684 = vrot.slane %v652, 2
  %v685 = vrot.slane %v653, 2
  %v686 = vrot.slane %v654, 2
  %v687 = vrot.slane %v655, 2
  %v688 = vrot.slane %v656, 2
  %v689 = vrot.slane %v657, 2
  %v690 = vrot.slane %v658, 2
  %v691 = vrot.slane %v659, 2
  %v692 = vrot.slane %v660, 2
  %v693 = vrot.slane %v661, 2
  %v694 = vrot.slane %v662, 2
  %v695 = vrot.slane %v663, 2
  %v696 = vrot.slane %v664, 2
  %v699 = vsel %vm122, %v649, %v681
  %vm700 = vcmask 1043458
  %v701 = vsel %vm700, %v649, %v681
  %v703 = vrot.slane %v701, 2
  %v706 = vsel %vm122, %v650, %v682
  %v707 = vsel %vm700, %v650, %v682
  %v709 = vrot.slane %v707, 2
  %v712 = vsel %vm122, %v651, %v683
  %v713 = vsel %vm700, %v651, %v683
  %v715 = vrot.slane %v713, 2
  %v718 = vsel %vm122, %v652, %v684
  %v719 = vsel %vm700, %v652, %v684
  %v721 = vrot.slane %v719, 2
  %v724 = vsel %vm122, %v653, %v685
  %v725 = vsel %vm700, %v653, %v685
  %v727 = vrot.slane %v725, 2
  %v730 = vsel %vm122, %v654, %v686
  %v731 = vsel %vm700, %v654, %v686
  %v733 = vrot.slane %v731, 2
  %v736 = vsel %vm122, %v655, %v687
  %v737 = vsel %vm700, %v655, %v687
  %v739 = vrot.slane %v737, 2
  %v742 = vsel %vm122, %v656, %v688
  %v743 = vsel %vm700, %v656, %v688
  %v745 = vrot.slane %v743, 2
  %v748 = vsel %vm122, %v657, %v689
  %v749 = vsel %vm700, %v657, %v689
  %v751 = vrot.slane %v749, 2
  %v754 = vsel %vm122, %v658, %v690
  %v755 = vsel %vm700, %v658, %v690
  %v757 = vrot.slane %v755, 2
  %v760 = vsel %vm122, %v659, %v691
  %v761 = vsel %vm700, %v659, %v691
  %v763 = vrot.slane %v761, 2
  %v766 = vsel %vm122, %v660, %v692
  %v767 = vsel %vm700, %v660, %v692
  %v769 = vrot.slane %v767, 2
  %v772 = vsel %vm122, %v661, %v693
  %v773 = vsel %vm700, %v661, %v693
  %v775 = vrot.slane %v773, 2
  %v778 = vsel %vm122, %v662, %v694
  %v779 = vsel %vm700, %v662, %v694
  %v781 = vrot.slane %v779, 2
  %v784 = vsel %vm122, %v663, %v695
  %v785 = vsel %vm700, %v663, %v695
  %v787 = vrot.slane %v785, 2
  %v790 = vsel %vm122, %v664, %v696
  %v791 = vsel %vm700, %v664, %v696
  %v793 = vrot.slane %v791, 2
  %vm810 = vcmask 124928
  %vm811 = vsmask.f32 2304
  %vm812 = vmand %vm810, %vm811
  %v813 = vld [vmem:[#allocation2] sm:$0x7]
  %v814 = vsel %vm812, 0, %v813
  %815 = vst [vmem:[#allocation2] sm:$0x7] %v814
  %v816 = vld [vmem:[#allocation2 + $0x4] sm:$0x7]
  %v817 = vsel %vm812, 0, %v816
  %818 = vst [vmem:[#allocation2 + $0x4] sm:$0x7] %v817
  %v819 = vld [vmem:[#allocation2 + $0x8] sm:$0x7]
  %v820 = vsel %vm812, 0, %v819
  %821 = vst [vmem:[#allocation2 + $0x8] sm:$0x7] %v820
  %v822 = vld [vmem:[#allocation2 + $0xc] sm:$0x7]
  %v823 = vsel %vm812, 0, %v822
  %824 = vst [vmem:[#allocation2 + $0xc] sm:$0x7] %v823
  %v825 = vld [vmem:[#allocation2 + $0x10] sm:$0x7]
  %v826 = vsel %vm812, 0, %v825
  %827 = vst [vmem:[#allocation2 + $0x10] sm:$0x7] %v826
  %v828 = vld [vmem:[#allocation2 + $0x14] sm:$0x7]
  %v829 = vsel %vm812, 0, %v828
  %830 = vst [vmem:[#allocation2 + $0x14] sm:$0x7] %v829
  %v831 = vld [vmem:[#allocation2 + $0x18] sm:$0x7]
  %v832 = vsel %vm812, 0, %v831
  %833 = vst [vmem:[#allocation2 + $0x18] sm:$0x7] %v832
  %v834 = vld [vmem:[#allocation2 + $0x1c] sm:$0x7]
  %v835 = vsel %vm812, 0, %v834
  %836 = vst [vmem:[#allocation2 + $0x1c] sm:$0x7] %v835
  %v837 = vld [vmem:[#allocation2 + $0x20] sm:$0x7]
  %v838 = vsel %vm812, 0, %v837
  %839 = vst [vmem:[#allocation2 + $0x20] sm:$0x7] %v838
  %v840 = vld [vmem:[#allocation2 + $0x24] sm:$0x7]
  %v841 = vsel %vm812, 0, %v840
  %842 = vst [vmem:[#allocation2 + $0x24] sm:$0x7] %v841
  %v843 = vld [vmem:[#allocation2 + $0x28] sm:$0x7]
  %v844 = vsel %vm812, 0, %v843
  %845 = vst [vmem:[#allocation2 + $0x28] sm:$0x7] %v844
  %v846 = vld [vmem:[#allocation2 + $0x2c] sm:$0x7]
  %v847 = vsel %vm812, 0, %v846
  %848 = vst [vmem:[#allocation2 + $0x2c] sm:$0x7] %v847
  %v849 = vld [vmem:[#allocation2 + $0x30] sm:$0x7]
  %v850 = vsel %vm812, 0, %v849
  %851 = vst [vmem:[#allocation2 + $0x30] sm:$0x7] %v850
  %v852 = vld [vmem:[#allocation2 + $0x34] sm:$0x7]
  %v853 = vsel %vm812, 0, %v852
  %854 = vst [vmem:[#allocation2 + $0x34] sm:$0x7] %v853
  %v855 = vld [vmem:[#allocation2 + $0x38] sm:$0x7]
  %v856 = vsel %vm812, 0, %v855
  %857 = vst [vmem:[#allocation2 + $0x38] sm:$0x7] %v856
  %v858 = vld [vmem:[#allocation2 + $0x3c] sm:$0x7]
  %v859 = vsel %vm812, 0, %v858
  %860 = vst [vmem:[#allocation2 + $0x3c] sm:$0x7] %v859
  %v861 = vld [vmem:[#allocation2 + $0x40] sm:$0x7]
  %v862 = vsel %vm812, 0, %v861
  %863 = vst [vmem:[#allocation2 + $0x40] sm:$0x7] %v862
  %v864 = vld [vmem:[#allocation2 + $0x44] sm:$0x7]
  %v865 = vsel %vm812, 0, %v864
  %866 = vst [vmem:[#allocation2 + $0x44] sm:$0x7] %v865
  %v867 = vld [vmem:[#allocation2 + $0x48] sm:$0x7]
  %v868 = vsel %vm812, 0, %v867
  %869 = vst [vmem:[#allocation2 + $0x48] sm:$0x7] %v868
  %v870 = vld [vmem:[#allocation2 + $0x4c] sm:$0x7]
  %v871 = vsel %vm812, 0, %v870
  %872 = vst [vmem:[#allocation2 + $0x4c] sm:$0x7] %v871
  %v873 = vld [vmem:[#allocation2 + $0x50] sm:$0x7]
  %v874 = vsel %vm812, 0, %v873
  %875 = vst [vmem:[#allocation2 + $0x50] sm:$0x7] %v874
  %v876 = vld [vmem:[#allocation2 + $0x54] sm:$0x7]
  %v877 = vsel %vm812, 0, %v876
  %878 = vst [vmem:[#allocation2 + $0x54] sm:$0x7] %v877
  %v879 = vld [vmem:[#allocation2 + $0x58] sm:$0x7]
  %v880 = vsel %vm812, 0, %v879
  %881 = vst [vmem:[#allocation2 + $0x58] sm:$0x7] %v880
  %v882 = vld [vmem:[#allocation2 + $0x5c] sm:$0x7]
  %v883 = vsel %vm812, 0, %v882
  %884 = vst [vmem:[#allocation2 + $0x5c] sm:$0x7] %v883
  %v885 = vld [vmem:[#allocation2 + $0x60] sm:$0x7]
  %v886 = vsel %vm812, 0, %v885
  %887 = vst [vmem:[#allocation2 + $0x60] sm:$0x7] %v886
  %v888 = vld [vmem:[#allocation2 + $0x64] sm:$0x7]
  %v889 = vsel %vm812, 0, %v888
  %890 = vst [vmem:[#allocation2 + $0x64] sm:$0x7] %v889
  %v891 = vld [vmem:[#allocation2 + $0x68] sm:$0x7]
  %v892 = vsel %vm812, 0, %v891
  %893 = vst [vmem:[#allocation2 + $0x68] sm:$0x7] %v892
  %v894 = vld [vmem:[#allocation2 + $0x6c] sm:$0x7]
  %v895 = vsel %vm812, 0, %v894
  %896 = vst [vmem:[#allocation2 + $0x6c] sm:$0x7] %v895
  %v897 = vld [vmem:[#allocation2 + $0x70] sm:$0x7]
  %v898 = vsel %vm812, 0, %v897
  %899 = vst [vmem:[#allocation2 + $0x70] sm:$0x7] %v898
  %v900 = vld [vmem:[#allocation2 + $0x74] sm:$0x7]
  %v901 = vsel %vm812, 0, %v900
  %902 = vst [vmem:[#allocation2 + $0x74] sm:$0x7] %v901
  %v903 = vld [vmem:[#allocation2 + $0x78] sm:$0x7]
  %v904 = vsel %vm812, 0, %v903
  %905 = vst [vmem:[#allocation2 + $0x78] sm:$0x7] %v904
  %v906 = vld [vmem:[#allocation2 + $0x7c] sm:$0x7]
  %v907 = vsel %vm812, 0, %v906
  %908 = vst [vmem:[#allocation2 + $0x7c] sm:$0x7] %v907
  %v909 = vld [vmem:[#allocation2 + $0x80] sm:$0x7]
  %v910 = vsel %vm812, 0, %v909
  %911 = vst [vmem:[#allocation2 + $0x80] sm:$0x7] %v910
  %v912 = vld [vmem:[#allocation2 + $0x84] sm:$0x7]
  %v913 = vsel %vm812, 0, %v912
  %914 = vst [vmem:[#allocation2 + $0x84] sm:$0x7] %v913
  %v915 = vld [vmem:[#allocation2 + $0x88] sm:$0x7]
  %v916 = vsel %vm812, 0, %v915
  %917 = vst [vmem:[#allocation2 + $0x88] sm:$0x7] %v916
  %v918 = vld [vmem:[#allocation2 + $0x8c] sm:$0x7]
  %v919 = vsel %vm812, 0, %v918
  %920 = vst [vmem:[#allocation2 + $0x8c] sm:$0x7] %v919
  %v921 = vld [vmem:[#allocation2 + $0x90] sm:$0x7]
  %v922 = vsel %vm812, 0, %v921
  %923 = vst [vmem:[#allocation2 + $0x90] sm:$0x7] %v922
  %v924 = vld [vmem:[#allocation2 + $0x94] sm:$0x7]
  %v925 = vsel %vm812, 0, %v924
  %926 = vst [vmem:[#allocation2 + $0x94] sm:$0x7] %v925
  %v927 = vld [vmem:[#allocation2 + $0x98] sm:$0x7]
  %v928 = vsel %vm812, 0, %v927
  %929 = vst [vmem:[#allocation2 + $0x98] sm:$0x7] %v928
  %v930 = vld [vmem:[#allocation2 + $0x9c] sm:$0x7]
  %v931 = vsel %vm812, 0, %v930
  %932 = vst [vmem:[#allocation2 + $0x9c] sm:$0x7] %v931
  %933 = vst [vmem:[#allocation1] ss:$2 sm:$0xff] %v699
  %v934 = vld.sshfl [vmem:[#allocation1] sm:$0xff pattern:$0x75643120]
  %s936 = scalar_lea.vmem [#allocation1], 16
  %937 = vst [vmem:[%s936] ss:$2 sm:$0xff] %v703
  %v938 = vld.sshfl [vmem:[#allocation1 + $0x10] sm:$0xff pattern:$0x75643120]
  %s939 = scalar_lea.vmem [#allocation1], 32
  %940 = vst [vmem:[%s939] ss:$2 sm:$0xff] %v706
  %v941 = vld.sshfl [vmem:[#allocation1 + $0x20] sm:$0xff pattern:$0x75643120]
  %s943 = scalar_lea.vmem [#allocation1], 48
  %944 = vst [vmem:[%s943] ss:$2 sm:$0xff] %v709
  %v945 = vld.sshfl [vmem:[#allocation1 + $0x30] sm:$0xff pattern:$0x75643120]
  %946 = vst [vmem:[#allocation1] ss:$2 sm:$0xff] %v748
  %v947 = vld.sshfl [vmem:[#allocation1] sm:$0xff pattern:$0x75643120]
  %949 = vst [vmem:[%s936] ss:$2 sm:$0xff] %v751
  %v950 = vld.sshfl [vmem:[#allocation1 + $0x10] sm:$0xff pattern:$0x75643120]
  %951 = vst [vmem:[%s939] ss:$2 sm:$0xff] %v754
  %v952 = vld.sshfl [vmem:[#allocation1 + $0x20] sm:$0xff pattern:$0x75643120]
  %954 = vst [vmem:[%s943] ss:$2 sm:$0xff] %v757
  %v955 = vld.sshfl [vmem:[#allocation1 + $0x30] sm:$0xff pattern:$0x75643120]
  %v956 = vshrl.u32 %v934, 16
  %v958 = vrot.slane %v956, 7
  %v959 = vshll.u32 %v934, 16
  %v961 = vor.u32 %v958, %v959
  %v962 = vshrl.u32 %v938, 16
  %v964 = vrot.slane %v962, 7
  %v965 = vshll.u32 %v938, 16
  %v967 = vor.u32 %v964, %v965
  %v968 = vshrl.u32 %v941, 16
  %v970 = vrot.slane %v968, 7
  %v971 = vshll.u32 %v941, 16
  %v973 = vor.u32 %v970, %v971
  %v974 = vshrl.u32 %v945, 16
  %v976 = vrot.slane %v974, 7
  %v977 = vshll.u32 %v945, 16
  %v979 = vor.u32 %v976, %v977
  %v980 = vshrl.u32 %v947, 16
  %v982 = vrot.slane %v980, 7
  %v983 = vshll.u32 %v947, 16
  %v985 = vor.u32 %v982, %v983
  %v986 = vshrl.u32 %v950, 16
  %v988 = vrot.slane %v986, 7
  %v989 = vshll.u32 %v950, 16
  %v991 = vor.u32 %v988, %v989
  %v992 = vshrl.u32 %v952, 16
  %v994 = vrot.slane %v992, 7
  %v995 = vshll.u32 %v952, 16
  %v997 = vor.u32 %v994, %v995
  %v998 = vshrl.u32 %v955, 16
  %v1000 = vrot.slane %v998, 7
  %v1001 = vshll.u32 %v955, 16
  %v1003 = vor.u32 %v1000, %v1001
  %s1012 = scalar_lea.vmem [#allocation2], 4
  %vm1013 = vsmask.f32 2306
  %vm1014 = vmand %vm810, %vm1013
  %v1015 = vld [vmem:[%s1012] sm:$0x7]
  %v1016 = vsel %vm1014, %v961, %v1015
  %1017 = vst [vmem:[%s1012] sm:$0x7] %v1016
  %v1018 = vld [vmem:[%s1012 + $0x4] sm:$0x7]
  %v1019 = vsel %vm1014, %v967, %v1018
  %1020 = vst [vmem:[%s1012 + $0x4] sm:$0x7] %v1019
  %v1021 = vld [vmem:[%s1012 + $0x8] sm:$0x7]
  %v1022 = vsel %vm1014, %v973, %v1021
  %1023 = vst [vmem:[%s1012 + $0x8] sm:$0x7] %v1022
  %v1024 = vld [vmem:[%s1012 + $0xc] sm:$0x7]
  %v1025 = vsel %vm1014, %v979, %v1024
  %1026 = vst [vmem:[%s1012 + $0xc] sm:$0x7] %v1025
  %v1027 = vld [vmem:[%s1012 + $0x14] sm:$0x7]
  %v1028 = vsel %vm1014, %v985, %v1027
  %1029 = vst [vmem:[%s1012 + $0x14] sm:$0x7] %v1028
  %v1030 = vld [vmem:[%s1012 + $0x18] sm:$0x7]
  %v1031 = vsel %vm1014, %v991, %v1030
  %1032 = vst [vmem:[%s1012 + $0x18] sm:$0x7] %v1031
  %v1033 = vld [vmem:[%s1012 + $0x1c] sm:$0x7]
  %v1034 = vsel %vm1014, %v997, %v1033
  %1035 = vst [vmem:[%s1012 + $0x1c] sm:$0x7] %v1034
  %v1036 = vld [vmem:[%s1012 + $0x20] sm:$0x7]
  %v1037 = vsel %vm1014, %v1003, %v1036
  %1038 = vst [vmem:[%s1012 + $0x20] sm:$0x7] %v1037
  %s1039 = scalar_lea.vmem [#allocation2], 44
  %vm1040 = vcmask 123904
  %1041 = vst.msk [vmem:[%s1039] sm:$0x3] %vm1040, %v712
  %1042 = vst.msk [vmem:[%s1039 + $0x4] sm:$0x3] %vm1040, %v715
  %1043 = vst.msk [vmem:[%s1039 + $0x8] sm:$0x3] %vm1040, %v718
  %1044 = vst.msk [vmem:[%s1039 + $0xc] sm:$0x3] %vm1040, %v721
  %1045 = vst.msk [vmem:[%s1039 + $0x14] sm:$0x3] %vm1040, %v760
  %1046 = vst.msk [vmem:[%s1039 + $0x18] sm:$0x3] %vm1040, %v763
  %1047 = vst.msk [vmem:[%s1039 + $0x1c] sm:$0x3] %vm1040, %v766
  %1048 = vst.msk [vmem:[%s1039 + $0x20] sm:$0x3] %vm1040, %v769
  %1049 = vst [vmem:[#allocation1] ss:$2 sm:$0xff] %v724
  %v1050 = vld.sshfl [vmem:[#allocation1] sm:$0xff pattern:$0x75643120]
  %s1052 = scalar_lea.vmem [#allocation1], 16
  %1053 = vst [vmem:[%s1052] ss:$2 sm:$0xff] %v727
  %v1054 = vld.sshfl [vmem:[#allocation1 + $0x10] sm:$0xff pattern:$0x75643120]
  %s1055 = scalar_lea.vmem [#allocation1], 32
  %1056 = vst [vmem:[%s1055] ss:$2 sm:$0xff] %v730
  %v1057 = vld.sshfl [vmem:[#allocation1 + $0x20] sm:$0xff pattern:$0x75643120]
  %s1059 = scalar_lea.vmem [#allocation1], 48
  %1060 = vst [vmem:[%s1059] ss:$2 sm:$0xff] %v733
  %v1061 = vld.sshfl [vmem:[#allocation1 + $0x30] sm:$0xff pattern:$0x75643120]
  %1062 = vst [vmem:[#allocation1] ss:$2 sm:$0xff] %v772
  %v1063 = vld.sshfl [vmem:[#allocation1] sm:$0xff pattern:$0x75643120]
  %1065 = vst [vmem:[%s1052] ss:$2 sm:$0xff] %v775
  %v1066 = vld.sshfl [vmem:[#allocation1 + $0x10] sm:$0xff pattern:$0x75643120]
  %1067 = vst [vmem:[%s1055] ss:$2 sm:$0xff] %v778
  %v1068 = vld.sshfl [vmem:[#allocation1 + $0x20] sm:$0xff pattern:$0x75643120]
  %1070 = vst [vmem:[%s1059] ss:$2 sm:$0xff] %v781
  %v1071 = vld.sshfl [vmem:[#allocation1 + $0x30] sm:$0xff pattern:$0x75643120]
  %v1072 = vshrl.u32 %v1050, 16
  %v1074 = vrot.slane %v1072, 7
  %v1075 = vshll.u32 %v1050, 16
  %v1077 = vor.u32 %v1074, %v1075
  %v1078 = vshrl.u32 %v1054, 16
  %v1080 = vrot.slane %v1078, 7
  %v1081 = vshll.u32 %v1054, 16
  %v1083 = vor.u32 %v1080, %v1081
  %v1084 = vshrl.u32 %v1057, 16
  %v1086 = vrot.slane %v1084, 7
  %v1087 = vshll.u32 %v1057, 16
  %v1089 = vor.u32 %v1086, %v1087
  %v1090 = vshrl.u32 %v1061, 16
  %v1092 = vrot.slane %v1090, 7
  %v1093 = vshll.u32 %v1061, 16
  %v1095 = vor.u32 %v1092, %v1093
  %v1096 = vshrl.u32 %v1063, 16
  %v1098 = vrot.slane %v1096, 7
  %v1099 = vshll.u32 %v1063, 16
  %v1101 = vor.u32 %v1098, %v1099
  %v1102 = vshrl.u32 %v1066, 16
  %v1104 = vrot.slane %v1102, 7
  %v1105 = vshll.u32 %v1066, 16
  %v1107 = vor.u32 %v1104, %v1105
  %v1108 = vshrl.u32 %v1068, 16
  %v1110 = vrot.slane %v1108, 7
  %v1111 = vshll.u32 %v1068, 16
  %v1113 = vor.u32 %v1110, %v1111
  %v1114 = vshrl.u32 %v1071, 16
  %v1116 = vrot.slane %v1114, 7
  %v1117 = vshll.u32 %v1071, 16
  %v1119 = vor.u32 %v1116, %v1117
  %s1128 = scalar_lea.vmem [#allocation2], 80
  %v1129 = vld [vmem:[%s1128] sm:$0x7]
  %v1130 = vsel %vm1014, %v1077, %v1129
  %1131 = vst [vmem:[%s1128] sm:$0x7] %v1130
  %v1132 = vld [vmem:[%s1128 + $0x4] sm:$0x7]
  %v1133 = vsel %vm1014, %v1083, %v1132
  %1134 = vst [vmem:[%s1128 + $0x4] sm:$0x7] %v1133
  %v1135 = vld [vmem:[%s1128 + $0x8] sm:$0x7]
  %v1136 = vsel %vm1014, %v1089, %v1135
  %1137 = vst [vmem:[%s1128 + $0x8] sm:$0x7] %v1136
  %v1138 = vld [vmem:[%s1128 + $0xc] sm:$0x7]
  %v1139 = vsel %vm1014, %v1095, %v1138
  %1140 = vst [vmem:[%s1128 + $0xc] sm:$0x7] %v1139
  %v1141 = vld [vmem:[%s1128 + $0x14] sm:$0x7]
  %v1142 = vsel %vm1014, %v1101, %v1141
  %1143 = vst [vmem:[%s1128 + $0x14] sm:$0x7] %v1142
  %v1144 = vld [vmem:[%s1128 + $0x18] sm:$0x7]
  %v1145 = vsel %vm1014, %v1107, %v1144
  %1146 = vst [vmem:[%s1128 + $0x18] sm:$0x7] %v1145
  %v1147 = vld [vmem:[%s1128 + $0x1c] sm:$0x7]
  %v1148 = vsel %vm1014, %v1113, %v1147
  %1149 = vst [vmem:[%s1128 + $0x1c] sm:$0x7] %v1148
  %v1150 = vld [vmem:[%s1128 + $0x20] sm:$0x7]
  %v1151 = vsel %vm1014, %v1119, %v1150
  %1152 = vst [vmem:[%s1128 + $0x20] sm:$0x7] %v1151
  %s1153 = scalar_lea.vmem [#allocation2], 120
  %1154 = vst.msk [vmem:[%s1153] sm:$0x3] %vm1040, %v736
  %1155 = vst.msk [vmem:[%s1153 + $0x4] sm:$0x3] %vm1040, %v739
  %1156 = vst.msk [vmem:[%s1153 + $0x8] sm:$0x3] %vm1040, %v742
  %1157 = vst.msk [vmem:[%s1153 + $0xc] sm:$0x3] %vm1040, %v745
  %1158 = vst.msk [vmem:[%s1153 + $0x14] sm:$0x3] %vm1040, %v784
  %1159 = vst.msk [vmem:[%s1153 + $0x18] sm:$0x3] %vm1040, %v787
  %1160 = vst.msk [vmem:[%s1153 + $0x1c] sm:$0x3] %vm1040, %v790
  %1161 = vst.msk [vmem:[%s1153 + $0x20] sm:$0x3] %vm1040, %v793
  %v1162 = vld [vmem:[%s3] sm:$0xf]
  %v1163 = vld [vmem:[%s3 + $0x4] sm:$0xf]
  %v1164 = vld [vmem:[%s3 + $0x8] sm:$0xf]
  %v1165 = vld [vmem:[%s3 + $0xc] sm:$0xf]
  %v1166 = vld [vmem:[%s3 + $0x10] sm:$0xf]
  %v1167 = vld [vmem:[%s3 + $0x14] sm:$0xf]
  %v1168 = vld [vmem:[%s3 + $0x18] sm:$0xf]
  %v1169 = vld [vmem:[%s3 + $0x1c] sm:$0xf]
  %v1170 = vld [vmem:[%s3 + $0x20] sm:$0xf]
  %v1171 = vld [vmem:[%s3 + $0x24] sm:$0xf]
  %v1172 = vld [vmem:[%s3 + $0x28] sm:$0xf]
  %v1173 = vld [vmem:[%s3 + $0x2c] sm:$0xf]
  %v1174 = vld [vmem:[%s3 + $0x30] sm:$0xf]
  %v1175 = vld [vmem:[%s3 + $0x34] sm:$0xf]
  %v1176 = vld [vmem:[%s3 + $0x38] sm:$0xf]
  %v1177 = vld [vmem:[%s3 + $0x3c] sm:$0xf]
  %v1178 = vld [vmem:[%s3 + $0x40] sm:$0xf]
  %v1179 = vld [vmem:[%s3 + $0x44] sm:$0xf]
  %v1180 = vld [vmem:[#allocation2] sm:$0x3]
  %v1181 = vld [vmem:[#allocation2 + $0x4] sm:$0x3]
  %v1182 = vld [vmem:[#allocation2 + $0x8] sm:$0x3]
  %v1183 = vld [vmem:[#allocation2 + $0xc] sm:$0x3]
  %v1184 = vld [vmem:[#allocation2 + $0x14] sm:$0x3]
  %v1185 = vld [vmem:[#allocation2 + $0x18] sm:$0x3]
  %v1186 = vld [vmem:[#allocation2 + $0x1c] sm:$0x3]
  %v1187 = vld [vmem:[#allocation2 + $0x20] sm:$0x3]
  %s1188 = scalar_lea.vmem [#allocation2], 40
  %v1189 = vld [vmem:[%s1188] sm:$0x3]
  %v1190 = vld [vmem:[%s1188 + $0x4] sm:$0x3]
  %v1191 = vld [vmem:[%s1188 + $0x8] sm:$0x3]
  %v1192 = vld [vmem:[%s1188 + $0xc] sm:$0x3]
  %v1193 = vld [vmem:[%s1188 + $0x14] sm:$0x3]
  %v1194 = vld [vmem:[%s1188 + $0x18] sm:$0x3]
  %v1195 = vld [vmem:[%s1188 + $0x1c] sm:$0x3]
  %v1196 = vld [vmem:[%s1188 + $0x20] sm:$0x3]
  %v1197 = vld [vmem:[#allocation2] sm:$0x7]
  %v1198 = vld [vmem:[#allocation2 + $0x4] sm:$0x7]
  %v1199 = vld [vmem:[#allocation2 + $0x8] sm:$0x7]
  %v1200 = vld [vmem:[#allocation2 + $0xc] sm:$0x7]
  %v1201 = vld [vmem:[#allocation2 + $0x14] sm:$0x7]
  %v1202 = vld [vmem:[#allocation2 + $0x18] sm:$0x7]
  %v1203 = vld [vmem:[#allocation2 + $0x1c] sm:$0x7]
  %v1204 = vld [vmem:[#allocation2 + $0x20] sm:$0x7]
  %v1205 = vld [vmem:[%s1128] sm:$0x3]
  %v1206 = vld [vmem:[%s1128 + $0x4] sm:$0x3]
  %v1207 = vld [vmem:[%s1128 + $0x8] sm:$0x3]
  %v1208 = vld [vmem:[%s1128 + $0xc] sm:$0x3]
  %v1209 = vld [vmem:[%s1128 + $0x14] sm:$0x3]
  %v1210 = vld [vmem:[%s1128 + $0x18] sm:$0x3]
  %v1211 = vld [vmem:[%s1128 + $0x1c] sm:$0x3]
  %v1212 = vld [vmem:[%s1128 + $0x20] sm:$0x3]
  %v1213 = vld [vmem:[%s1153] sm:$0x3]
  %v1214 = vld [vmem:[%s1153 + $0x4] sm:$0x3]
  %v1215 = vld [vmem:[%s1153 + $0x8] sm:$0x3]
  %v1216 = vld [vmem:[%s1153 + $0xc] sm:$0x3]
  %v1217 = vld [vmem:[%s1153 + $0x14] sm:$0x3]
  %v1218 = vld [vmem:[%s1153 + $0x18] sm:$0x3]
  %v1219 = vld [vmem:[%s1153 + $0x1c] sm:$0x3]
  %v1220 = vld [vmem:[%s1153 + $0x20] sm:$0x3]
  %v1221 = vld [vmem:[%s1128] sm:$0x7]
  %v1222 = vld [vmem:[%s1128 + $0x4] sm:$0x7]
  %v1223 = vld [vmem:[%s1128 + $0x8] sm:$0x7]
  %v1224 = vld [vmem:[%s1128 + $0xc] sm:$0x7]
  %v1225 = vld [vmem:[%s1128 + $0x14] sm:$0x7]
  %v1226 = vld [vmem:[%s1128 + $0x18] sm:$0x7]
  %v1227 = vld [vmem:[%s1128 + $0x1c] sm:$0x7]
  %v1228 = vld [vmem:[%s1128 + $0x20] sm:$0x7]
  %v1229 = vld [vmem:[%s1012] sm:$0x3]
  %v1230 = vld [vmem:[%s1012 + $0x4] sm:$0x3]
  %v1231 = vld [vmem:[%s1012 + $0x8] sm:$0x3]
  %v1232 = vld [vmem:[%s1012 + $0xc] sm:$0x3]
  %v1233 = vld [vmem:[%s1012 + $0x14] sm:$0x3]
  %v1234 = vld [vmem:[%s1012 + $0x18] sm:$0x3]
  %v1235 = vld [vmem:[%s1012 + $0x1c] sm:$0x3]
  %v1236 = vld [vmem:[%s1012 + $0x20] sm:$0x3]
  %v1237 = vld [vmem:[%s1039] sm:$0x3]
  %v1238 = vld [vmem:[%s1039 + $0x4] sm:$0x3]
  %v1239 = vld [vmem:[%s1039 + $0x8] sm:$0x3]
  %v1240 = vld [vmem:[%s1039 + $0xc] sm:$0x3]
  %v1241 = vld [vmem:[%s1039 + $0x14] sm:$0x3]
  %v1242 = vld [vmem:[%s1039 + $0x18] sm:$0x3]
  %v1243 = vld [vmem:[%s1039 + $0x1c] sm:$0x3]
  %v1244 = vld [vmem:[%s1039 + $0x20] sm:$0x3]
  %v1245 = vld [vmem:[%s1012] sm:$0x7]
  %v1246 = vld [vmem:[%s1012 + $0x4] sm:$0x7]
  %v1247 = vld [vmem:[%s1012 + $0x8] sm:$0x7]
  %v1248 = vld [vmem:[%s1012 + $0xc] sm:$0x7]
  %v1249 = vld [vmem:[%s1012 + $0x14] sm:$0x7]
  %v1250 = vld [vmem:[%s1012 + $0x18] sm:$0x7]
  %v1251 = vld [vmem:[%s1012 + $0x1c] sm:$0x7]
  %v1252 = vld [vmem:[%s1012 + $0x20] sm:$0x7]
  %v1261 = vunpack.c.l.b16 %v1189
  %v1262 = vunpack.c.l.b16 %v1190
  %v1263 = vunpack.c.l.b16 %v1191
  %v1264 = vunpack.c.l.b16 %v1192
  %v1265 = vunpack.c.l.b16 %v1193
  %v1266 = vunpack.c.l.b16 %v1194
  %v1267 = vunpack.c.l.b16 %v1195
  %v1268 = vunpack.c.l.b16 %v1196
  %v1269 = vpack.c.b16 %v1261, %v1261
  %v1270 = vpack.c.b16 %v1262, %v1262
  %v1271 = vpack.c.b16 %v1263, %v1263
  %v1272 = vpack.c.b16 %v1264, %v1264
  %v1273 = vpack.c.b16 %v1265, %v1265
  %v1274 = vpack.c.b16 %v1266, %v1266
  %v1275 = vpack.c.b16 %v1267, %v1267
  %v1276 = vpack.c.b16 %v1268, %v1268
  %1277 = vrot.lane.b32.xlu0 %v1269, 16
  %v1278 = vpop.permute.xlu0 %1277
  %1279 = vrot.lane.b32.xlu0 %v1270, 16
  %v1280 = vpop.permute.xlu0 %1279
  %1281 = vrot.lane.b32.xlu0 %v1271, 16
  %v1282 = vpop.permute.xlu0 %1281
  %1283 = vrot.lane.b32.xlu0 %v1272, 16
  %v1284 = vpop.permute.xlu0 %1283
  %1285 = vrot.lane.b32.xlu0 %v1273, 16
  %v1286 = vpop.permute.xlu0 %1285
  %1287 = vrot.lane.b32.xlu0 %v1274, 16
  %v1288 = vpop.permute.xlu0 %1287
  %1289 = vrot.lane.b32.xlu0 %v1275, 16
  %v1290 = vpop.permute.xlu0 %1289
  %1291 = vrot.lane.b32.xlu0 %v1276, 16
  %v1292 = vpop.permute.xlu0 %1291
  %v1301 = vunpack.c.l.b16 %v1197
  %v1302 = vunpack.c.l.b16 %v1198
  %v1303 = vunpack.c.l.b16 %v1199
  %v1304 = vunpack.c.l.b16 %v1200
  %v1305 = vunpack.c.l.b16 %v1201
  %v1306 = vunpack.c.l.b16 %v1202
  %v1307 = vunpack.c.l.b16 %v1203
  %v1308 = vunpack.c.l.b16 %v1204
  %v1309 = vpack.c.b16 %v1301, %v1301
  %v1310 = vpack.c.b16 %v1302, %v1302
  %v1311 = vpack.c.b16 %v1303, %v1303
  %v1312 = vpack.c.b16 %v1304, %v1304
  %v1313 = vpack.c.b16 %v1305, %v1305
  %v1314 = vpack.c.b16 %v1306, %v1306
  %v1315 = vpack.c.b16 %v1307, %v1307
  %v1316 = vpack.c.b16 %v1308, %v1308
  %v1318 = vshrl.u32 %v1309, 16
  %v1320 = vshll.u32 %v1309, 16
  %v1322 = vrot.slane %v1320, 1
  %v1323 = vor.u32 %v1318, %v1322
  %v1325 = vshrl.u32 %v1310, 16
  %v1327 = vshll.u32 %v1310, 16
  %v1329 = vrot.slane %v1327, 1
  %v1330 = vor.u32 %v1325, %v1329
  %v1332 = vshrl.u32 %v1311, 16
  %v1334 = vshll.u32 %v1311, 16
  %v1336 = vrot.slane %v1334, 1
  %v1337 = vor.u32 %v1332, %v1336
  %v1339 = vshrl.u32 %v1312, 16
  %v1341 = vshll.u32 %v1312, 16
  %v1343 = vrot.slane %v1341, 1
  %v1344 = vor.u32 %v1339, %v1343
  %v1346 = vshrl.u32 %v1313, 16
  %v1348 = vshll.u32 %v1313, 16
  %v1350 = vrot.slane %v1348, 1
  %v1351 = vor.u32 %v1346, %v1350
  %v1353 = vshrl.u32 %v1314, 16
  %v1355 = vshll.u32 %v1314, 16
  %v1357 = vrot.slane %v1355, 1
  %v1358 = vor.u32 %v1353, %v1357
  %v1360 = vshrl.u32 %v1315, 16
  %v1362 = vshll.u32 %v1315, 16
  %v1364 = vrot.slane %v1362, 1
  %v1365 = vor.u32 %v1360, %v1364
  %v1367 = vshrl.u32 %v1316, 16
  %v1369 = vshll.u32 %v1316, 16
  %v1371 = vrot.slane %v1369, 1
  %v1372 = vor.u32 %v1367, %v1371
  %1373 = vrot.lane.b32.xlu0 %v1323, 32
  %v1374 = vpop.permute.xlu0 %1373
  %1375 = vrot.lane.b32.xlu0 %v1330, 32
  %v1376 = vpop.permute.xlu0 %1375
  %1377 = vrot.lane.b32.xlu0 %v1337, 32
  %v1378 = vpop.permute.xlu0 %1377
  %1379 = vrot.lane.b32.xlu0 %v1344, 32
  %v1380 = vpop.permute.xlu0 %1379
  %1381 = vrot.lane.b32.xlu0 %v1351, 32
  %v1382 = vpop.permute.xlu0 %1381
  %1383 = vrot.lane.b32.xlu0 %v1358, 32
  %v1384 = vpop.permute.xlu0 %1383
  %1385 = vrot.lane.b32.xlu0 %v1365, 32
  %v1386 = vpop.permute.xlu0 %1385
  %1387 = vrot.lane.b32.xlu0 %v1372, 32
  %v1388 = vpop.permute.xlu0 %1387
  %v1397 = vunpack.c.l.b16 %v1205
  %v1398 = vunpack.c.l.b16 %v1206
  %v1399 = vunpack.c.l.b16 %v1207
  %v1400 = vunpack.c.l.b16 %v1208
  %v1401 = vunpack.c.l.b16 %v1209
  %v1402 = vunpack.c.l.b16 %v1210
  %v1403 = vunpack.c.l.b16 %v1211
  %v1404 = vunpack.c.l.b16 %v1212
  %v1405 = vpack.c.b16 %v1397, %v1397
  %v1406 = vpack.c.b16 %v1398, %v1398
  %v1407 = vpack.c.b16 %v1399, %v1399
  %v1408 = vpack.c.b16 %v1400, %v1400
  %v1409 = vpack.c.b16 %v1401, %v1401
  %v1410 = vpack.c.b16 %v1402, %v1402
  %v1411 = vpack.c.b16 %v1403, %v1403
  %v1412 = vpack.c.b16 %v1404, %v1404
  %1413 = vrot.lane.b32.xlu0 %v1405, 48
  %v1414 = vpop.permute.xlu0 %1413
  %1415 = vrot.lane.b32.xlu0 %v1406, 48
  %v1416 = vpop.permute.xlu0 %1415
  %1417 = vrot.lane.b32.xlu0 %v1407, 48
  %v1418 = vpop.permute.xlu0 %1417
  %1419 = vrot.lane.b32.xlu0 %v1408, 48
  %v1420 = vpop.permute.xlu0 %1419
  %1421 = vrot.lane.b32.xlu0 %v1409, 48
  %v1422 = vpop.permute.xlu0 %1421
  %1423 = vrot.lane.b32.xlu0 %v1410, 48
  %v1424 = vpop.permute.xlu0 %1423
  %1425 = vrot.lane.b32.xlu0 %v1411, 48
  %v1426 = vpop.permute.xlu0 %1425
  %1427 = vrot.lane.b32.xlu0 %v1412, 48
  %v1428 = vpop.permute.xlu0 %1427
  %v1437 = vunpack.c.l.b16 %v1213
  %v1438 = vunpack.c.l.b16 %v1214
  %v1439 = vunpack.c.l.b16 %v1215
  %v1440 = vunpack.c.l.b16 %v1216
  %v1441 = vunpack.c.l.b16 %v1217
  %v1442 = vunpack.c.l.b16 %v1218
  %v1443 = vunpack.c.l.b16 %v1219
  %v1444 = vunpack.c.l.b16 %v1220
  %v1445 = vpack.c.b16 %v1437, %v1437
  %v1446 = vpack.c.b16 %v1438, %v1438
  %v1447 = vpack.c.b16 %v1439, %v1439
  %v1448 = vpack.c.b16 %v1440, %v1440
  %v1449 = vpack.c.b16 %v1441, %v1441
  %v1450 = vpack.c.b16 %v1442, %v1442
  %v1451 = vpack.c.b16 %v1443, %v1443
  %v1452 = vpack.c.b16 %v1444, %v1444
  %1453 = vrot.lane.b32.xlu0 %v1445, 64
  %v1454 = vpop.permute.xlu0 %1453
  %1455 = vrot.lane.b32.xlu0 %v1446, 64
  %v1456 = vpop.permute.xlu0 %1455
  %1457 = vrot.lane.b32.xlu0 %v1447, 64
  %v1458 = vpop.permute.xlu0 %1457
  %1459 = vrot.lane.b32.xlu0 %v1448, 64
  %v1460 = vpop.permute.xlu0 %1459
  %1461 = vrot.lane.b32.xlu0 %v1449, 64
  %v1462 = vpop.permute.xlu0 %1461
  %1463 = vrot.lane.b32.xlu0 %v1450, 64
  %v1464 = vpop.permute.xlu0 %1463
  %1465 = vrot.lane.b32.xlu0 %v1451, 64
  %v1466 = vpop.permute.xlu0 %1465
  %1467 = vrot.lane.b32.xlu0 %v1452, 64
  %v1468 = vpop.permute.xlu0 %1467
  %v1477 = vunpack.c.l.b16 %v1221
  %v1478 = vunpack.c.l.b16 %v1222
  %v1479 = vunpack.c.l.b16 %v1223
  %v1480 = vunpack.c.l.b16 %v1224
  %v1481 = vunpack.c.l.b16 %v1225
  %v1482 = vunpack.c.l.b16 %v1226
  %v1483 = vunpack.c.l.b16 %v1227
  %v1484 = vunpack.c.l.b16 %v1228
  %v1485 = vpack.c.b16 %v1477, %v1477
  %v1486 = vpack.c.b16 %v1478, %v1478
  %v1487 = vpack.c.b16 %v1479, %v1479
  %v1488 = vpack.c.b16 %v1480, %v1480
  %v1489 = vpack.c.b16 %v1481, %v1481
  %v1490 = vpack.c.b16 %v1482, %v1482
  %v1491 = vpack.c.b16 %v1483, %v1483
  %v1492 = vpack.c.b16 %v1484, %v1484
  %v1494 = vshrl.u32 %v1485, 16
  %v1496 = vshll.u32 %v1485, 16
  %v1498 = vrot.slane %v1496, 1
  %v1499 = vor.u32 %v1494, %v1498
  %v1501 = vshrl.u32 %v1486, 16
  %v1503 = vshll.u32 %v1486, 16
  %v1505 = vrot.slane %v1503, 1
  %v1506 = vor.u32 %v1501, %v1505
  %v1508 = vshrl.u32 %v1487, 16
  %v1510 = vshll.u32 %v1487, 16
  %v1512 = vrot.slane %v1510, 1
  %v1513 = vor.u32 %v1508, %v1512
  %v1515 = vshrl.u32 %v1488, 16
  %v1517 = vshll.u32 %v1488, 16
  %v1519 = vrot.slane %v1517, 1
  %v1520 = vor.u32 %v1515, %v1519
  %v1522 = vshrl.u32 %v1489, 16
  %v1524 = vshll.u32 %v1489, 16
  %v1526 = vrot.slane %v1524, 1
  %v1527 = vor.u32 %v1522, %v1526
  %v1529 = vshrl.u32 %v1490, 16
  %v1531 = vshll.u32 %v1490, 16
  %v1533 = vrot.slane %v1531, 1
  %v1534 = vor.u32 %v1529, %v1533
  %v1536 = vshrl.u32 %v1491, 16
  %v1538 = vshll.u32 %v1491, 16
  %v1540 = vrot.slane %v1538, 1
  %v1541 = vor.u32 %v1536, %v1540
  %v1543 = vshrl.u32 %v1492, 16
  %v1545 = vshll.u32 %v1492, 16
  %v1547 = vrot.slane %v1545, 1
  %v1548 = vor.u32 %v1543, %v1547
  %1549 = vrot.lane.b32.xlu0 %v1499, 80
  %v1550 = vpop.permute.xlu0 %1549
  %1551 = vrot.lane.b32.xlu0 %v1506, 80
  %v1552 = vpop.permute.xlu0 %1551
  %1553 = vrot.lane.b32.xlu0 %v1513, 80
  %v1554 = vpop.permute.xlu0 %1553
  %1555 = vrot.lane.b32.xlu0 %v1520, 80
  %v1556 = vpop.permute.xlu0 %1555
  %1557 = vrot.lane.b32.xlu0 %v1527, 80
  %v1558 = vpop.permute.xlu0 %1557
  %1559 = vrot.lane.b32.xlu0 %v1534, 80
  %v1560 = vpop.permute.xlu0 %1559
  %1561 = vrot.lane.b32.xlu0 %v1541, 80
  %v1562 = vpop.permute.xlu0 %1561
  %1563 = vrot.lane.b32.xlu0 %v1548, 80
  %v1564 = vpop.permute.xlu0 %1563
  %v1573 = vunpack.c.l.b16 %v1229
  %v1574 = vunpack.c.l.b16 %v1230
  %v1575 = vunpack.c.l.b16 %v1231
  %v1576 = vunpack.c.l.b16 %v1232
  %v1577 = vunpack.c.l.b16 %v1233
  %v1578 = vunpack.c.l.b16 %v1234
  %v1579 = vunpack.c.l.b16 %v1235
  %v1580 = vunpack.c.l.b16 %v1236
  %v1581 = vpack.c.b16 %v1573, %v1573
  %v1582 = vpack.c.b16 %v1574, %v1574
  %v1583 = vpack.c.b16 %v1575, %v1575
  %v1584 = vpack.c.b16 %v1576, %v1576
  %v1585 = vpack.c.b16 %v1577, %v1577
  %v1586 = vpack.c.b16 %v1578, %v1578
  %v1587 = vpack.c.b16 %v1579, %v1579
  %v1588 = vpack.c.b16 %v1580, %v1580
  %1589 = vrot.lane.b32.xlu0 %v1581, 96
  %v1590 = vpop.permute.xlu0 %1589
  %1591 = vrot.lane.b32.xlu0 %v1582, 96
  %v1592 = vpop.permute.xlu0 %1591
  %1593 = vrot.lane.b32.xlu0 %v1583, 96
  %v1594 = vpop.permute.xlu0 %1593
  %1595 = vrot.lane.b32.xlu0 %v1584, 96
  %v1596 = vpop.permute.xlu0 %1595
  %1597 = vrot.lane.b32.xlu0 %v1585, 96
  %v1598 = vpop.permute.xlu0 %1597
  %1599 = vrot.lane.b32.xlu0 %v1586, 96
  %v1600 = vpop.permute.xlu0 %1599
  %1601 = vrot.lane.b32.xlu0 %v1587, 96
  %v1602 = vpop.permute.xlu0 %1601
  %1603 = vrot.lane.b32.xlu0 %v1588, 96
  %v1604 = vpop.permute.xlu0 %1603
  %v1613 = vunpack.c.l.b16 %v1237
  %v1614 = vunpack.c.l.b16 %v1238
  %v1615 = vunpack.c.l.b16 %v1239
  %v1616 = vunpack.c.l.b16 %v1240
  %v1617 = vunpack.c.l.b16 %v1241
  %v1618 = vunpack.c.l.b16 %v1242
  %v1619 = vunpack.c.l.b16 %v1243
  %v1620 = vunpack.c.l.b16 %v1244
  %v1621 = vpack.c.b16 %v1613, %v1613
  %v1622 = vpack.c.b16 %v1614, %v1614
  %v1623 = vpack.c.b16 %v1615, %v1615
  %v1624 = vpack.c.b16 %v1616, %v1616
  %v1625 = vpack.c.b16 %v1617, %v1617
  %v1626 = vpack.c.b16 %v1618, %v1618
  %v1627 = vpack.c.b16 %v1619, %v1619
  %v1628 = vpack.c.b16 %v1620, %v1620
  %1629 = vrot.lane.b32.xlu0 %v1621, 112
  %v1630 = vpop.permute.xlu0 %1629
  %1631 = vrot.lane.b32.xlu0 %v1622, 112
  %v1632 = vpop.permute.xlu0 %1631
  %1633 = vrot.lane.b32.xlu0 %v1623, 112
  %v1634 = vpop.permute.xlu0 %1633
  %1635 = vrot.lane.b32.xlu0 %v1624, 112
  %v1636 = vpop.permute.xlu0 %1635
  %1637 = vrot.lane.b32.xlu0 %v1625, 112
  %v1638 = vpop.permute.xlu0 %1637
  %1639 = vrot.lane.b32.xlu0 %v1626, 112
  %v1640 = vpop.permute.xlu0 %1639
  %1641 = vrot.lane.b32.xlu0 %v1627, 112
  %v1642 = vpop.permute.xlu0 %1641
  %1643 = vrot.lane.b32.xlu0 %v1628, 112
  %v1644 = vpop.permute.xlu0 %1643
  %v1653 = vunpack.c.l.b16 %v1245
  %v1654 = vunpack.c.l.b16 %v1246
  %v1655 = vunpack.c.l.b16 %v1247
  %v1656 = vunpack.c.l.b16 %v1248
  %v1657 = vunpack.c.l.b16 %v1249
  %v1658 = vunpack.c.l.b16 %v1250
  %v1659 = vunpack.c.l.b16 %v1251
  %v1660 = vunpack.c.l.b16 %v1252
  %v1661 = vpack.c.b16 %v1653, %v1653
  %v1662 = vpack.c.b16 %v1654, %v1654
  %v1663 = vpack.c.b16 %v1655, %v1655
  %v1664 = vpack.c.b16 %v1656, %v1656
  %v1665 = vpack.c.b16 %v1657, %v1657
  %v1666 = vpack.c.b16 %v1658, %v1658
  %v1667 = vpack.c.b16 %v1659, %v1659
  %v1668 = vpack.c.b16 %v1660, %v1660
  %v1670 = vshrl.u32 %v1661, 16
  %v1672 = vshll.u32 %v1661, 16
  %v1674 = vrot.slane %v1672, 1
  %v1675 = vor.u32 %v1670, %v1674
  %v1677 = vshrl.u32 %v1662, 16
  %v1679 = vshll.u32 %v1662, 16
  %v1681 = vrot.slane %v1679, 1
  %v1682 = vor.u32 %v1677, %v1681
  %v1684 = vshrl.u32 %v1663, 16
  %v1686 = vshll.u32 %v1663, 16
  %v1688 = vrot.slane %v1686, 1
  %v1689 = vor.u32 %v1684, %v1688
  %v1691 = vshrl.u32 %v1664, 16
  %v1693 = vshll.u32 %v1664, 16
  %v1695 = vrot.slane %v1693, 1
  %v1696 = vor.u32 %v1691, %v1695
  %v1698 = vshrl.u32 %v1665, 16
  %v1700 = vshll.u32 %v1665, 16
  %v1702 = vrot.slane %v1700, 1
  %v1703 = vor.u32 %v1698, %v1702
  %v1705 = vshrl.u32 %v1666, 16
  %v1707 = vshll.u32 %v1666, 16
  %v1709 = vrot.slane %v1707, 1
  %v1710 = vor.u32 %v1705, %v1709
  %v1712 = vshrl.u32 %v1667, 16
  %v1714 = vshll.u32 %v1667, 16
  %v1716 = vrot.slane %v1714, 1
  %v1717 = vor.u32 %v1712, %v1716
  %v1719 = vshrl.u32 %v1668, 16
  %v1721 = vshll.u32 %v1668, 16
  %v1723 = vrot.slane %v1721, 1
  %v1724 = vor.u32 %v1719, %v1723
  %vm1725 = vcmask 130048
  %v1728 = vsel %vm1725, %v1180, %v1278
  %v1731 = vsel %vm1725, %v1181, %v1280
  %v1734 = vsel %vm1725, %v1182, %v1282
  %v1737 = vsel %vm1725, %v1183, %v1284
  %v1740 = vsel %vm1725, %v1184, %v1286
  %v1743 = vsel %vm1725, %v1185, %v1288
  %v1746 = vsel %vm1725, %v1186, %v1290
  %v1749 = vsel %vm1725, %v1187, %v1292
  %vm1750 = vcmask 261120
  %v1752 = vsel %vm1750, %v1728, %v1374
  %v1754 = vsel %vm1750, %v1731, %v1376
  %v1756 = vsel %vm1750, %v1734, %v1378
  %v1758 = vsel %vm1750, %v1737, %v1380
  %v1760 = vsel %vm1750, %v1740, %v1382
  %v1762 = vsel %vm1750, %v1743, %v1384
  %v1764 = vsel %vm1750, %v1746, %v1386
  %v1766 = vsel %vm1750, %v1749, %v1388
  %vm1767 = vcmask 392192
  %v1769 = vsel %vm1767, %v1752, %v1414
  %v1771 = vsel %vm1767, %v1754, %v1416
  %v1773 = vsel %vm1767, %v1756, %v1418
  %v1775 = vsel %vm1767, %v1758, %v1420
  %v1777 = vsel %vm1767, %v1760, %v1422
  %v1779 = vsel %vm1767, %v1762, %v1424
  %v1781 = vsel %vm1767, %v1764, %v1426
  %v1783 = vsel %vm1767, %v1766, %v1428
  %vm1784 = vcmask 523264
  %v1786 = vsel %vm1784, %v1769, %v1454
  %v1788 = vsel %vm1784, %v1771, %v1456
  %v1790 = vsel %vm1784, %v1773, %v1458
  %v1792 = vsel %vm1784, %v1775, %v1460
  %v1794 = vsel %vm1784, %v1777, %v1462
  %v1796 = vsel %vm1784, %v1779, %v1464
  %v1798 = vsel %vm1784, %v1781, %v1466
  %v1800 = vsel %vm1784, %v1783, %v1468
  %vm1801 = vcmask 654336
  %v1803 = vsel %vm1801, %v1786, %v1550
  %v1805 = vsel %vm1801, %v1788, %v1552
  %v1807 = vsel %vm1801, %v1790, %v1554
  %v1809 = vsel %vm1801, %v1792, %v1556
  %v1811 = vsel %vm1801, %v1794, %v1558
  %v1813 = vsel %vm1801, %v1796, %v1560
  %v1815 = vsel %vm1801, %v1798, %v1562
  %v1817 = vsel %vm1801, %v1800, %v1564
  %vm1818 = vcmask 785408
  %v1820 = vsel %vm1818, %v1803, %v1590
  %v1822 = vsel %vm1818, %v1805, %v1592
  %v1824 = vsel %vm1818, %v1807, %v1594
  %v1826 = vsel %vm1818, %v1809, %v1596
  %v1828 = vsel %vm1818, %v1811, %v1598
  %v1830 = vsel %vm1818, %v1813, %v1600
  %v1832 = vsel %vm1818, %v1815, %v1602
  %v1834 = vsel %vm1818, %v1817, %v1604
  %vm1835 = vcmask 916480
  %v1837 = vsel %vm1835, %v1820, %v1630
  %v1839 = vsel %vm1835, %v1822, %v1632
  %v1841 = vsel %vm1835, %v1824, %v1634
  %v1843 = vsel %vm1835, %v1826, %v1636
  %v1845 = vsel %vm1835, %v1828, %v1638
  %v1847 = vsel %vm1835, %v1830, %v1640
  %v1849 = vsel %vm1835, %v1832, %v1642
  %v1851 = vsel %vm1835, %v1834, %v1644
  %v1852 = vrot.slane %v1675, 6
  %v1853 = vrot.slane %v1682, 6
  %v1854 = vrot.slane %v1689, 6
  %v1855 = vrot.slane %v1696, 6
  %v1856 = vrot.slane %v1703, 6
  %v1857 = vrot.slane %v1710, 6
  %v1858 = vrot.slane %v1717, 6
  %v1859 = vrot.slane %v1724, 6
  %v1861 = vsel %vm122, %v1837, %v1852
  %v1863 = vsel %vm122, %v1839, %v1853
  %v1865 = vsel %vm122, %v1841, %v1854
  %v1867 = vsel %vm122, %v1843, %v1855
  %v1869 = vsel %vm122, %v1845, %v1856
  %v1871 = vsel %vm122, %v1847, %v1857
  %v1873 = vsel %vm122, %v1849, %v1858
  %v1875 = vsel %vm122, %v1851, %v1859
  %1876 = vst [vmem:[#allocation1] ss:$4 sm:$0xff] %v1861
  %s1877 = scalar_lea.vmem [#allocation1], 1
  %1878 = vst [vmem:[%s1877] ss:$4 sm:$0xff] %v1863
  %s1879 = scalar_lea.vmem [#allocation1], 2
  %1880 = vst [vmem:[%s1879] ss:$4 sm:$0xff] %v1865
  %s1881 = scalar_lea.vmem [#allocation1], 3
  %1882 = vst [vmem:[%s1881] ss:$4 sm:$0xff] %v1867
  %s1883 = scalar_lea.vmem [#allocation1], 32
  %1884 = vst [vmem:[%s1883] ss:$4 sm:$0xff] %v1869
  %s1885 = scalar_lea.vmem [#allocation1], 33
  %1886 = vst [vmem:[%s1885] ss:$4 sm:$0xff] %v1871
  %s1887 = scalar_lea.vmem [#allocation1], 34
  %1888 = vst [vmem:[%s1887] ss:$4 sm:$0xff] %v1873
  %s1889 = scalar_lea.vmem [#allocation1], 35
  %1890 = vst [vmem:[%s1889] ss:$4 sm:$0xff] %v1875
  %v1891 = vld.sshfl [vmem:[#allocation1] sm:$0xff pattern:$0x73625140]
  %v1892 = vld.sshfl [vmem:[#allocation1 + $0x8] sm:$0xff pattern:$0x73625140]
  %v1893 = vld.sshfl [vmem:[#allocation1 + $0x20] sm:$0xff pattern:$0x73625140]
  %v1894 = vld.sshfl [vmem:[#allocation1 + $0x28] sm:$0xff pattern:$0x73625140]
  %v1915 = vunpack.c.l.b16 %v1162
  %v1916 = vunpack.c.l.b16 %v1163
  %v1917 = vunpack.c.l.b16 %v1164
  %v1918 = vunpack.c.l.b16 %v1165
  %v1919 = vunpack.c.l.b16 %v1166
  %v1920 = vunpack.c.l.b16 %v1167
  %v1921 = vunpack.c.l.b16 %v1168
  %v1922 = vunpack.c.l.b16 %v1169
  %v1923 = vunpack.c.l.b16 %v1170
  %v1924 = vunpack.c.l.b16 %v1171
  %v1925 = vunpack.c.l.b16 %v1172
  %v1926 = vunpack.c.l.b16 %v1173
  %v1927 = vunpack.c.l.b16 %v1174
  %v1928 = vunpack.c.l.b16 %v1175
  %v1929 = vunpack.c.l.b16 %v1176
  %v1930 = vunpack.c.l.b16 %v1177
  %v1931 = vunpack.c.l.b16 %v1178
  %v1932 = vunpack.c.l.b16 %v1179
  %v1933 = vpack.c.b16 %v1916, %v1915
  %v1934 = vpack.c.b16 %v1918, %v1917
  %v1935 = vpack.c.b16 %v1920, %v1919
  %v1936 = vpack.c.b16 %v1922, %v1921
  %v1937 = vpack.c.b16 %v1924, %v1923
  %v1938 = vpack.c.b16 %v1926, %v1925
  %v1939 = vpack.c.b16 %v1928, %v1927
  %v1940 = vpack.c.b16 %v1930, %v1929
  %v1941 = vpack.c.b16 %v1932, %v1931
  %v1951 = vsel %vm1725, %v1892, 0
  %v1953 = vsel %vm1725, %v1894, 0
  %1955 = vmatpush.bf16.msra.mxu0 %v1940
  %1956 = vmatpush.bf16.msra.mxu0 %v1939
  %1957 = vmatpush.bf16.msra.mxu0 %v1938
  %1958 = vmatpush.bf16.msra.mxu0 %v1937
  %1959 = vmatpush.bf16.msra.mxu0 %v1936
  %1960 = vmatpush.bf16.msra.mxu0 %v1935
  %1961 = vmatpush.bf16.msra.mxu0 %v1934
  %1962 = vmatpush.bf16.msra.mxu0 %v1933
  %1963 = vmatmul.bf16.gmra.mxu0 %v1891
  %v1964 = vpop.f32.mrf.mxu0
  %v1965 = vadd.f32 0.0, %v1964
  %v1966 = vpop.f32.mrf.mxu0
  %v1967 = vadd.f32 0.0, %v1966
  %1968 = vmatmul.bf16.gmra.mxu0 %v1893
  %v1969 = vpop.f32.mrf.mxu0
  %v1970 = vadd.f32 0.0, %v1969
  %v1971 = vpop.f32.mrf.mxu0
  %v1972 = vadd.f32 0.0, %v1971
  %1973 = vdwg.mxu0
  %1974 = vmatpush.bf16.msra.mxu0 0
  %1975 = vmatpush.bf16.msra.mxu0 0
  %1976 = vmatpush.bf16.msra.mxu0 0
  %1977 = vmatpush.bf16.msra.mxu0 0
  %1978 = vmatpush.bf16.msra.mxu0 0
  %1979 = vmatpush.bf16.msra.mxu0 0
  %1980 = vmatpush.bf16.msra.mxu0 0
  %1981 = vmatpush.bf16.msra.mxu0 %v1941
  %1982 = vmatmul.bf16.gmra.mxu0 %v1951
  %v1983 = vpop.f32.mrf.mxu0
  %v1984 = vadd.f32 %v1965, %v1983
  %v1985 = vpop.f32.mrf.mxu0
  %v1986 = vadd.f32 %v1967, %v1985
  %1987 = vmatmul.bf16.gmra.mxu0 %v1953
  %v1988 = vpop.f32.mrf.mxu0
  %v1989 = vadd.f32 %v1970, %v1988
  %v1990 = vpop.f32.mrf.mxu0
  %v1991 = vadd.f32 %v1972, %v1990
  %1992 = vdwg.mxu0
  %v1993 = vld [vmem:[%s1188] sm:$0x7]
  %v1994 = vld [vmem:[%s1188 + $0x4] sm:$0x7]
  %v1995 = vld [vmem:[%s1188 + $0x8] sm:$0x7]
  %v1996 = vld [vmem:[%s1188 + $0xc] sm:$0x7]
  %v1997 = vld [vmem:[%s1188 + $0x14] sm:$0x7]
  %v1998 = vld [vmem:[%s1188 + $0x18] sm:$0x7]
  %v1999 = vld [vmem:[%s1188 + $0x1c] sm:$0x7]
  %v2000 = vld [vmem:[%s1188 + $0x20] sm:$0x7]
  %v2001 = vld [vmem:[%s1153] sm:$0x7]
  %v2002 = vld [vmem:[%s1153 + $0x4] sm:$0x7]
  %v2003 = vld [vmem:[%s1153 + $0x8] sm:$0x7]
  %v2004 = vld [vmem:[%s1153 + $0xc] sm:$0x7]
  %v2005 = vld [vmem:[%s1153 + $0x14] sm:$0x7]
  %v2006 = vld [vmem:[%s1153 + $0x18] sm:$0x7]
  %v2007 = vld [vmem:[%s1153 + $0x1c] sm:$0x7]
  %v2008 = vld [vmem:[%s1153 + $0x20] sm:$0x7]
  %v2009 = vld [vmem:[%s1039] sm:$0x7]
  %v2010 = vld [vmem:[%s1039 + $0x4] sm:$0x7]
  %v2011 = vld [vmem:[%s1039 + $0x8] sm:$0x7]
  %v2012 = vld [vmem:[%s1039 + $0xc] sm:$0x7]
  %v2013 = vld [vmem:[%s1039 + $0x14] sm:$0x7]
  %v2014 = vld [vmem:[%s1039 + $0x18] sm:$0x7]
  %v2015 = vld [vmem:[%s1039 + $0x1c] sm:$0x7]
  %v2016 = vld [vmem:[%s1039 + $0x20] sm:$0x7]
  %2017 = vrot.lane.b32.xlu0 %v1323, 16
  %v2018 = vpop.permute.xlu0 %2017
  %2019 = vrot.lane.b32.xlu0 %v1330, 16
  %v2020 = vpop.permute.xlu0 %2019
  %2021 = vrot.lane.b32.xlu0 %v1337, 16
  %v2022 = vpop.permute.xlu0 %2021
  %2023 = vrot.lane.b32.xlu0 %v1344, 16
  %v2024 = vpop.permute.xlu0 %2023
  %2025 = vrot.lane.b32.xlu0 %v1351, 16
  %v2026 = vpop.permute.xlu0 %2025
  %2027 = vrot.lane.b32.xlu0 %v1358, 16
  %v2028 = vpop.permute.xlu0 %2027
  %2029 = vrot.lane.b32.xlu0 %v1365, 16
  %v2030 = vpop.permute.xlu0 %2029
  %2031 = vrot.lane.b32.xlu0 %v1372, 16
  %v2032 = vpop.permute.xlu0 %2031
  %v2041 = vunpack.c.l.b16 %v1993
  %v2042 = vunpack.c.l.b16 %v1994
  %v2043 = vunpack.c.l.b16 %v1995
  %v2044 = vunpack.c.l.b16 %v1996
  %v2045 = vunpack.c.l.b16 %v1997
  %v2046 = vunpack.c.l.b16 %v1998
  %v2047 = vunpack.c.l.b16 %v1999
  %v2048 = vunpack.c.l.b16 %v2000
  %v2049 = vpack.c.b16 %v2041, %v2041
  %v2050 = vpack.c.b16 %v2042, %v2042
  %v2051 = vpack.c.b16 %v2043, %v2043
  %v2052 = vpack.c.b16 %v2044, %v2044
  %v2053 = vpack.c.b16 %v2045, %v2045
  %v2054 = vpack.c.b16 %v2046, %v2046
  %v2055 = vpack.c.b16 %v2047, %v2047
  %v2056 = vpack.c.b16 %v2048, %v2048
  %v2058 = vshrl.u32 %v2049, 16
  %v2060 = vshll.u32 %v2049, 16
  %v2062 = vrot.slane %v2060, 1
  %v2063 = vor.u32 %v2058, %v2062
  %v2065 = vshrl.u32 %v2050, 16
  %v2067 = vshll.u32 %v2050, 16
  %v2069 = vrot.slane %v2067, 1
  %v2070 = vor.u32 %v2065, %v2069
  %v2072 = vshrl.u32 %v2051, 16
  %v2074 = vshll.u32 %v2051, 16
  %v2076 = vrot.slane %v2074, 1
  %v2077 = vor.u32 %v2072, %v2076
  %v2079 = vshrl.u32 %v2052, 16
  %v2081 = vshll.u32 %v2052, 16
  %v2083 = vrot.slane %v2081, 1
  %v2084 = vor.u32 %v2079, %v2083
  %v2086 = vshrl.u32 %v2053, 16
  %v2088 = vshll.u32 %v2053, 16
  %v2090 = vrot.slane %v2088, 1
  %v2091 = vor.u32 %v2086, %v2090
  %v2093 = vshrl.u32 %v2054, 16
  %v2095 = vshll.u32 %v2054, 16
  %v2097 = vrot.slane %v2095, 1
  %v2098 = vor.u32 %v2093, %v2097
  %v2100 = vshrl.u32 %v2055, 16
  %v2102 = vshll.u32 %v2055, 16
  %v2104 = vrot.slane %v2102, 1
  %v2105 = vor.u32 %v2100, %v2104
  %v2107 = vshrl.u32 %v2056, 16
  %v2109 = vshll.u32 %v2056, 16
  %v2111 = vrot.slane %v2109, 1
  %v2112 = vor.u32 %v2107, %v2111
  %2113 = vrot.lane.b32.xlu0 %v2063, 32
  %v2114 = vpop.permute.xlu0 %2113
  %2115 = vrot.lane.b32.xlu0 %v2070, 32
  %v2116 = vpop.permute.xlu0 %2115
  %2117 = vrot.lane.b32.xlu0 %v2077, 32
  %v2118 = vpop.permute.xlu0 %2117
  %2119 = vrot.lane.b32.xlu0 %v2084, 32
  %v2120 = vpop.permute.xlu0 %2119
  %2121 = vrot.lane.b32.xlu0 %v2091, 32
  %v2122 = vpop.permute.xlu0 %2121
  %2123 = vrot.lane.b32.xlu0 %v2098, 32
  %v2124 = vpop.permute.xlu0 %2123
  %2125 = vrot.lane.b32.xlu0 %v2105, 32
  %v2126 = vpop.permute.xlu0 %2125
  %2127 = vrot.lane.b32.xlu0 %v2112, 32
  %v2128 = vpop.permute.xlu0 %2127
  %2129 = vrot.lane.b32.xlu0 %v1445, 48
  %v2130 = vpop.permute.xlu0 %2129
  %2131 = vrot.lane.b32.xlu0 %v1446, 48
  %v2132 = vpop.permute.xlu0 %2131
  %2133 = vrot.lane.b32.xlu0 %v1447, 48
  %v2134 = vpop.permute.xlu0 %2133
  %2135 = vrot.lane.b32.xlu0 %v1448, 48
  %v2136 = vpop.permute.xlu0 %2135
  %2137 = vrot.lane.b32.xlu0 %v1449, 48
  %v2138 = vpop.permute.xlu0 %2137
  %2139 = vrot.lane.b32.xlu0 %v1450, 48
  %v2140 = vpop.permute.xlu0 %2139
  %2141 = vrot.lane.b32.xlu0 %v1451, 48
  %v2142 = vpop.permute.xlu0 %2141
  %2143 = vrot.lane.b32.xlu0 %v1452, 48
  %v2144 = vpop.permute.xlu0 %2143
  %2145 = vrot.lane.b32.xlu0 %v1499, 64
  %v2146 = vpop.permute.xlu0 %2145
  %2147 = vrot.lane.b32.xlu0 %v1506, 64
  %v2148 = vpop.permute.xlu0 %2147
  %2149 = vrot.lane.b32.xlu0 %v1513, 64
  %v2150 = vpop.permute.xlu0 %2149
  %2151 = vrot.lane.b32.xlu0 %v1520, 64
  %v2152 = vpop.permute.xlu0 %2151
  %2153 = vrot.lane.b32.xlu0 %v1527, 64
  %v2154 = vpop.permute.xlu0 %2153
  %2155 = vrot.lane.b32.xlu0 %v1534, 64
  %v2156 = vpop.permute.xlu0 %2155
  %2157 = vrot.lane.b32.xlu0 %v1541, 64
  %v2158 = vpop.permute.xlu0 %2157
  %2159 = vrot.lane.b32.xlu0 %v1548, 64
  %v2160 = vpop.permute.xlu0 %2159
  %v2169 = vunpack.c.l.b16 %v2001
  %v2170 = vunpack.c.l.b16 %v2002
  %v2171 = vunpack.c.l.b16 %v2003
  %v2172 = vunpack.c.l.b16 %v2004
  %v2173 = vunpack.c.l.b16 %v2005
  %v2174 = vunpack.c.l.b16 %v2006
  %v2175 = vunpack.c.l.b16 %v2007
  %v2176 = vunpack.c.l.b16 %v2008
  %v2177 = vpack.c.b16 %v2169, %v2169
  %v2178 = vpack.c.b16 %v2170, %v2170
  %v2179 = vpack.c.b16 %v2171, %v2171
  %v2180 = vpack.c.b16 %v2172, %v2172
  %v2181 = vpack.c.b16 %v2173, %v2173
  %v2182 = vpack.c.b16 %v2174, %v2174
  %v2183 = vpack.c.b16 %v2175, %v2175
  %v2184 = vpack.c.b16 %v2176, %v2176
  %v2186 = vshrl.u32 %v2177, 16
  %v2188 = vshll.u32 %v2177, 16
  %v2190 = vrot.slane %v2188, 1
  %v2191 = vor.u32 %v2186, %v2190
  %v2193 = vshrl.u32 %v2178, 16
  %v2195 = vshll.u32 %v2178, 16
  %v2197 = vrot.slane %v2195, 1
  %v2198 = vor.u32 %v2193, %v2197
  %v2200 = vshrl.u32 %v2179, 16
  %v2202 = vshll.u32 %v2179, 16
  %v2204 = vrot.slane %v2202, 1
  %v2205 = vor.u32 %v2200, %v2204
  %v2207 = vshrl.u32 %v2180, 16
  %v2209 = vshll.u32 %v2180, 16
  %v2211 = vrot.slane %v2209, 1
  %v2212 = vor.u32 %v2207, %v2211
  %v2214 = vshrl.u32 %v2181, 16
  %v2216 = vshll.u32 %v2181, 16
  %v2218 = vrot.slane %v2216, 1
  %v2219 = vor.u32 %v2214, %v2218
  %v2221 = vshrl.u32 %v2182, 16
  %v2223 = vshll.u32 %v2182, 16
  %v2225 = vrot.slane %v2223, 1
  %v2226 = vor.u32 %v2221, %v2225
  %v2228 = vshrl.u32 %v2183, 16
  %v2230 = vshll.u32 %v2183, 16
  %v2232 = vrot.slane %v2230, 1
  %v2233 = vor.u32 %v2228, %v2232
  %v2235 = vshrl.u32 %v2184, 16
  %v2237 = vshll.u32 %v2184, 16
  %v2239 = vrot.slane %v2237, 1
  %v2240 = vor.u32 %v2235, %v2239
  %2241 = vrot.lane.b32.xlu0 %v2191, 80
  %v2242 = vpop.permute.xlu0 %2241
  %2243 = vrot.lane.b32.xlu0 %v2198, 80
  %v2244 = vpop.permute.xlu0 %2243
  %2245 = vrot.lane.b32.xlu0 %v2205, 80
  %v2246 = vpop.permute.xlu0 %2245
  %2247 = vrot.lane.b32.xlu0 %v2212, 80
  %v2248 = vpop.permute.xlu0 %2247
  %2249 = vrot.lane.b32.xlu0 %v2219, 80
  %v2250 = vpop.permute.xlu0 %2249
  %2251 = vrot.lane.b32.xlu0 %v2226, 80
  %v2252 = vpop.permute.xlu0 %2251
  %2253 = vrot.lane.b32.xlu0 %v2233, 80
  %v2254 = vpop.permute.xlu0 %2253
  %2255 = vrot.lane.b32.xlu0 %v2240, 80
  %v2256 = vpop.permute.xlu0 %2255
  %2257 = vrot.lane.b32.xlu0 %v1621, 96
  %v2258 = vpop.permute.xlu0 %2257
  %2259 = vrot.lane.b32.xlu0 %v1622, 96
  %v2260 = vpop.permute.xlu0 %2259
  %2261 = vrot.lane.b32.xlu0 %v1623, 96
  %v2262 = vpop.permute.xlu0 %2261
  %2263 = vrot.lane.b32.xlu0 %v1624, 96
  %v2264 = vpop.permute.xlu0 %2263
  %2265 = vrot.lane.b32.xlu0 %v1625, 96
  %v2266 = vpop.permute.xlu0 %2265
  %2267 = vrot.lane.b32.xlu0 %v1626, 96
  %v2268 = vpop.permute.xlu0 %2267
  %2269 = vrot.lane.b32.xlu0 %v1627, 96
  %v2270 = vpop.permute.xlu0 %2269
  %2271 = vrot.lane.b32.xlu0 %v1628, 96
  %v2272 = vpop.permute.xlu0 %2271
  %2273 = vrot.lane.b32.xlu0 %v1675, 112
  %v2274 = vpop.permute.xlu0 %2273
  %2275 = vrot.lane.b32.xlu0 %v1682, 112
  %v2276 = vpop.permute.xlu0 %2275
  %2277 = vrot.lane.b32.xlu0 %v1689, 112
  %v2278 = vpop.permute.xlu0 %2277
  %2279 = vrot.lane.b32.xlu0 %v1696, 112
  %v2280 = vpop.permute.xlu0 %2279
  %2281 = vrot.lane.b32.xlu0 %v1703, 112
  %v2282 = vpop.permute.xlu0 %2281
  %2283 = vrot.lane.b32.xlu0 %v1710, 112
  %v2284 = vpop.permute.xlu0 %2283
  %2285 = vrot.lane.b32.xlu0 %v1717, 112
  %v2286 = vpop.permute.xlu0 %2285
  %2287 = vrot.lane.b32.xlu0 %v1724, 112
  %v2288 = vpop.permute.xlu0 %2287
  %v2297 = vunpack.c.l.b16 %v2009
  %v2298 = vunpack.c.l.b16 %v2010
  %v2299 = vunpack.c.l.b16 %v2011
  %v2300 = vunpack.c.l.b16 %v2012
  %v2301 = vunpack.c.l.b16 %v2013
  %v2302 = vunpack.c.l.b16 %v2014
  %v2303 = vunpack.c.l.b16 %v2015
  %v2304 = vunpack.c.l.b16 %v2016
  %v2305 = vpack.c.b16 %v2297, %v2297
  %v2306 = vpack.c.b16 %v2298, %v2298
  %v2307 = vpack.c.b16 %v2299, %v2299
  %v2308 = vpack.c.b16 %v2300, %v2300
  %v2309 = vpack.c.b16 %v2301, %v2301
  %v2310 = vpack.c.b16 %v2302, %v2302
  %v2311 = vpack.c.b16 %v2303, %v2303
  %v2312 = vpack.c.b16 %v2304, %v2304
  %v2314 = vshrl.u32 %v2305, 16
  %v2316 = vshll.u32 %v2305, 16
  %v2318 = vrot.slane %v2316, 1
  %v2319 = vor.u32 %v2314, %v2318
  %v2321 = vshrl.u32 %v2306, 16
  %v2323 = vshll.u32 %v2306, 16
  %v2325 = vrot.slane %v2323, 1
  %v2326 = vor.u32 %v2321, %v2325
  %v2328 = vshrl.u32 %v2307, 16
  %v2330 = vshll.u32 %v2307, 16
  %v2332 = vrot.slane %v2330, 1
  %v2333 = vor.u32 %v2328, %v2332
  %v2335 = vshrl.u32 %v2308, 16
  %v2337 = vshll.u32 %v2308, 16
  %v2339 = vrot.slane %v2337, 1
  %v2340 = vor.u32 %v2335, %v2339
  %v2342 = vshrl.u32 %v2309, 16
  %v2344 = vshll.u32 %v2309, 16
  %v2346 = vrot.slane %v2344, 1
  %v2347 = vor.u32 %v2342, %v2346
  %v2349 = vshrl.u32 %v2310, 16
  %v2351 = vshll.u32 %v2310, 16
  %v2353 = vrot.slane %v2351, 1
  %v2354 = vor.u32 %v2349, %v2353
  %v2356 = vshrl.u32 %v2311, 16
  %v2358 = vshll.u32 %v2311, 16
  %v2360 = vrot.slane %v2358, 1
  %v2361 = vor.u32 %v2356, %v2360
  %v2363 = vshrl.u32 %v2312, 16
  %v2365 = vshll.u32 %v2312, 16
  %v2367 = vrot.slane %v2365, 1
  %v2368 = vor.u32 %v2363, %v2367
  %v2371 = vsel %vm1725, %v1189, %v2018
  %v2374 = vsel %vm1725, %v1190, %v2020
  %v2377 = vsel %vm1725, %v1191, %v2022
  %v2380 = vsel %vm1725, %v1192, %v2024
  %v2383 = vsel %vm1725, %v1193, %v2026
  %v2386 = vsel %vm1725, %v1194, %v2028
  %v2389 = vsel %vm1725, %v1195, %v2030
  %v2392 = vsel %vm1725, %v1196, %v2032
  %v2394 = vsel %vm1750, %v2371, %v2114
  %v2396 = vsel %vm1750, %v2374, %v2116
  %v2398 = vsel %vm1750, %v2377, %v2118
  %v2400 = vsel %vm1750, %v2380, %v2120
  %v2402 = vsel %vm1750, %v2383, %v2122
  %v2404 = vsel %vm1750, %v2386, %v2124
  %v2406 = vsel %vm1750, %v2389, %v2126
  %v2408 = vsel %vm1750, %v2392, %v2128
  %v2410 = vsel %vm1767, %v2394, %v2130
  %v2412 = vsel %vm1767, %v2396, %v2132
  %v2414 = vsel %vm1767, %v2398, %v2134
  %v2416 = vsel %vm1767, %v2400, %v2136
  %v2418 = vsel %vm1767, %v2402, %v2138
  %v2420 = vsel %vm1767, %v2404, %v2140
  %v2422 = vsel %vm1767, %v2406, %v2142
  %v2424 = vsel %vm1767, %v2408, %v2144
  %v2426 = vsel %vm1784, %v2410, %v2146
  %v2428 = vsel %vm1784, %v2412, %v2148
  %v2430 = vsel %vm1784, %v2414, %v2150
  %v2432 = vsel %vm1784, %v2416, %v2152
  %v2434 = vsel %vm1784, %v2418, %v2154
  %v2436 = vsel %vm1784, %v2420, %v2156
  %v2438 = vsel %vm1784, %v2422, %v2158
  %v2440 = vsel %vm1784, %v2424, %v2160
  %v2442 = vsel %vm1801, %v2426, %v2242
  %v2444 = vsel %vm1801, %v2428, %v2244
  %v2446 = vsel %vm1801, %v2430, %v2246
  %v2448 = vsel %vm1801, %v2432, %v2248
  %v2450 = vsel %vm1801, %v2434, %v2250
  %v2452 = vsel %vm1801, %v2436, %v2252
  %v2454 = vsel %vm1801, %v2438, %v2254
  %v2456 = vsel %vm1801, %v2440, %v2256
  %v2458 = vsel %vm1818, %v2442, %v2258
  %v2460 = vsel %vm1818, %v2444, %v2260
  %v2462 = vsel %vm1818, %v2446, %v2262
  %v2464 = vsel %vm1818, %v2448, %v2264
  %v2466 = vsel %vm1818, %v2450, %v2266
  %v2468 = vsel %vm1818, %v2452, %v2268
  %v2470 = vsel %vm1818, %v2454, %v2270
  %v2472 = vsel %vm1818, %v2456, %v2272
  %v2474 = vsel %vm1835, %v2458, %v2274
  %v2476 = vsel %vm1835, %v2460, %v2276
  %v2478 = vsel %vm1835, %v2462, %v2278
  %v2480 = vsel %vm1835, %v2464, %v2280
  %v2482 = vsel %vm1835, %v2466, %v2282
  %v2484 = vsel %vm1835, %v2468, %v2284
  %v2486 = vsel %vm1835, %v2470, %v2286
  %v2488 = vsel %vm1835, %v2472, %v2288
  %v2489 = vrot.slane %v2319, 6
  %v2490 = vrot.slane %v2326, 6
  %v2491 = vrot.slane %v2333, 6
  %v2492 = vrot.slane %v2340, 6
  %v2493 = vrot.slane %v2347, 6
  %v2494 = vrot.slane %v2354, 6
  %v2495 = vrot.slane %v2361, 6
  %v2496 = vrot.slane %v2368, 6
  %v2498 = vsel %vm122, %v2474, %v2489
  %v2500 = vsel %vm122, %v2476, %v2490
  %v2502 = vsel %vm122, %v2478, %v2491
  %v2504 = vsel %vm122, %v2480, %v2492
  %v2506 = vsel %vm122, %v2482, %v2493
  %v2508 = vsel %vm122, %v2484, %v2494
  %v2510 = vsel %vm122, %v2486, %v2495
  %v2512 = vsel %vm122, %v2488, %v2496
  %2513 = vst [vmem:[#allocation1] ss:$4 sm:$0xff] %v2498
  %s2514 = scalar_lea.vmem [#allocation1], 1
  %2515 = vst [vmem:[%s2514] ss:$4 sm:$0xff] %v2500
  %s2516 = scalar_lea.vmem [#allocation1], 2
  %2517 = vst [vmem:[%s2516] ss:$4 sm:$0xff] %v2502
  %s2518 = scalar_lea.vmem [#allocation1], 3
  %2519 = vst [vmem:[%s2518] ss:$4 sm:$0xff] %v2504
  %s2520 = scalar_lea.vmem [#allocation1], 32
  %2521 = vst [vmem:[%s2520] ss:$4 sm:$0xff] %v2506
  %s2522 = scalar_lea.vmem [#allocation1], 33
  %2523 = vst [vmem:[%s2522] ss:$4 sm:$0xff] %v2508
  %s2524 = scalar_lea.vmem [#allocation1], 34
  %2525 = vst [vmem:[%s2524] ss:$4 sm:$0xff] %v2510
  %s2526 = scalar_lea.vmem [#allocation1], 35
  %2527 = vst [vmem:[%s2526] ss:$4 sm:$0xff] %v2512
  %v2528 = vld.sshfl [vmem:[#allocation1] sm:$0xff pattern:$0x73625140]
  %v2529 = vld.sshfl [vmem:[#allocation1 + $0x8] sm:$0xff pattern:$0x73625140]
  %v2530 = vld.sshfl [vmem:[#allocation1 + $0x20] sm:$0xff pattern:$0x73625140]
  %v2531 = vld.sshfl [vmem:[#allocation1 + $0x28] sm:$0xff pattern:$0x73625140]
  %v2534 = vsel %vm1725, %v2529, 0
  %v2536 = vsel %vm1725, %v2531, 0
  %2538 = vmatpush.bf16.msra.mxu0 %v1940
  %2539 = vmatpush.bf16.msra.mxu0 %v1939
  %2540 = vmatpush.bf16.msra.mxu0 %v1938
  %2541 = vmatpush.bf16.msra.mxu0 %v1937
  %2542 = vmatpush.bf16.msra.mxu0 %v1936
  %2543 = vmatpush.bf16.msra.mxu0 %v1935
  %2544 = vmatpush.bf16.msra.mxu0 %v1934
  %2545 = vmatpush.bf16.msra.mxu0 %v1933
  %2546 = vmatmul.bf16.gmra.mxu0 %v2528
  %v2547 = vpop.f32.mrf.mxu0
  %v2548 = vadd.f32 0.0, %v2547
  %v2549 = vpop.f32.mrf.mxu0
  %v2550 = vadd.f32 0.0, %v2549
  %2551 = vmatmul.bf16.gmra.mxu0 %v2530
  %v2552 = vpop.f32.mrf.mxu0
  %v2553 = vadd.f32 0.0, %v2552
  %v2554 = vpop.f32.mrf.mxu0
  %v2555 = vadd.f32 0.0, %v2554
  %2556 = vdwg.mxu0
  %2557 = vmatpush.bf16.msra.mxu0 0
  %2558 = vmatpush.bf16.msra.mxu0 0
  %2559 = vmatpush.bf16.msra.mxu0 0
  %2560 = vmatpush.bf16.msra.mxu0 0
  %2561 = vmatpush.bf16.msra.mxu0 0
  %2562 = vmatpush.bf16.msra.mxu0 0
  %2563 = vmatpush.bf16.msra.mxu0 0
  %2564 = vmatpush.bf16.msra.mxu0 %v1941
  %2565 = vmatmul.bf16.gmra.mxu0 %v2534
  %v2566 = vpop.f32.mrf.mxu0
  %v2567 = vadd.f32 %v2548, %v2566
  %v2568 = vpop.f32.mrf.mxu0
  %v2569 = vadd.f32 %v2550, %v2568
  %2570 = vmatmul.bf16.gmra.mxu0 %v2536
  %v2571 = vpop.f32.mrf.mxu0
  %v2572 = vadd.f32 %v2553, %v2571
  %v2573 = vpop.f32.mrf.mxu0
  %v2574 = vadd.f32 %v2555, %v2573
  %2575 = vdwg.mxu0
  %v2576 = vmax.f32 %v1984, %v2567
  %v2577 = vmax.f32 %v1986, %v2569
  %v2578 = vmax.f32 %v1989, %v2572
  %v2579 = vmax.f32 %v1991, %v2574
  %s2580 = scalar_lea.vmem [#allocation2], 84
  %v2581 = vld [vmem:[%s2580] sm:$0x3]
  %v2582 = vld [vmem:[%s2580 + $0x4] sm:$0x3]
  %v2583 = vld [vmem:[%s2580 + $0x8] sm:$0x3]
  %v2584 = vld [vmem:[%s2580 + $0xc] sm:$0x3]
  %v2585 = vld [vmem:[%s2580 + $0x14] sm:$0x3]
  %v2586 = vld [vmem:[%s2580 + $0x18] sm:$0x3]
  %v2587 = vld [vmem:[%s2580 + $0x1c] sm:$0x3]
  %v2588 = vld [vmem:[%s2580 + $0x20] sm:$0x3]
  %s2589 = scalar_lea.vmem [#allocation2], 124
  %v2590 = vld [vmem:[%s2589] sm:$0x3]
  %v2591 = vld [vmem:[%s2589 + $0x4] sm:$0x3]
  %v2592 = vld [vmem:[%s2589 + $0x8] sm:$0x3]
  %v2593 = vld [vmem:[%s2589 + $0xc] sm:$0x3]
  %v2594 = vld [vmem:[%s2589 + $0x14] sm:$0x3]
  %v2595 = vld [vmem:[%s2589 + $0x18] sm:$0x3]
  %v2596 = vld [vmem:[%s2589 + $0x1c] sm:$0x3]
  %v2597 = vld [vmem:[%s2589 + $0x20] sm:$0x3]
  %v2598 = vld [vmem:[%s2580] sm:$0x7]
  %v2599 = vld [vmem:[%s2580 + $0x4] sm:$0x7]
  %v2600 = vld [vmem:[%s2580 + $0x8] sm:$0x7]
  %v2601 = vld [vmem:[%s2580 + $0xc] sm:$0x7]
  %v2602 = vld [vmem:[%s2580 + $0x14] sm:$0x7]
  %v2603 = vld [vmem:[%s2580 + $0x18] sm:$0x7]
  %v2604 = vld [vmem:[%s2580 + $0x1c] sm:$0x7]
  %v2605 = vld [vmem:[%s2580 + $0x20] sm:$0x7]
  %2606 = vrot.lane.b32.xlu0 %v1445, 16
  %v2607 = vpop.permute.xlu0 %2606
  %2608 = vrot.lane.b32.xlu0 %v1446, 16
  %v2609 = vpop.permute.xlu0 %2608
  %2610 = vrot.lane.b32.xlu0 %v1447, 16
  %v2611 = vpop.permute.xlu0 %2610
  %2612 = vrot.lane.b32.xlu0 %v1448, 16
  %v2613 = vpop.permute.xlu0 %2612
  %2614 = vrot.lane.b32.xlu0 %v1449, 16
  %v2615 = vpop.permute.xlu0 %2614
  %2616 = vrot.lane.b32.xlu0 %v1450, 16
  %v2617 = vpop.permute.xlu0 %2616
  %2618 = vrot.lane.b32.xlu0 %v1451, 16
  %v2619 = vpop.permute.xlu0 %2618
  %2620 = vrot.lane.b32.xlu0 %v1452, 16
  %v2621 = vpop.permute.xlu0 %2620
  %2622 = vrot.lane.b32.xlu0 %v1499, 32
  %v2623 = vpop.permute.xlu0 %2622
  %2624 = vrot.lane.b32.xlu0 %v1506, 32
  %v2625 = vpop.permute.xlu0 %2624
  %2626 = vrot.lane.b32.xlu0 %v1513, 32
  %v2627 = vpop.permute.xlu0 %2626
  %2628 = vrot.lane.b32.xlu0 %v1520, 32
  %v2629 = vpop.permute.xlu0 %2628
  %2630 = vrot.lane.b32.xlu0 %v1527, 32
  %v2631 = vpop.permute.xlu0 %2630
  %2632 = vrot.lane.b32.xlu0 %v1534, 32
  %v2633 = vpop.permute.xlu0 %2632
  %2634 = vrot.lane.b32.xlu0 %v1541, 32
  %v2635 = vpop.permute.xlu0 %2634
  %2636 = vrot.lane.b32.xlu0 %v1548, 32
  %v2637 = vpop.permute.xlu0 %2636
  %2638 = vrot.lane.b32.xlu0 %v1581, 48
  %v2639 = vpop.permute.xlu0 %2638
  %2640 = vrot.lane.b32.xlu0 %v1582, 48
  %v2641 = vpop.permute.xlu0 %2640
  %2642 = vrot.lane.b32.xlu0 %v1583, 48
  %v2643 = vpop.permute.xlu0 %2642
  %2644 = vrot.lane.b32.xlu0 %v1584, 48
  %v2645 = vpop.permute.xlu0 %2644
  %2646 = vrot.lane.b32.xlu0 %v1585, 48
  %v2647 = vpop.permute.xlu0 %2646
  %2648 = vrot.lane.b32.xlu0 %v1586, 48
  %v2649 = vpop.permute.xlu0 %2648
  %2650 = vrot.lane.b32.xlu0 %v1587, 48
  %v2651 = vpop.permute.xlu0 %2650
  %2652 = vrot.lane.b32.xlu0 %v1588, 48
  %v2653 = vpop.permute.xlu0 %2652
  %2654 = vrot.lane.b32.xlu0 %v1621, 64
  %v2655 = vpop.permute.xlu0 %2654
  %2656 = vrot.lane.b32.xlu0 %v1622, 64
  %v2657 = vpop.permute.xlu0 %2656
  %2658 = vrot.lane.b32.xlu0 %v1623, 64
  %v2659 = vpop.permute.xlu0 %2658
  %2660 = vrot.lane.b32.xlu0 %v1624, 64
  %v2661 = vpop.permute.xlu0 %2660
  %2662 = vrot.lane.b32.xlu0 %v1625, 64
  %v2663 = vpop.permute.xlu0 %2662
  %2664 = vrot.lane.b32.xlu0 %v1626, 64
  %v2665 = vpop.permute.xlu0 %2664
  %2666 = vrot.lane.b32.xlu0 %v1627, 64
  %v2667 = vpop.permute.xlu0 %2666
  %2668 = vrot.lane.b32.xlu0 %v1628, 64
  %v2669 = vpop.permute.xlu0 %2668
  %2670 = vrot.lane.b32.xlu0 %v1675, 80
  %v2671 = vpop.permute.xlu0 %2670
  %2672 = vrot.lane.b32.xlu0 %v1682, 80
  %v2673 = vpop.permute.xlu0 %2672
  %2674 = vrot.lane.b32.xlu0 %v1689, 80
  %v2675 = vpop.permute.xlu0 %2674
  %2676 = vrot.lane.b32.xlu0 %v1696, 80
  %v2677 = vpop.permute.xlu0 %2676
  %2678 = vrot.lane.b32.xlu0 %v1703, 80
  %v2679 = vpop.permute.xlu0 %2678
  %2680 = vrot.lane.b32.xlu0 %v1710, 80
  %v2681 = vpop.permute.xlu0 %2680
  %2682 = vrot.lane.b32.xlu0 %v1717, 80
  %v2683 = vpop.permute.xlu0 %2682
  %2684 = vrot.lane.b32.xlu0 %v1724, 80
  %v2685 = vpop.permute.xlu0 %2684
  %v2694 = vunpack.c.l.b16 %v2581
  %v2695 = vunpack.c.l.b16 %v2582
  %v2696 = vunpack.c.l.b16 %v2583
  %v2697 = vunpack.c.l.b16 %v2584
  %v2698 = vunpack.c.l.b16 %v2585
  %v2699 = vunpack.c.l.b16 %v2586
  %v2700 = vunpack.c.l.b16 %v2587
  %v2701 = vunpack.c.l.b16 %v2588
  %v2702 = vpack.c.b16 %v2694, %v2694
  %v2703 = vpack.c.b16 %v2695, %v2695
  %v2704 = vpack.c.b16 %v2696, %v2696
  %v2705 = vpack.c.b16 %v2697, %v2697
  %v2706 = vpack.c.b16 %v2698, %v2698
  %v2707 = vpack.c.b16 %v2699, %v2699
  %v2708 = vpack.c.b16 %v2700, %v2700
  %v2709 = vpack.c.b16 %v2701, %v2701
  %2710 = vrot.lane.b32.xlu0 %v2702, 96
  %v2711 = vpop.permute.xlu0 %2710
  %2712 = vrot.lane.b32.xlu0 %v2703, 96
  %v2713 = vpop.permute.xlu0 %2712
  %2714 = vrot.lane.b32.xlu0 %v2704, 96
  %v2715 = vpop.permute.xlu0 %2714
  %2716 = vrot.lane.b32.xlu0 %v2705, 96
  %v2717 = vpop.permute.xlu0 %2716
  %2718 = vrot.lane.b32.xlu0 %v2706, 96
  %v2719 = vpop.permute.xlu0 %2718
  %2720 = vrot.lane.b32.xlu0 %v2707, 96
  %v2721 = vpop.permute.xlu0 %2720
  %2722 = vrot.lane.b32.xlu0 %v2708, 96
  %v2723 = vpop.permute.xlu0 %2722
  %2724 = vrot.lane.b32.xlu0 %v2709, 96
  %v2725 = vpop.permute.xlu0 %2724
  %v2734 = vunpack.c.l.b16 %v2590
  %v2735 = vunpack.c.l.b16 %v2591
  %v2736 = vunpack.c.l.b16 %v2592
  %v2737 = vunpack.c.l.b16 %v2593
  %v2738 = vunpack.c.l.b16 %v2594
  %v2739 = vunpack.c.l.b16 %v2595
  %v2740 = vunpack.c.l.b16 %v2596
  %v2741 = vunpack.c.l.b16 %v2597
  %v2742 = vpack.c.b16 %v2734, %v2734
  %v2743 = vpack.c.b16 %v2735, %v2735
  %v2744 = vpack.c.b16 %v2736, %v2736
  %v2745 = vpack.c.b16 %v2737, %v2737
  %v2746 = vpack.c.b16 %v2738, %v2738
  %v2747 = vpack.c.b16 %v2739, %v2739
  %v2748 = vpack.c.b16 %v2740, %v2740
  %v2749 = vpack.c.b16 %v2741, %v2741
  %2750 = vrot.lane.b32.xlu0 %v2742, 112
  %v2751 = vpop.permute.xlu0 %2750
  %2752 = vrot.lane.b32.xlu0 %v2743, 112
  %v2753 = vpop.permute.xlu0 %2752
  %2754 = vrot.lane.b32.xlu0 %v2744, 112
  %v2755 = vpop.permute.xlu0 %2754
  %2756 = vrot.lane.b32.xlu0 %v2745, 112
  %v2757 = vpop.permute.xlu0 %2756
  %2758 = vrot.lane.b32.xlu0 %v2746, 112
  %v2759 = vpop.permute.xlu0 %2758
  %2760 = vrot.lane.b32.xlu0 %v2747, 112
  %v2761 = vpop.permute.xlu0 %2760
  %2762 = vrot.lane.b32.xlu0 %v2748, 112
  %v2763 = vpop.permute.xlu0 %2762
  %2764 = vrot.lane.b32.xlu0 %v2749, 112
  %v2765 = vpop.permute.xlu0 %2764
  %v2774 = vunpack.c.l.b16 %v2598
  %v2775 = vunpack.c.l.b16 %v2599
  %v2776 = vunpack.c.l.b16 %v2600
  %v2777 = vunpack.c.l.b16 %v2601
  %v2778 = vunpack.c.l.b16 %v2602
  %v2779 = vunpack.c.l.b16 %v2603
  %v2780 = vunpack.c.l.b16 %v2604
  %v2781 = vunpack.c.l.b16 %v2605
  %v2782 = vpack.c.b16 %v2774, %v2774
  %v2783 = vpack.c.b16 %v2775, %v2775
  %v2784 = vpack.c.b16 %v2776, %v2776
  %v2785 = vpack.c.b16 %v2777, %v2777
  %v2786 = vpack.c.b16 %v2778, %v2778
  %v2787 = vpack.c.b16 %v2779, %v2779
  %v2788 = vpack.c.b16 %v2780, %v2780
  %v2789 = vpack.c.b16 %v2781, %v2781
  %v2791 = vshrl.u32 %v2782, 16
  %v2793 = vshll.u32 %v2782, 16
  %v2795 = vrot.slane %v2793, 1
  %v2796 = vor.u32 %v2791, %v2795
  %v2798 = vshrl.u32 %v2783, 16
  %v2800 = vshll.u32 %v2783, 16
  %v2802 = vrot.slane %v2800, 1
  %v2803 = vor.u32 %v2798, %v2802
  %v2805 = vshrl.u32 %v2784, 16
  %v2807 = vshll.u32 %v2784, 16
  %v2809 = vrot.slane %v2807, 1
  %v2810 = vor.u32 %v2805, %v2809
  %v2812 = vshrl.u32 %v2785, 16
  %v2814 = vshll.u32 %v2785, 16
  %v2816 = vrot.slane %v2814, 1
  %v2817 = vor.u32 %v2812, %v2816
  %v2819 = vshrl.u32 %v2786, 16
  %v2821 = vshll.u32 %v2786, 16
  %v2823 = vrot.slane %v2821, 1
  %v2824 = vor.u32 %v2819, %v2823
  %v2826 = vshrl.u32 %v2787, 16
  %v2828 = vshll.u32 %v2787, 16
  %v2830 = vrot.slane %v2828, 1
  %v2831 = vor.u32 %v2826, %v2830
  %v2833 = vshrl.u32 %v2788, 16
  %v2835 = vshll.u32 %v2788, 16
  %v2837 = vrot.slane %v2835, 1
  %v2838 = vor.u32 %v2833, %v2837
  %v2840 = vshrl.u32 %v2789, 16
  %v2842 = vshll.u32 %v2789, 16
  %v2844 = vrot.slane %v2842, 1
  %v2845 = vor.u32 %v2840, %v2844
  %v2848 = vsel %vm1725, %v1205, %v2607
  %v2851 = vsel %vm1725, %v1206, %v2609
  %v2854 = vsel %vm1725, %v1207, %v2611
  %v2857 = vsel %vm1725, %v1208, %v2613
  %v2860 = vsel %vm1725, %v1209, %v2615
  %v2863 = vsel %vm1725, %v1210, %v2617
  %v2866 = vsel %vm1725, %v1211, %v2619
  %v2869 = vsel %vm1725, %v1212, %v2621
  %v2871 = vsel %vm1750, %v2848, %v2623
  %v2873 = vsel %vm1750, %v2851, %v2625
  %v2875 = vsel %vm1750, %v2854, %v2627
  %v2877 = vsel %vm1750, %v2857, %v2629
  %v2879 = vsel %vm1750, %v2860, %v2631
  %v2881 = vsel %vm1750, %v2863, %v2633
  %v2883 = vsel %vm1750, %v2866, %v2635
  %v2885 = vsel %vm1750, %v2869, %v2637
  %v2887 = vsel %vm1767, %v2871, %v2639
  %v2889 = vsel %vm1767, %v2873, %v2641
  %v2891 = vsel %vm1767, %v2875, %v2643
  %v2893 = vsel %vm1767, %v2877, %v2645
  %v2895 = vsel %vm1767, %v2879, %v2647
  %v2897 = vsel %vm1767, %v2881, %v2649
  %v2899 = vsel %vm1767, %v2883, %v2651
  %v2901 = vsel %vm1767, %v2885, %v2653
  %v2903 = vsel %vm1784, %v2887, %v2655
  %v2905 = vsel %vm1784, %v2889, %v2657
  %v2907 = vsel %vm1784, %v2891, %v2659
  %v2909 = vsel %vm1784, %v2893, %v2661
  %v2911 = vsel %vm1784, %v2895, %v2663
  %v2913 = vsel %vm1784, %v2897, %v2665
  %v2915 = vsel %vm1784, %v2899, %v2667
  %v2917 = vsel %vm1784, %v2901, %v2669
  %v2919 = vsel %vm1801, %v2903, %v2671
  %v2921 = vsel %vm1801, %v2905, %v2673
  %v2923 = vsel %vm1801, %v2907, %v2675
  %v2925 = vsel %vm1801, %v2909, %v2677
  %v2927 = vsel %vm1801, %v2911, %v2679
  %v2929 = vsel %vm1801, %v2913, %v2681
  %v2931 = vsel %vm1801, %v2915, %v2683
  %v2933 = vsel %vm1801, %v2917, %v2685
  %v2935 = vsel %vm1818, %v2919, %v2711
  %v2937 = vsel %vm1818, %v2921, %v2713
  %v2939 = vsel %vm1818, %v2923, %v2715
  %v2941 = vsel %vm1818, %v2925, %v2717
  %v2943 = vsel %vm1818, %v2927, %v2719
  %v2945 = vsel %vm1818, %v2929, %v2721
  %v2947 = vsel %vm1818, %v2931, %v2723
  %v2949 = vsel %vm1818, %v2933, %v2725
  %v2951 = vsel %vm1835, %v2935, %v2751
  %v2953 = vsel %vm1835, %v2937, %v2753
  %v2955 = vsel %vm1835, %v2939, %v2755
  %v2957 = vsel %vm1835, %v2941, %v2757
  %v2959 = vsel %vm1835, %v2943, %v2759
  %v2961 = vsel %vm1835, %v2945, %v2761
  %v2963 = vsel %vm1835, %v2947, %v2763
  %v2965 = vsel %vm1835, %v2949, %v2765
  %v2966 = vrot.slane %v2796, 6
  %v2967 = vrot.slane %v2803, 6
  %v2968 = vrot.slane %v2810, 6
  %v2969 = vrot.slane %v2817, 6
  %v2970 = vrot.slane %v2824, 6
  %v2971 = vrot.slane %v2831, 6
  %v2972 = vrot.slane %v2838, 6
  %v2973 = vrot.slane %v2845, 6
  %v2975 = vsel %vm122, %v2951, %v2966
  %v2977 = vsel %vm122, %v2953, %v2967
  %v2979 = vsel %vm122, %v2955, %v2968
  %v2981 = vsel %vm122, %v2957, %v2969
  %v2983 = vsel %vm122, %v2959, %v2970
  %v2985 = vsel %vm122, %v2961, %v2971
  %v2987 = vsel %vm122, %v2963, %v2972
  %v2989 = vsel %vm122, %v2965, %v2973
  %2990 = vst [vmem:[#allocation1] ss:$4 sm:$0xff] %v2975
  %s2991 = scalar_lea.vmem [#allocation1], 1
  %2992 = vst [vmem:[%s2991] ss:$4 sm:$0xff] %v2977
  %s2993 = scalar_lea.vmem [#allocation1], 2
  %2994 = vst [vmem:[%s2993] ss:$4 sm:$0xff] %v2979
  %s2995 = scalar_lea.vmem [#allocation1], 3
  %2996 = vst [vmem:[%s2995] ss:$4 sm:$0xff] %v2981
  %s2997 = scalar_lea.vmem [#allocation1], 32
  %2998 = vst [vmem:[%s2997] ss:$4 sm:$0xff] %v2983
  %s2999 = scalar_lea.vmem [#allocation1], 33
  %3000 = vst [vmem:[%s2999] ss:$4 sm:$0xff] %v2985
  %s3001 = scalar_lea.vmem [#allocation1], 34
  %3002 = vst [vmem:[%s3001] ss:$4 sm:$0xff] %v2987
  %s3003 = scalar_lea.vmem [#allocation1], 35
  %3004 = vst [vmem:[%s3003] ss:$4 sm:$0xff] %v2989
  %v3005 = vld.sshfl [vmem:[#allocation1] sm:$0xff pattern:$0x73625140]
  %v3006 = vld.sshfl [vmem:[#allocation1 + $0x8] sm:$0xff pattern:$0x73625140]
  %v3007 = vld.sshfl [vmem:[#allocation1 + $0x20] sm:$0xff pattern:$0x73625140]
  %v3008 = vld.sshfl [vmem:[#allocation1 + $0x28] sm:$0xff pattern:$0x73625140]
  %v3011 = vsel %vm1725, %v3006, 0
  %v3013 = vsel %vm1725, %v3008, 0
  %3015 = vmatpush.bf16.msra.mxu0 %v1940
  %3016 = vmatpush.bf16.msra.mxu0 %v1939
  %3017 = vmatpush.bf16.msra.mxu0 %v1938
  %3018 = vmatpush.bf16.msra.mxu0 %v1937
  %3019 = vmatpush.bf16.msra.mxu0 %v1936
  %3020 = vmatpush.bf16.msra.mxu0 %v1935
  %3021 = vmatpush.bf16.msra.mxu0 %v1934
  %3022 = vmatpush.bf16.msra.mxu0 %v1933
  %3023 = vmatmul.bf16.gmra.mxu0 %v3005
  %v3024 = vpop.f32.mrf.mxu0
  %v3025 = vadd.f32 0.0, %v3024
  %v3026 = vpop.f32.mrf.mxu0
  %v3027 = vadd.f32 0.0, %v3026
  %3028 = vmatmul.bf16.gmra.mxu0 %v3007
  %v3029 = vpop.f32.mrf.mxu0
  %v3030 = vadd.f32 0.0, %v3029
  %v3031 = vpop.f32.mrf.mxu0
  %v3032 = vadd.f32 0.0, %v3031
  %3033 = vdwg.mxu0
  %3034 = vmatpush.bf16.msra.mxu0 0
  %3035 = vmatpush.bf16.msra.mxu0 0
  %3036 = vmatpush.bf16.msra.mxu0 0
  %3037 = vmatpush.bf16.msra.mxu0 0
  %3038 = vmatpush.bf16.msra.mxu0 0
  %3039 = vmatpush.bf16.msra.mxu0 0
  %3040 = vmatpush.bf16.msra.mxu0 0
  %3041 = vmatpush.bf16.msra.mxu0 %v1941
  %3042 = vmatmul.bf16.gmra.mxu0 %v3011
  %v3043 = vpop.f32.mrf.mxu0
  %v3044 = vadd.f32 %v3025, %v3043
  %v3045 = vpop.f32.mrf.mxu0
  %v3046 = vadd.f32 %v3027, %v3045
  %3047 = vmatmul.bf16.gmra.mxu0 %v3013
  %v3048 = vpop.f32.mrf.mxu0
  %v3049 = vadd.f32 %v3030, %v3048
  %v3050 = vpop.f32.mrf.mxu0
  %v3051 = vadd.f32 %v3032, %v3050
  %3052 = vdwg.mxu0
  %v3053 = vmax.f32 %v2576, %v3044
  %v3054 = vmax.f32 %v2577, %v3046
  %v3055 = vmax.f32 %v2578, %v3049
  %v3056 = vmax.f32 %v2579, %v3051
  %v3057 = vld [vmem:[%s2589] sm:$0x7]
  %v3058 = vld [vmem:[%s2589 + $0x4] sm:$0x7]
  %v3059 = vld [vmem:[%s2589 + $0x8] sm:$0x7]
  %v3060 = vld [vmem:[%s2589 + $0xc] sm:$0x7]
  %v3061 = vld [vmem:[%s2589 + $0x14] sm:$0x7]
  %v3062 = vld [vmem:[%s2589 + $0x18] sm:$0x7]
  %v3063 = vld [vmem:[%s2589 + $0x1c] sm:$0x7]
  %v3064 = vld [vmem:[%s2589 + $0x20] sm:$0x7]
  %3065 = vrot.lane.b32.xlu0 %v1499, 16
  %v3066 = vpop.permute.xlu0 %3065
  %3067 = vrot.lane.b32.xlu0 %v1506, 16
  %v3068 = vpop.permute.xlu0 %3067
  %3069 = vrot.lane.b32.xlu0 %v1513, 16
  %v3070 = vpop.permute.xlu0 %3069
  %3071 = vrot.lane.b32.xlu0 %v1520, 16
  %v3072 = vpop.permute.xlu0 %3071
  %3073 = vrot.lane.b32.xlu0 %v1527, 16
  %v3074 = vpop.permute.xlu0 %3073
  %3075 = vrot.lane.b32.xlu0 %v1534, 16
  %v3076 = vpop.permute.xlu0 %3075
  %3077 = vrot.lane.b32.xlu0 %v1541, 16
  %v3078 = vpop.permute.xlu0 %3077
  %3079 = vrot.lane.b32.xlu0 %v1548, 16
  %v3080 = vpop.permute.xlu0 %3079
  %3081 = vrot.lane.b32.xlu0 %v2191, 32
  %v3082 = vpop.permute.xlu0 %3081
  %3083 = vrot.lane.b32.xlu0 %v2198, 32
  %v3084 = vpop.permute.xlu0 %3083
  %3085 = vrot.lane.b32.xlu0 %v2205, 32
  %v3086 = vpop.permute.xlu0 %3085
  %3087 = vrot.lane.b32.xlu0 %v2212, 32
  %v3088 = vpop.permute.xlu0 %3087
  %3089 = vrot.lane.b32.xlu0 %v2219, 32
  %v3090 = vpop.permute.xlu0 %3089
  %3091 = vrot.lane.b32.xlu0 %v2226, 32
  %v3092 = vpop.permute.xlu0 %3091
  %3093 = vrot.lane.b32.xlu0 %v2233, 32
  %v3094 = vpop.permute.xlu0 %3093
  %3095 = vrot.lane.b32.xlu0 %v2240, 32
  %v3096 = vpop.permute.xlu0 %3095
  %3097 = vrot.lane.b32.xlu0 %v1621, 48
  %v3098 = vpop.permute.xlu0 %3097
  %3099 = vrot.lane.b32.xlu0 %v1622, 48
  %v3100 = vpop.permute.xlu0 %3099
  %3101 = vrot.lane.b32.xlu0 %v1623, 48
  %v3102 = vpop.permute.xlu0 %3101
  %3103 = vrot.lane.b32.xlu0 %v1624, 48
  %v3104 = vpop.permute.xlu0 %3103
  %3105 = vrot.lane.b32.xlu0 %v1625, 48
  %v3106 = vpop.permute.xlu0 %3105
  %3107 = vrot.lane.b32.xlu0 %v1626, 48
  %v3108 = vpop.permute.xlu0 %3107
  %3109 = vrot.lane.b32.xlu0 %v1627, 48
  %v3110 = vpop.permute.xlu0 %3109
  %3111 = vrot.lane.b32.xlu0 %v1628, 48
  %v3112 = vpop.permute.xlu0 %3111
  %3113 = vrot.lane.b32.xlu0 %v1675, 64
  %v3114 = vpop.permute.xlu0 %3113
  %3115 = vrot.lane.b32.xlu0 %v1682, 64
  %v3116 = vpop.permute.xlu0 %3115
  %3117 = vrot.lane.b32.xlu0 %v1689, 64
  %v3118 = vpop.permute.xlu0 %3117
  %3119 = vrot.lane.b32.xlu0 %v1696, 64
  %v3120 = vpop.permute.xlu0 %3119
  %3121 = vrot.lane.b32.xlu0 %v1703, 64
  %v3122 = vpop.permute.xlu0 %3121
  %3123 = vrot.lane.b32.xlu0 %v1710, 64
  %v3124 = vpop.permute.xlu0 %3123
  %3125 = vrot.lane.b32.xlu0 %v1717, 64
  %v3126 = vpop.permute.xlu0 %3125
  %3127 = vrot.lane.b32.xlu0 %v1724, 64
  %v3128 = vpop.permute.xlu0 %3127
  %3129 = vrot.lane.b32.xlu0 %v2319, 80
  %v3130 = vpop.permute.xlu0 %3129
  %3131 = vrot.lane.b32.xlu0 %v2326, 80
  %v3132 = vpop.permute.xlu0 %3131
  %3133 = vrot.lane.b32.xlu0 %v2333, 80
  %v3134 = vpop.permute.xlu0 %3133
  %3135 = vrot.lane.b32.xlu0 %v2340, 80
  %v3136 = vpop.permute.xlu0 %3135
  %3137 = vrot.lane.b32.xlu0 %v2347, 80
  %v3138 = vpop.permute.xlu0 %3137
  %3139 = vrot.lane.b32.xlu0 %v2354, 80
  %v3140 = vpop.permute.xlu0 %3139
  %3141 = vrot.lane.b32.xlu0 %v2361, 80
  %v3142 = vpop.permute.xlu0 %3141
  %3143 = vrot.lane.b32.xlu0 %v2368, 80
  %v3144 = vpop.permute.xlu0 %3143
  %3145 = vrot.lane.b32.xlu0 %v2742, 96
  %v3146 = vpop.permute.xlu0 %3145
  %3147 = vrot.lane.b32.xlu0 %v2743, 96
  %v3148 = vpop.permute.xlu0 %3147
  %3149 = vrot.lane.b32.xlu0 %v2744, 96
  %v3150 = vpop.permute.xlu0 %3149
  %3151 = vrot.lane.b32.xlu0 %v2745, 96
  %v3152 = vpop.permute.xlu0 %3151
  %3153 = vrot.lane.b32.xlu0 %v2746, 96
  %v3154 = vpop.permute.xlu0 %3153
  %3155 = vrot.lane.b32.xlu0 %v2747, 96
  %v3156 = vpop.permute.xlu0 %3155
  %3157 = vrot.lane.b32.xlu0 %v2748, 96
  %v3158 = vpop.permute.xlu0 %3157
  %3159 = vrot.lane.b32.xlu0 %v2749, 96
  %v3160 = vpop.permute.xlu0 %3159
  %3161 = vrot.lane.b32.xlu0 %v2796, 112
  %v3162 = vpop.permute.xlu0 %3161
  %3163 = vrot.lane.b32.xlu0 %v2803, 112
  %v3164 = vpop.permute.xlu0 %3163
  %3165 = vrot.lane.b32.xlu0 %v2810, 112
  %v3166 = vpop.permute.xlu0 %3165
  %3167 = vrot.lane.b32.xlu0 %v2817, 112
  %v3168 = vpop.permute.xlu0 %3167
  %3169 = vrot.lane.b32.xlu0 %v2824, 112
  %v3170 = vpop.permute.xlu0 %3169
  %3171 = vrot.lane.b32.xlu0 %v2831, 112
  %v3172 = vpop.permute.xlu0 %3171
  %3173 = vrot.lane.b32.xlu0 %v2838, 112
  %v3174 = vpop.permute.xlu0 %3173
  %3175 = vrot.lane.b32.xlu0 %v2845, 112
  %v3176 = vpop.permute.xlu0 %3175
  %v3185 = vunpack.c.l.b16 %v3057
  %v3186 = vunpack.c.l.b16 %v3058
  %v3187 = vunpack.c.l.b16 %v3059
  %v3188 = vunpack.c.l.b16 %v3060
  %v3189 = vunpack.c.l.b16 %v3061
  %v3190 = vunpack.c.l.b16 %v3062
  %v3191 = vunpack.c.l.b16 %v3063
  %v3192 = vunpack.c.l.b16 %v3064
  %v3193 = vpack.c.b16 %v3185, %v3185
  %v3194 = vpack.c.b16 %v3186, %v3186
  %v3195 = vpack.c.b16 %v3187, %v3187
  %v3196 = vpack.c.b16 %v3188, %v3188
  %v3197 = vpack.c.b16 %v3189, %v3189
  %v3198 = vpack.c.b16 %v3190, %v3190
  %v3199 = vpack.c.b16 %v3191, %v3191
  %v3200 = vpack.c.b16 %v3192, %v3192
  %v3202 = vshrl.u32 %v3193, 16
  %v3204 = vshll.u32 %v3193, 16
  %v3206 = vrot.slane %v3204, 1
  %v3207 = vor.u32 %v3202, %v3206
  %v3209 = vshrl.u32 %v3194, 16
  %v3211 = vshll.u32 %v3194, 16
  %v3213 = vrot.slane %v3211, 1
  %v3214 = vor.u32 %v3209, %v3213
  %v3216 = vshrl.u32 %v3195, 16
  %v3218 = vshll.u32 %v3195, 16
  %v3220 = vrot.slane %v3218, 1
  %v3221 = vor.u32 %v3216, %v3220
  %v3223 = vshrl.u32 %v3196, 16
  %v3225 = vshll.u32 %v3196, 16
  %v3227 = vrot.slane %v3225, 1
  %v3228 = vor.u32 %v3223, %v3227
  %v3230 = vshrl.u32 %v3197, 16
  %v3232 = vshll.u32 %v3197, 16
  %v3234 = vrot.slane %v3232, 1
  %v3235 = vor.u32 %v3230, %v3234
  %v3237 = vshrl.u32 %v3198, 16
  %v3239 = vshll.u32 %v3198, 16
  %v3241 = vrot.slane %v3239, 1
  %v3242 = vor.u32 %v3237, %v3241
  %v3244 = vshrl.u32 %v3199, 16
  %v3246 = vshll.u32 %v3199, 16
  %v3248 = vrot.slane %v3246, 1
  %v3249 = vor.u32 %v3244, %v3248
  %v3251 = vshrl.u32 %v3200, 16
  %v3253 = vshll.u32 %v3200, 16
  %v3255 = vrot.slane %v3253, 1
  %v3256 = vor.u32 %v3251, %v3255
  %v3259 = vsel %vm1725, %v1213, %v3066
  %v3262 = vsel %vm1725, %v1214, %v3068
  %v3265 = vsel %vm1725, %v1215, %v3070
  %v3268 = vsel %vm1725, %v1216, %v3072
  %v3271 = vsel %vm1725, %v1217, %v3074
  %v3274 = vsel %vm1725, %v1218, %v3076
  %v3277 = vsel %vm1725, %v1219, %v3078
  %v3280 = vsel %vm1725, %v1220, %v3080
  %v3282 = vsel %vm1750, %v3259, %v3082
  %v3284 = vsel %vm1750, %v3262, %v3084
  %v3286 = vsel %vm1750, %v3265, %v3086
  %v3288 = vsel %vm1750, %v3268, %v3088
  %v3290 = vsel %vm1750, %v3271, %v3090
  %v3292 = vsel %vm1750, %v3274, %v3092
  %v3294 = vsel %vm1750, %v3277, %v3094
  %v3296 = vsel %vm1750, %v3280, %v3096
  %v3298 = vsel %vm1767, %v3282, %v3098
  %v3300 = vsel %vm1767, %v3284, %v3100
  %v3302 = vsel %vm1767, %v3286, %v3102
  %v3304 = vsel %vm1767, %v3288, %v3104
  %v3306 = vsel %vm1767, %v3290, %v3106
  %v3308 = vsel %vm1767, %v3292, %v3108
  %v3310 = vsel %vm1767, %v3294, %v3110
  %v3312 = vsel %vm1767, %v3296, %v3112
  %v3314 = vsel %vm1784, %v3298, %v3114
  %v3316 = vsel %vm1784, %v3300, %v3116
  %v3318 = vsel %vm1784, %v3302, %v3118
  %v3320 = vsel %vm1784, %v3304, %v3120
  %v3322 = vsel %vm1784, %v3306, %v3122
  %v3324 = vsel %vm1784, %v3308, %v3124
  %v3326 = vsel %vm1784, %v3310, %v3126
  %v3328 = vsel %vm1784, %v3312, %v3128
  %v3330 = vsel %vm1801, %v3314, %v3130
  %v3332 = vsel %vm1801, %v3316, %v3132
  %v3334 = vsel %vm1801, %v3318, %v3134
  %v3336 = vsel %vm1801, %v3320, %v3136
  %v3338 = vsel %vm1801, %v3322, %v3138
  %v3340 = vsel %vm1801, %v3324, %v3140
  %v3342 = vsel %vm1801, %v3326, %v3142
  %v3344 = vsel %vm1801, %v3328, %v3144
  %v3346 = vsel %vm1818, %v3330, %v3146
  %v3348 = vsel %vm1818, %v3332, %v3148
  %v3350 = vsel %vm1818, %v3334, %v3150
  %v3352 = vsel %vm1818, %v3336, %v3152
  %v3354 = vsel %vm1818, %v3338, %v3154
  %v3356 = vsel %vm1818, %v3340, %v3156
  %v3358 = vsel %vm1818, %v3342, %v3158
  %v3360 = vsel %vm1818, %v3344, %v3160
  %v3362 = vsel %vm1835, %v3346, %v3162
  %v3364 = vsel %vm1835, %v3348, %v3164
  %v3366 = vsel %vm1835, %v3350, %v3166
  %v3368 = vsel %vm1835, %v3352, %v3168
  %v3370 = vsel %vm1835, %v3354, %v3170
  %v3372 = vsel %vm1835, %v3356, %v3172
  %v3374 = vsel %vm1835, %v3358, %v3174
  %v3376 = vsel %vm1835, %v3360, %v3176
  %v3377 = vrot.slane %v3207, 6
  %v3378 = vrot.slane %v3214, 6
  %v3379 = vrot.slane %v3221, 6
  %v3380 = vrot.slane %v3228, 6
  %v3381 = vrot.slane %v3235, 6
  %v3382 = vrot.slane %v3242, 6
  %v3383 = vrot.slane %v3249, 6
  %v3384 = vrot.slane %v3256, 6
  %v3386 = vsel %vm122, %v3362, %v3377
  %v3388 = vsel %vm122, %v3364, %v3378
  %v3390 = vsel %vm122, %v3366, %v3379
  %v3392 = vsel %vm122, %v3368, %v3380
  %v3394 = vsel %vm122, %v3370, %v3381
  %v3396 = vsel %vm122, %v3372, %v3382
  %v3398 = vsel %vm122, %v3374, %v3383
  %v3400 = vsel %vm122, %v3376, %v3384
  %3401 = vst [vmem:[#allocation1] ss:$4 sm:$0xff] %v3386
  %s3402 = scalar_lea.vmem [#allocation1], 1
  %3403 = vst [vmem:[%s3402] ss:$4 sm:$0xff] %v3388
  %s3404 = scalar_lea.vmem [#allocation1], 2
  %3405 = vst [vmem:[%s3404] ss:$4 sm:$0xff] %v3390
  %s3406 = scalar_lea.vmem [#allocation1], 3
  %3407 = vst [vmem:[%s3406] ss:$4 sm:$0xff] %v3392
  %s3408 = scalar_lea.vmem [#allocation1], 32
  %3409 = vst [vmem:[%s3408] ss:$4 sm:$0xff] %v3394
  %s3410 = scalar_lea.vmem [#allocation1], 33
  %3411 = vst [vmem:[%s3410] ss:$4 sm:$0xff] %v3396
  %s3412 = scalar_lea.vmem [#allocation1], 34
  %3413 = vst [vmem:[%s3412] ss:$4 sm:$0xff] %v3398
  %s3414 = scalar_lea.vmem [#allocation1], 35
  %3415 = vst [vmem:[%s3414] ss:$4 sm:$0xff] %v3400
  %v3416 = vld.sshfl [vmem:[#allocation1] sm:$0xff pattern:$0x73625140]
  %v3417 = vld.sshfl [vmem:[#allocation1 + $0x8] sm:$0xff pattern:$0x73625140]
  %v3418 = vld.sshfl [vmem:[#allocation1 + $0x20] sm:$0xff pattern:$0x73625140]
  %v3419 = vld.sshfl [vmem:[#allocation1 + $0x28] sm:$0xff pattern:$0x73625140]
  %v3422 = vsel %vm1725, %v3417, 0
  %v3424 = vsel %vm1725, %v3419, 0
  %3426 = vmatpush.bf16.msra.mxu0 %v1940
  %3427 = vmatpush.bf16.msra.mxu0 %v1939
  %3428 = vmatpush.bf16.msra.mxu0 %v1938
  %3429 = vmatpush.bf16.msra.mxu0 %v1937
  %3430 = vmatpush.bf16.msra.mxu0 %v1936
  %3431 = vmatpush.bf16.msra.mxu0 %v1935
  %3432 = vmatpush.bf16.msra.mxu0 %v1934
  %3433 = vmatpush.bf16.msra.mxu0 %v1933
  %3434 = vmatmul.bf16.gmra.mxu0 %v3416
  %v3435 = vpop.f32.mrf.mxu0
  %v3436 = vadd.f32 0.0, %v3435
  %v3437 = vpop.f32.mrf.mxu0
  %v3438 = vadd.f32 0.0, %v3437
  %3439 = vmatmul.bf16.gmra.mxu0 %v3418
  %v3440 = vpop.f32.mrf.mxu0
  %v3441 = vadd.f32 0.0, %v3440
  %v3442 = vpop.f32.mrf.mxu0
  %v3443 = vadd.f32 0.0, %v3442
  %3444 = vdwg.mxu0
  %3445 = vmatpush.bf16.msra.mxu0 0
  %3446 = vmatpush.bf16.msra.mxu0 0
  %3447 = vmatpush.bf16.msra.mxu0 0
  %3448 = vmatpush.bf16.msra.mxu0 0
  %3449 = vmatpush.bf16.msra.mxu0 0
  %3450 = vmatpush.bf16.msra.mxu0 0
  %3451 = vmatpush.bf16.msra.mxu0 0
  %3452 = vmatpush.bf16.msra.mxu0 %v1941
  %3453 = vmatmul.bf16.gmra.mxu0 %v3422
  %v3454 = vpop.f32.mrf.mxu0
  %v3455 = vadd.f32 %v3436, %v3454
  %v3456 = vpop.f32.mrf.mxu0
  %v3457 = vadd.f32 %v3438, %v3456
  %3458 = vmatmul.bf16.gmra.mxu0 %v3424
  %v3459 = vpop.f32.mrf.mxu0
  %v3460 = vadd.f32 %v3441, %v3459
  %v3461 = vpop.f32.mrf.mxu0
  %v3462 = vadd.f32 %v3443, %v3461
  %3463 = vdwg.mxu0
  %v3464 = vmax.f32 %v3053, %v3455
  %v3465 = vmax.f32 %v3054, %v3457
  %v3466 = vmax.f32 %v3055, %v3460
  %v3467 = vmax.f32 %v3056, %v3462
  %v3468 = vld [vmem:[%s4] sm:$0x1]
  %v3470 = vperm.slane %v3468, 0
  %v3472 = vadd.f32 %v3464, %v3470
  %v3473 = vadd.f32 %v3465, %v3470
  %v3474 = vadd.f32 %v3466, %v3470
  %v3475 = vadd.f32 %v3467, %v3470
  %v3476 = vmax.f32 %v3472, 0.0
  %v3477 = vmax.f32 %v3473, 0.0
  %v3478 = vmax.f32 %v3474, 0.0
  %v3479 = vmax.f32 %v3475, 0.0
  %v3480 = vpack.c.bf16 %v3476, %v3476
  %v3481 = vpack.c.bf16 %v3477, %v3477
  %v3482 = vpack.c.bf16 %v3478, %v3478
  %v3483 = vpack.c.bf16 %v3479, %v3479
  %vm3484 = vcmask 257024
  %3485 = vst.msk [vmem:[%s5] sm:$0xf] %vm3484, %v3480
  %3486 = vst.msk [vmem:[%s5 + $0x4] sm:$0xf] %vm3484, %v3481
  %3487 = vst.msk [vmem:[%s5 + $0x8] sm:$0xf] %vm3484, %v3482
  %3488 = vst.msk [vmem:[%s5 + $0xc] sm:$0xf] %vm3484, %v3483
  // Predicated region
  $region22: #{_lambda_.2} parent=0 // pred_check
    _
  $region23: #{_lambda_.2} parent=0 // pred_check_branch
    %3490 = sbr.rel (0) target = $region25
  $region24: #{_lambda_.2} parent=0 // pred_region
    _
  $region25: #{_lambda_.2} parent=0 // pred_fallthru
    _
  // Predicated region
  $region26: #{_lambda_.2} parent=0 // pred_check
    _
  $region27: #{_lambda_.2} parent=0 // pred_check_branch
    %3492 = sbr.rel (0) target = $region29
  $region28: #{_lambda_.2} parent=0 // pred_region
    _
  $region29: #{_lambda_.2} parent=0 // pred_fallthru
    _

</llo_original>
